<compile_context>
chip_gen: v6e
topology: v6e:2x2x1
jax: 0.10.0
libtpu: 0.0.40
codegen_flags: <defaults>
</compile_context>

<pallas_src>
from functools import partial

import numpy as np
import jax
import jax.numpy as jnp
from jax.experimental import pallas as pl
from jax.experimental.pallas import tpu as pltpu

MAX_WS = 8  # max_window_size in the PyTorch module (rel-pos table size)


# ------------------------------ Pallas kernel --------------------------------

def window_attention_kernel(x_ref, wqkv_ref, bqkv_ref, wp_ref, bp_ref, bm_ref,
                            o_ref, slab_ref, *, num_heads, tokens_per_window):
    """Multi-head window attention on a batch of WB windows.

    x_ref    : (M, C)      bf16   tokens of WB windows (M = WB*N), row-major
    wqkv_ref : (C, 3C)     bf16   fused QKV weight (scale folded into Q cols)
    bqkv_ref : (1, 3C)     f32    fused QKV bias   (scale folded into Q part)
    wp_ref   : (C, Cp)     bf16   output projection, lane-padded to Cp
    bp_ref   : (1, Cp)     f32    output projection bias (padded)
    bm_ref   : (H, nW, N, N) bf16 rel-pos bias (+ shift mask); windows repeat
                                   with period nW inside a step
    o_ref    : (M, Cp)     f32
    slab_ref : (M, C)      bf16   VMEM scratch: lane-dense concat of head outs
    """
    M, C = x_ref.shape
    N = tokens_per_window
    WB = M // N
    H = num_heads
    hd = C // H
    nW = bm_ref.shape[1]
    G = WB // nW

    xb = x_ref[...]                                              # (M, C) bf16

    # --- fused QKV projection: one lane-dense (M,C) @ (C,3C) MXU matmul -----
    qkv = jnp.dot(xb, wqkv_ref[...], preferred_element_type=jnp.float32)
    qkv = qkv + bqkv_ref[...]                                    # (M, 3C) f32

    # --- per-head attention, batched over the WB windows of this step -------
    for h in range(H):                                           # H static, small
        q = qkv[:, h * hd:(h + 1) * hd]
        k = qkv[:, C + h * hd:C + (h + 1) * hd]
        v = qkv[:, 2 * C + h * hd:2 * C + (h + 1) * hd]
        q3 = q.reshape(WB, N, hd).astype(jnp.bfloat16)
        k3 = k.reshape(WB, N, hd).astype(jnp.bfloat16)
        v3 = v.reshape(WB, N, hd).astype(jnp.bfloat16)

        # attention scores, batched over windows: (WB, N, N)
        s = jax.lax.dot_general(q3, k3, (((2,), (2,)), ((0,), (0,))),
                                preferred_element_type=jnp.float32)
        # rel-pos bias (+ shift mask): window j inside the step uses mask j%nW
        s = (s.reshape(G, nW, N, N) + bm_ref[h]).reshape(WB, N, N)

        s = s - jnp.max(s, axis=-1, keepdims=True)
        p = jnp.exp(s)
        p = p * pl.reciprocal(jnp.sum(p, axis=-1, keepdims=True), approx=True)

        # attn @ v : (WB, N, hd), then drop into the lane-dense slab
        o_h = jax.lax.dot_general(p.astype(jnp.bfloat16), v3,
                                  (((2,), (1,)), ((0,), (0,))),
                                  preferred_element_type=jnp.float32)
        slab_ref[:, h * hd:(h + 1) * hd] = o_h.reshape(M, hd).astype(jnp.bfloat16)

    # --- single output projection: (M,C) @ (C,Cp), K = C, lane-dense store --
    out = jnp.dot(slab_ref[...], wp_ref[...],
                  preferred_element_type=jnp.float32) + bp_ref[...]
    o_ref[...] = out.astype(o_ref.dtype)


# --------------------------------- wrapper ------------------------------------

def _const_spec(arr):
    nd = arr.ndim
    return pl.BlockSpec(arr.shape, lambda *_: (0,) * nd)


def _pick_windows_per_step(B_, N, nW, target_rows=512, min_steps=4):
    """Largest window batch with ~target_rows rows/step and >= min_steps steps."""
    cands = [k * nW for k in range(1, B_ // nW + 1) if B_ % (k * nW) == 0]
    pool = [c for c in cands if B_ // c >= min_steps] or cands
    good = [c for c in pool if c * N <= target_rows]
    return max(good) if good else min(pool)


def run_window_attention(x, kp, *, num_heads, window_size, windows_per_step=None):
    B_, N, C = x.shape
    assert N == window_size * window_size
    nW = kp['bm'].shape[1]
    wb = windows_per_step or _pick_windows_per_step(B_, N, nW)
    assert B_ % wb == 0, "B_ must be a multiple of windows_per_step"
    assert wb % nW == 0, "windows_per_step must be a multiple of the mask nW"
    Cp = kp['wp'].shape[1]

    x2 = x.reshape(B_ * N, C).astype(jnp.bfloat16)   # bf16 activations in
    kernel = partial(window_attention_kernel,
                     num_heads=num_heads, tokens_per_window=N)

    out = pl.pallas_call(
        kernel,
        out_shape=jax.ShapeDtypeStruct((B_ * N, Cp), jnp.float32),
        grid=(B_ // wb,),
        in_specs=[
            pl.BlockSpec((wb * N, C), lambda g: (g, 0)),
            _const_spec(kp['wqkv']), _const_spec(kp['bqkv']),
            _const_spec(kp['wp']), _const_spec(kp['bp']),
            _const_spec(kp['bm']),
        ],
        out_specs=pl.BlockSpec((wb * N, Cp), lambda g: (g, 0)),
        scratch_shapes=[pltpu.VMEM((wb * N, C), jnp.bfloat16)],
        compiler_params=pltpu.CompilerParams(
            dimension_semantics=("parallel",),
            vmem_limit_bytes=32 * 1024 * 1024),
    )(x2, kp['wqkv'], kp['bqkv'], kp['wp'], kp['bp'], kp['bm'])

    # slice off the lane padding outside the kernel
    return out[:, :C].reshape(B_, N, C)


# ------------------------ host-side (init-time) prep ---------------------------

def rel_pos_index(window_size, max_window_size):
    """Same construction as WindowAttention._init_rel_pos_index."""
    coords = np.stack(np.meshgrid(np.arange(window_size),
                                  np.arange(window_size), indexing='ij'))
    cf = coords.reshape(2, -1)
    rel = (cf[:, :, None] - cf[:, None, :]).transpose(1, 2, 0).copy()
    rel[..., 0] += max_window_size - 1
    rel[..., 1] += max_window_size - 1
    rel[..., 0] *= 2 * max_window_size - 1
    return rel.sum(-1)                                        # (N, N) int


def rel_pos_bias(table, window_size, max_window_size):
    idx = rel_pos_index(window_size, max_window_size)
    N = window_size * window_size
    bias = table[idx.reshape(-1)].reshape(N, N, -1)
    return jnp.transpose(bias, (2, 0, 1)).astype(jnp.float32)  # (H, N, N)


def build_attn_mask(H, W, ws, ss):
    """Standard Swin shifted-window mask -> (nW, N, N)."""
    img = np.zeros((1, H, W, 1), np.float32)
    slices = (slice(0, -ws), slice(-ws, -ss), slice(-ss, None))
    cnt = 0
    for hs in slices:
        for wsl in slices:
            img[:, hs, wsl, :] = cnt
            cnt += 1
    x = img.reshape(1, H // ws, ws, W // ws, ws, 1)
    mw = x.transpose(0, 1, 3, 2, 4, 5).reshape(-1, ws * ws)
    am = mw[:, None, :] - mw[:, :, None]
    return jnp.asarray(np.where(am != 0, -100.0, 0.0).astype(np.float32))


def prepare_kernel_params(params, window_size, num_heads, mask=None,
                          max_window_size=MAX_WS, lane_pad=128):
    """One-time prep: fused QKV weight, scale folding, bias+mask fusion, padding."""
    wqkv = jnp.asarray(params['wqkv'], jnp.float32)    # (3C, C) torch layout
    bqkv = jnp.asarray(params['bqkv'], jnp.float32)    # (3C,)
    wproj = jnp.asarray(params['wproj'], jnp.float32)  # (C, C)
    bproj = jnp.asarray(params['bproj'], jnp.float32)  # (C,)
    C = wproj.shape[0]
    hd = C // num_heads
    scale = hd ** -0.5

    # fused QKV weight (C, 3C): columns [0:C]=Q, [C:2C]=K, [2C:3C]=V, each
    # head-major; fold the attention scale into the Q columns / bias.
    col_scale = jnp.concatenate([jnp.full((C,), scale, jnp.float32),
                                 jnp.ones((2 * C,), jnp.float32)])
    wqkv_f = wqkv.T * col_scale[None, :]
    bqkv_f = (bqkv * col_scale)[None, :]

    # output projection transposed to (C, C), lane-padded to a multiple of 128
    # so the kernel's output store is full-width (unmasked).
    Cp = -(-C // lane_pad) * lane_pad
    wp = jnp.zeros((C, Cp), jnp.float32).at[:, :C].set(wproj.T)
    bp = jnp.zeros((1, Cp), jnp.float32).at[0, :C].set(bproj)

    bias = rel_pos_bias(params['rpb_table'], window_size, max_window_size)
    if mask is not None:
        bm = bias[:, None, :, :] + jnp.asarray(mask, jnp.float32)[None]
    else:
        bm = bias[:, None, :, :]                               # (H, 1, N, N)

    return {
        'wqkv': wqkv_f.astype(jnp.bfloat16),
        'bqkv': bqkv_f.astype(jnp.float32),
        'wp': wp.astype(jnp.bfloat16),
        'bp': bp.astype(jnp.float32),
        'bm': bm.astype(jnp.bfloat16),
    }


# ---------------------------- pure-JAX reference -------------------------------

def reference_forward(x, params, mask, num_heads, window_size,
                      max_window_size=MAX_WS):
    B_, N, C = x.shape
    hd = C // num_heads
    scale = hd ** -0.5
    qkv = x @ params['wqkv'].T + params['bqkv']
    qkv = qkv.reshape(B_, N, 3, num_heads, hd).transpose(2, 0, 3, 1, 4)
    q, k, v = qkv[0] * scale, qkv[1], qkv[2]
    attn = jnp.einsum('bhnd,bhmd->bhnm', q, k)
    attn = attn + rel_pos_bias(params['rpb_table'], window_size,
                               max_window_size)[None]
    if mask is not None:
        nW = mask.shape[0]
        attn = attn.reshape(B_ // nW, nW, num_heads, N, N) + mask[None, :, None]
        attn = attn.reshape(B_, num_heads, N, N)
    attn = jax.nn.softmax(attn, axis=-1)
    out = jnp.einsum('bhnm,bhmd->bhnd', attn, v)
    out = out.transpose(0, 2, 1, 3).reshape(B_, N, C)
    return out @ params['wproj'].T + params['bproj']


# ------------------------------------ main -------------------------------------

if __name__ == "__main__":
    dim = 32
    num_heads = 4
    window_size = 4
    N = window_size * window_size           # 16 tokens per window
    img = 8                                 # 8x8 feature map
    shift = 2
    B = 8                                   # batch of images
    nW = (img // window_size) ** 2          # 4 windows per image
    B_ = B * nW                             # 32 windows total

    key = jax.random.PRNGKey(0)
    ks = jax.random.split(key, 6)
    params = {
        'wqkv':  jax.random.normal(ks[0], (3 * dim, dim), jnp.float32) * 0.02,
        'bqkv':  jax.random.normal(ks[1], (3 * dim,), jnp.float32) * 0.02,
        'wproj': jax.random.normal(ks[2], (dim, dim), jnp.float32) * 0.02,
        'bproj': jax.random.normal(ks[3], (dim,), jnp.float32) * 0.02,
        'rpb_table': jax.random.normal(
            ks[4], ((2 * MAX_WS - 1) ** 2, num_heads), jnp.float32) * 0.02,
    }
    x = jax.random.normal(ks[5], (B_, N, dim), jnp.float32)
    mask = build_attn_mask(img, img, window_size, shift)      # (nW, N, N)

    # --- masked (shifted-window) path: wb=8 windows/step (!= nW=4), grid=4 ---
    kp = prepare_kernel_params(params, window_size, num_heads, mask)
    out = run_window_attention(x, kp, num_heads=num_heads,
                               window_size=window_size)
    out = jax.block_until_ready(out)
    ref = jax.block_until_ready(
        reference_forward(x, params, mask, num_heads, window_size))
    assert out.shape == (B_, N, dim)
    err = float(np.max(np.abs(np.asarray(out) - np.asarray(ref))))
    assert np.allclose(np.asarray(out), np.asarray(ref),
                       atol=5e-3, rtol=5e-2), err

    # --- mask=None path ---
    kp0 = prepare_kernel_params(params, window_size, num_heads, None)
    out0 = jax.block_until_ready(
        run_window_attention(x, kp0, num_heads=num_heads,
                             window_size=window_size))
    ref0 = reference_forward(x, params, None, num_heads, window_size)
    err0 = float(np.max(np.abs(np.asarray(out0) - np.asarray(ref0))))
    assert np.allclose(np.asarray(out0), np.asarray(ref0),
                       atol=5e-3, rtol=5e-2), err0

    print("KERNEL_OK")
</pallas_src>

<mosaic_0001>
module attributes {stable_mosaic.version = 11 : i64} {
  func.func @window_attention_kernel(%arg0: i32, %arg1: memref<128x32xbf16, #tpu.memory_space<vmem>>, %arg2: memref<32x96xbf16, #tpu.memory_space<vmem>>, %arg3: memref<1x96xf32, #tpu.memory_space<vmem>>, %arg4: memref<32x128xbf16, #tpu.memory_space<vmem>>, %arg5: memref<1x128xf32, #tpu.memory_space<vmem>>, %arg6: memref<4x4x16x16xbf16, #tpu.memory_space<vmem>>, %arg7: memref<128x128xf32, #tpu.memory_space<vmem>>, %arg8: memref<128x32xbf16, #tpu.memory_space<vmem>>) attributes {dimension_semantics = [#tpu.dimension_semantics<parallel>], iteration_bounds = array<i64: 4>, scalar_prefetch = 0 : i64, scratch_operands = 1 : i64, tpu.core_type = #tpu.core_type<tc>, window_params = [{transform_indices = @transform_0, window_bounds = array<i64: 128, 32>}, {pipeline_mode = #tpu.pipeline_mode<synchronous>, transform_indices = @transform_1, window_bounds = array<i64: 32, 96>}, {pipeline_mode = #tpu.pipeline_mode<synchronous>, transform_indices = @transform_2, window_bounds = array<i64: 1, 96>}, {pipeline_mode = #tpu.pipeline_mode<synchronous>, transform_indices = @transform_3, window_bounds = array<i64: 32, 128>}, {pipeline_mode = #tpu.pipeline_mode<synchronous>, transform_indices = @transform_4, window_bounds = array<i64: 1, 128>}, {pipeline_mode = #tpu.pipeline_mode<synchronous>, transform_indices = @transform_5, window_bounds = array<i64: 4, 4, 16, 16>}, {transform_indices = @transform_6, window_bounds = array<i64: 128, 128>}]} {
    %c0 = arith.constant 0 : index
    %c0_0 = arith.constant 0 : index
    %0 = vector.load %arg1[%c0, %c0_0] : memref<128x32xbf16, #tpu.memory_space<vmem>>, vector<128x32xbf16>
    %c0_1 = arith.constant 0 : index
    %c0_2 = arith.constant 0 : index
    %1 = vector.load %arg2[%c0_1, %c0_2] : memref<32x96xbf16, #tpu.memory_space<vmem>>, vector<32x96xbf16>
    %cst = arith.constant dense<0.000000e+00> : vector<128x96xf32>
    %2 = tpu.matmul %0, %1, %cst {dimension_numbers = #tpu.dot_dimension_numbers<[1], [0], [0], [1], [0, 0, 1, 1], [], []>} : vector<128x32xbf16>, vector<32x96xbf16>, vector<128x96xf32> -> vector<128x96xf32>
    %c0_3 = arith.constant 0 : index
    %c0_4 = arith.constant 0 : index
    %3 = vector.load %arg3[%c0_3, %c0_4] : memref<1x96xf32, #tpu.memory_space<vmem>>, vector<1x96xf32>
    %4 = vector.broadcast %3 : vector<1x96xf32> to vector<128x96xf32>
    %5 = arith.addf %2, %4 : vector<128x96xf32>
    %6 = vector.extract_strided_slice %5 {offsets = [0, 0], sizes = [128, 8], strides = [1, 1]} : vector<128x96xf32> to vector<128x8xf32>
    %7 = vector.extract_strided_slice %5 {offsets = [0, 32], sizes = [128, 8], strides = [1, 1]} : vector<128x96xf32> to vector<128x8xf32>
    %8 = vector.extract_strided_slice %5 {offsets = [0, 64], sizes = [128, 8], strides = [1, 1]} : vector<128x96xf32> to vector<128x8xf32>
    %9 = vector.shape_cast %6 : vector<128x8xf32> to vector<8x16x8xf32>
    %10 = arith.truncf %9 : vector<8x16x8xf32> to vector<8x16x8xbf16>
    %11 = vector.shape_cast %7 : vector<128x8xf32> to vector<8x16x8xf32>
    %12 = arith.truncf %11 : vector<8x16x8xf32> to vector<8x16x8xbf16>
    %13 = vector.shape_cast %8 : vector<128x8xf32> to vector<8x16x8xf32>
    %14 = arith.truncf %13 : vector<8x16x8xf32> to vector<8x16x8xbf16>
    %cst_5 = arith.constant dense<0.000000e+00> : vector<8x16x16xf32>
    %15 = tpu.matmul %10, %12, %cst_5 {dimension_numbers = #tpu.dot_dimension_numbers<[2], [2], [1], [1], [0, 0, 0, 1, 1, 1], [0], [0]>} : vector<8x16x8xbf16>, vector<8x16x8xbf16>, vector<8x16x16xf32> -> vector<8x16x16xf32>
    %16 = vector.shape_cast %15 : vector<8x16x16xf32> to vector<2x4x16x16xf32>
    %c0_6 = arith.constant 0 : index
    %c0_7 = arith.constant 0 : index
    %c0_8 = arith.constant 0 : index
    %c0_9 = arith.constant 0 : index
    %17 = vector.load %arg6[%c0_6, %c0_7, %c0_8, %c0_9] : memref<4x4x16x16xbf16, #tpu.memory_space<vmem>>, vector<1x4x16x16xbf16>
    %18 = vector.shape_cast %17 : vector<1x4x16x16xbf16> to vector<4x16x16xbf16>
    %19 = arith.extf %18 : vector<4x16x16xbf16> to vector<4x16x16xf32>
    %20 = vector.shape_cast %19 : vector<4x16x16xf32> to vector<1x4x16x16xf32>
    %21 = vector.broadcast %20 : vector<1x4x16x16xf32> to vector<2x4x16x16xf32>
    %22 = arith.addf %16, %21 : vector<2x4x16x16xf32>
    %23 = vector.shape_cast %22 : vector<2x4x16x16xf32> to vector<8x16x16xf32>
    %cst_10 = arith.constant dense<0xFF800000> : vector<8x16xf32>
    %24 = vector.multi_reduction <maximumf>, %23, %cst_10 [2] : vector<8x16x16xf32> to vector<8x16xf32>
    %25 = vector.shape_cast %24 : vector<8x16xf32> to vector<8x16x1xf32>
    %26 = vector.broadcast %25 : vector<8x16x1xf32> to vector<8x16x16xf32>
    %27 = arith.subf %23, %26 : vector<8x16x16xf32>
    %28 = math.exp %27 : vector<8x16x16xf32>
    %cst_11 = arith.constant dense<0.000000e+00> : vector<8x16xf32>
    %29 = vector.multi_reduction <add>, %28, %cst_11 [2] : vector<8x16x16xf32> to vector<8x16xf32>
    %30 = vector.shape_cast %29 : vector<8x16xf32> to vector<8x16x1xf32>
    %31 = tpu.reciprocal %30 {approx = true} : vector<8x16x1xf32> -> vector<8x16x1xf32>
    %32 = vector.broadcast %31 : vector<8x16x1xf32> to vector<8x16x16xf32>
    %33 = arith.mulf %28, %32 : vector<8x16x16xf32>
    %34 = arith.truncf %33 : vector<8x16x16xf32> to vector<8x16x16xbf16>
    %cst_12 = arith.constant dense<0.000000e+00> : vector<8x16x8xf32>
    %35 = tpu.matmul %34, %14, %cst_12 {dimension_numbers = #tpu.dot_dimension_numbers<[2], [1], [1], [2], [0, 0, 0, 1, 1, 2], [0], [0]>} : vector<8x16x16xbf16>, vector<8x16x8xbf16>, vector<8x16x8xf32> -> vector<8x16x8xf32>
    %36 = vector.shape_cast %35 : vector<8x16x8xf32> to vector<128x8xf32>
    %37 = arith.truncf %36 : vector<128x8xf32> to vector<128x8xbf16>
    %c0_13 = arith.constant 0 : index
    %c0_14 = arith.constant 0 : index
    %38 = vector.load %arg8[%c0_13, %c0_14] : memref<128x32xbf16, #tpu.memory_space<vmem>>, vector<128x8xbf16>
    tpu.vector_store %arg8[%c0_13, %c0_14], %37 {strides = array<i32>} : memref<128x32xbf16, #tpu.memory_space<vmem>>, vector<128x8xbf16>,
    %39 = vector.extract_strided_slice %5 {offsets = [0, 8], sizes = [128, 8], strides = [1, 1]} : vector<128x96xf32> to vector<128x8xf32>
    %40 = vector.extract_strided_slice %5 {offsets = [0, 40], sizes = [128, 8], strides = [1, 1]} : vector<128x96xf32> to vector<128x8xf32>
    %41 = vector.extract_strided_slice %5 {offsets = [0, 72], sizes = [128, 8], strides = [1, 1]} : vector<128x96xf32> to vector<128x8xf32>
    %42 = vector.shape_cast %39 : vector<128x8xf32> to vector<8x16x8xf32>
    %43 = arith.truncf %42 : vector<8x16x8xf32> to vector<8x16x8xbf16>
    %44 = vector.shape_cast %40 : vector<128x8xf32> to vector<8x16x8xf32>
    %45 = arith.truncf %44 : vector<8x16x8xf32> to vector<8x16x8xbf16>
    %46 = vector.shape_cast %41 : vector<128x8xf32> to vector<8x16x8xf32>
    %47 = arith.truncf %46 : vector<8x16x8xf32> to vector<8x16x8xbf16>
    %cst_15 = arith.constant dense<0.000000e+00> : vector<8x16x16xf32>
    %48 = tpu.matmul %43, %45, %cst_15 {dimension_numbers = #tpu.dot_dimension_numbers<[2], [2], [1], [1], [0, 0, 0, 1, 1, 1], [0], [0]>} : vector<8x16x8xbf16>, vector<8x16x8xbf16>, vector<8x16x16xf32> -> vector<8x16x16xf32>
    %49 = vector.shape_cast %48 : vector<8x16x16xf32> to vector<2x4x16x16xf32>
    %c1 = arith.constant 1 : index
    %c0_16 = arith.constant 0 : index
    %c0_17 = arith.constant 0 : index
    %c0_18 = arith.constant 0 : index
    %50 = vector.load %arg6[%c1, %c0_16, %c0_17, %c0_18] : memref<4x4x16x16xbf16, #tpu.memory_space<vmem>>, vector<1x4x16x16xbf16>
    %51 = vector.shape_cast %50 : vector<1x4x16x16xbf16> to vector<4x16x16xbf16>
    %52 = arith.extf %51 : vector<4x16x16xbf16> to vector<4x16x16xf32>
    %53 = vector.shape_cast %52 : vector<4x16x16xf32> to vector<1x4x16x16xf32>
    %54 = vector.broadcast %53 : vector<1x4x16x16xf32> to vector<2x4x16x16xf32>
    %55 = arith.addf %49, %54 : vector<2x4x16x16xf32>
    %56 = vector.shape_cast %55 : vector<2x4x16x16xf32> to vector<8x16x16xf32>
    %cst_19 = arith.constant dense<0xFF800000> : vector<8x16xf32>
    %57 = vector.multi_reduction <maximumf>, %56, %cst_19 [2] : vector<8x16x16xf32> to vector<8x16xf32>
    %58 = vector.shape_cast %57 : vector<8x16xf32> to vector<8x16x1xf32>
    %59 = vector.broadcast %58 : vector<8x16x1xf32> to vector<8x16x16xf32>
    %60 = arith.subf %56, %59 : vector<8x16x16xf32>
    %61 = math.exp %60 : vector<8x16x16xf32>
    %cst_20 = arith.constant dense<0.000000e+00> : vector<8x16xf32>
    %62 = vector.multi_reduction <add>, %61, %cst_20 [2] : vector<8x16x16xf32> to vector<8x16xf32>
    %63 = vector.shape_cast %62 : vector<8x16xf32> to vector<8x16x1xf32>
    %64 = tpu.reciprocal %63 {approx = true} : vector<8x16x1xf32> -> vector<8x16x1xf32>
    %65 = vector.broadcast %64 : vector<8x16x1xf32> to vector<8x16x16xf32>
    %66 = arith.mulf %61, %65 : vector<8x16x16xf32>
    %67 = arith.truncf %66 : vector<8x16x16xf32> to vector<8x16x16xbf16>
    %cst_21 = arith.constant dense<0.000000e+00> : vector<8x16x8xf32>
    %68 = tpu.matmul %67, %47, %cst_21 {dimension_numbers = #tpu.dot_dimension_numbers<[2], [1], [1], [2], [0, 0, 0, 1, 1, 2], [0], [0]>} : vector<8x16x16xbf16>, vector<8x16x8xbf16>, vector<8x16x8xf32> -> vector<8x16x8xf32>
    %69 = vector.shape_cast %68 : vector<8x16x8xf32> to vector<128x8xf32>
    %70 = arith.truncf %69 : vector<128x8xf32> to vector<128x8xbf16>
    %c0_22 = arith.constant 0 : index
    %c8 = arith.constant 8 : index
    %71 = vector.load %arg8[%c0_22, %c8] : memref<128x32xbf16, #tpu.memory_space<vmem>>, vector<128x8xbf16>
    tpu.vector_store %arg8[%c0_22, %c8], %70 {strides = array<i32>} : memref<128x32xbf16, #tpu.memory_space<vmem>>, vector<128x8xbf16>,
    %72 = vector.extract_strided_slice %5 {offsets = [0, 16], sizes = [128, 8], strides = [1, 1]} : vector<128x96xf32> to vector<128x8xf32>
    %73 = vector.extract_strided_slice %5 {offsets = [0, 48], sizes = [128, 8], strides = [1, 1]} : vector<128x96xf32> to vector<128x8xf32>
    %74 = vector.extract_strided_slice %5 {offsets = [0, 80], sizes = [128, 8], strides = [1, 1]} : vector<128x96xf32> to vector<128x8xf32>
    %75 = vector.shape_cast %72 : vector<128x8xf32> to vector<8x16x8xf32>
    %76 = arith.truncf %75 : vector<8x16x8xf32> to vector<8x16x8xbf16>
    %77 = vector.shape_cast %73 : vector<128x8xf32> to vector<8x16x8xf32>
    %78 = arith.truncf %77 : vector<8x16x8xf32> to vector<8x16x8xbf16>
    %79 = vector.shape_cast %74 : vector<128x8xf32> to vector<8x16x8xf32>
    %80 = arith.truncf %79 : vector<8x16x8xf32> to vector<8x16x8xbf16>
    %cst_23 = arith.constant dense<0.000000e+00> : vector<8x16x16xf32>
    %81 = tpu.matmul %76, %78, %cst_23 {dimension_numbers = #tpu.dot_dimension_numbers<[2], [2], [1], [1], [0, 0, 0, 1, 1, 1], [0], [0]>} : vector<8x16x8xbf16>, vector<8x16x8xbf16>, vector<8x16x16xf32> -> vector<8x16x16xf32>
    %82 = vector.shape_cast %81 : vector<8x16x16xf32> to vector<2x4x16x16xf32>
    %c2 = arith.constant 2 : index
    %c0_24 = arith.constant 0 : index
    %c0_25 = arith.constant 0 : index
    %c0_26 = arith.constant 0 : index
    %83 = vector.load %arg6[%c2, %c0_24, %c0_25, %c0_26] : memref<4x4x16x16xbf16, #tpu.memory_space<vmem>>, vector<1x4x16x16xbf16>
    %84 = vector.shape_cast %83 : vector<1x4x16x16xbf16> to vector<4x16x16xbf16>
    %85 = arith.extf %84 : vector<4x16x16xbf16> to vector<4x16x16xf32>
    %86 = vector.shape_cast %85 : vector<4x16x16xf32> to vector<1x4x16x16xf32>
    %87 = vector.broadcast %86 : vector<1x4x16x16xf32> to vector<2x4x16x16xf32>
    %88 = arith.addf %82, %87 : vector<2x4x16x16xf32>
    %89 = vector.shape_cast %88 : vector<2x4x16x16xf32> to vector<8x16x16xf32>
    %cst_27 = arith.constant dense<0xFF800000> : vector<8x16xf32>
    %90 = vector.multi_reduction <maximumf>, %89, %cst_27 [2] : vector<8x16x16xf32> to vector<8x16xf32>
    %91 = vector.shape_cast %90 : vector<8x16xf32> to vector<8x16x1xf32>
    %92 = vector.broadcast %91 : vector<8x16x1xf32> to vector<8x16x16xf32>
    %93 = arith.subf %89, %92 : vector<8x16x16xf32>
    %94 = math.exp %93 : vector<8x16x16xf32>
    %cst_28 = arith.constant dense<0.000000e+00> : vector<8x16xf32>
    %95 = vector.multi_reduction <add>, %94, %cst_28 [2] : vector<8x16x16xf32> to vector<8x16xf32>
    %96 = vector.shape_cast %95 : vector<8x16xf32> to vector<8x16x1xf32>
    %97 = tpu.reciprocal %96 {approx = true} : vector<8x16x1xf32> -> vector<8x16x1xf32>
    %98 = vector.broadcast %97 : vector<8x16x1xf32> to vector<8x16x16xf32>
    %99 = arith.mulf %94, %98 : vector<8x16x16xf32>
    %100 = arith.truncf %99 : vector<8x16x16xf32> to vector<8x16x16xbf16>
    %cst_29 = arith.constant dense<0.000000e+00> : vector<8x16x8xf32>
    %101 = tpu.matmul %100, %80, %cst_29 {dimension_numbers = #tpu.dot_dimension_numbers<[2], [1], [1], [2], [0, 0, 0, 1, 1, 2], [0], [0]>} : vector<8x16x16xbf16>, vector<8x16x8xbf16>, vector<8x16x8xf32> -> vector<8x16x8xf32>
    %102 = vector.shape_cast %101 : vector<8x16x8xf32> to vector<128x8xf32>
    %103 = arith.truncf %102 : vector<128x8xf32> to vector<128x8xbf16>
    %c0_30 = arith.constant 0 : index
    %c16 = arith.constant 16 : index
    %104 = vector.load %arg8[%c0_30, %c16] : memref<128x32xbf16, #tpu.memory_space<vmem>>, vector<128x8xbf16>
    tpu.vector_store %arg8[%c0_30, %c16], %103 {strides = array<i32>} : memref<128x32xbf16, #tpu.memory_space<vmem>>, vector<128x8xbf16>,
    %105 = vector.extract_strided_slice %5 {offsets = [0, 24], sizes = [128, 8], strides = [1, 1]} : vector<128x96xf32> to vector<128x8xf32>
    %106 = vector.extract_strided_slice %5 {offsets = [0, 56], sizes = [128, 8], strides = [1, 1]} : vector<128x96xf32> to vector<128x8xf32>
    %107 = vector.extract_strided_slice %5 {offsets = [0, 88], sizes = [128, 8], strides = [1, 1]} : vector<128x96xf32> to vector<128x8xf32>
    %108 = vector.shape_cast %105 : vector<128x8xf32> to vector<8x16x8xf32>
    %109 = arith.truncf %108 : vector<8x16x8xf32> to vector<8x16x8xbf16>
    %110 = vector.shape_cast %106 : vector<128x8xf32> to vector<8x16x8xf32>
    %111 = arith.truncf %110 : vector<8x16x8xf32> to vector<8x16x8xbf16>
    %112 = vector.shape_cast %107 : vector<128x8xf32> to vector<8x16x8xf32>
    %113 = arith.truncf %112 : vector<8x16x8xf32> to vector<8x16x8xbf16>
    %cst_31 = arith.constant dense<0.000000e+00> : vector<8x16x16xf32>
    %114 = tpu.matmul %109, %111, %cst_31 {dimension_numbers = #tpu.dot_dimension_numbers<[2], [2], [1], [1], [0, 0, 0, 1, 1, 1], [0], [0]>} : vector<8x16x8xbf16>, vector<8x16x8xbf16>, vector<8x16x16xf32> -> vector<8x16x16xf32>
    %115 = vector.shape_cast %114 : vector<8x16x16xf32> to vector<2x4x16x16xf32>
    %c3 = arith.constant 3 : index
    %c0_32 = arith.constant 0 : index
    %c0_33 = arith.constant 0 : index
    %c0_34 = arith.constant 0 : index
    %116 = vector.load %arg6[%c3, %c0_32, %c0_33, %c0_34] : memref<4x4x16x16xbf16, #tpu.memory_space<vmem>>, vector<1x4x16x16xbf16>
    %117 = vector.shape_cast %116 : vector<1x4x16x16xbf16> to vector<4x16x16xbf16>
    %118 = arith.extf %117 : vector<4x16x16xbf16> to vector<4x16x16xf32>
    %119 = vector.shape_cast %118 : vector<4x16x16xf32> to vector<1x4x16x16xf32>
    %120 = vector.broadcast %119 : vector<1x4x16x16xf32> to vector<2x4x16x16xf32>
    %121 = arith.addf %115, %120 : vector<2x4x16x16xf32>
    %122 = vector.shape_cast %121 : vector<2x4x16x16xf32> to vector<8x16x16xf32>
    %cst_35 = arith.constant dense<0xFF800000> : vector<8x16xf32>
    %123 = vector.multi_reduction <maximumf>, %122, %cst_35 [2] : vector<8x16x16xf32> to vector<8x16xf32>
    %124 = vector.shape_cast %123 : vector<8x16xf32> to vector<8x16x1xf32>
    %125 = vector.broadcast %124 : vector<8x16x1xf32> to vector<8x16x16xf32>
    %126 = arith.subf %122, %125 : vector<8x16x16xf32>
    %127 = math.exp %126 : vector<8x16x16xf32>
    %cst_36 = arith.constant dense<0.000000e+00> : vector<8x16xf32>
    %128 = vector.multi_reduction <add>, %127, %cst_36 [2] : vector<8x16x16xf32> to vector<8x16xf32>
    %129 = vector.shape_cast %128 : vector<8x16xf32> to vector<8x16x1xf32>
    %130 = tpu.reciprocal %129 {approx = true} : vector<8x16x1xf32> -> vector<8x16x1xf32>
    %131 = vector.broadcast %130 : vector<8x16x1xf32> to vector<8x16x16xf32>
    %132 = arith.mulf %127, %131 : vector<8x16x16xf32>
    %133 = arith.truncf %132 : vector<8x16x16xf32> to vector<8x16x16xbf16>
    %cst_37 = arith.constant dense<0.000000e+00> : vector<8x16x8xf32>
    %134 = tpu.matmul %133, %113, %cst_37 {dimension_numbers = #tpu.dot_dimension_numbers<[2], [1], [1], [2], [0, 0, 0, 1, 1, 2], [0], [0]>} : vector<8x16x16xbf16>, vector<8x16x8xbf16>, vector<8x16x8xf32> -> vector<8x16x8xf32>
    %135 = vector.shape_cast %134 : vector<8x16x8xf32> to vector<128x8xf32>
    %136 = arith.truncf %135 : vector<128x8xf32> to vector<128x8xbf16>
    %c0_38 = arith.constant 0 : index
    %c24 = arith.constant 24 : index
    %137 = vector.load %arg8[%c0_38, %c24] : memref<128x32xbf16, #tpu.memory_space<vmem>>, vector<128x8xbf16>
    tpu.vector_store %arg8[%c0_38, %c24], %136 {strides = array<i32>} : memref<128x32xbf16, #tpu.memory_space<vmem>>, vector<128x8xbf16>,
    %c0_39 = arith.constant 0 : index
    %c0_40 = arith.constant 0 : index
    %138 = vector.load %arg8[%c0_39, %c0_40] : memref<128x32xbf16, #tpu.memory_space<vmem>>, vector<128x32xbf16>
    %c0_41 = arith.constant 0 : index
    %c0_42 = arith.constant 0 : index
    %139 = vector.load %arg4[%c0_41, %c0_42] : memref<32x128xbf16, #tpu.memory_space<vmem>>, vector<32x128xbf16>
    %cst_43 = arith.constant dense<0.000000e+00> : vector<128x128xf32>
    %140 = tpu.matmul %138, %139, %cst_43 {dimension_numbers = #tpu.dot_dimension_numbers<[1], [0], [0], [1], [0, 0, 1, 1], [], []>} : vector<128x32xbf16>, vector<32x128xbf16>, vector<128x128xf32> -> vector<128x128xf32>
    %c0_44 = arith.constant 0 : index
    %c0_45 = arith.constant 0 : index
    %141 = vector.load %arg5[%c0_44, %c0_45] : memref<1x128xf32, #tpu.memory_space<vmem>>, vector<1x128xf32>
    %142 = vector.broadcast %141 : vector<1x128xf32> to vector<128x128xf32>
    %143 = arith.addf %140, %142 : vector<128x128xf32>
    %c0_46 = arith.constant 0 : index
    %c0_47 = arith.constant 0 : index
    %144 = vector.load %arg7[%c0_46, %c0_47] : memref<128x128xf32, #tpu.memory_space<vmem>>, vector<128x128xf32>
    tpu.vector_store %arg7[%c0_46, %c0_47], %143 {strides = array<i32>} : memref<128x128xf32, #tpu.memory_space<vmem>>, vector<128x128xf32>,
    return
  }
  func.func @transform_0(%arg0: i32) -> (i32, i32) {
    %c0_i32 = arith.constant 0 : i32
    %c0_i32_0 = arith.constant 0 : i32
    return %arg0, %c0_i32 : i32, i32
  }
  func.func @transform_1(%arg0: i32) -> (i32, i32) {
    %c0_i32 = arith.constant 0 : i32
    %c0_i32_0 = arith.constant 0 : i32
    %c0_i32_1 = arith.constant 0 : i32
    return %c0_i32, %c0_i32_0 : i32, i32
  }
  func.func @transform_2(%arg0: i32) -> (i32, i32) {
    %c0_i32 = arith.constant 0 : i32
    %c0_i32_0 = arith.constant 0 : i32
    %c0_i32_1 = arith.constant 0 : i32
    return %c0_i32, %c0_i32_0 : i32, i32
  }
  func.func @transform_3(%arg0: i32) -> (i32, i32) {
    %c0_i32 = arith.constant 0 : i32
    %c0_i32_0 = arith.constant 0 : i32
    %c0_i32_1 = arith.constant 0 : i32
    return %c0_i32, %c0_i32_0 : i32, i32
  }
  func.func @transform_4(%arg0: i32) -> (i32, i32) {
    %c0_i32 = arith.constant 0 : i32
    %c0_i32_0 = arith.constant 0 : i32
    %c0_i32_1 = arith.constant 0 : i32
    return %c0_i32, %c0_i32_0 : i32, i32
  }
  func.func @transform_5(%arg0: i32) -> (i32, i32, i32, i32) {
    %c0_i32 = arith.constant 0 : i32
    %c0_i32_0 = arith.constant 0 : i32
    %c0_i32_1 = arith.constant 0 : i32
    %c0_i32_2 = arith.constant 0 : i32
    %c0_i32_3 = arith.constant 0 : i32
    return %c0_i32, %c0_i32_0, %c0_i32_1, %c0_i32_2 : i32, i32, i32, i32
  }
  func.func @transform_6(%arg0: i32) -> (i32, i32) {
    %c0_i32 = arith.constant 0 : i32
    %c0_i32_0 = arith.constant 0 : i32
    return %arg0, %c0_i32 : i32, i32
  }
}

</mosaic_0001>

<llo_original>
// kernel: tpu_custom_call.1
$region0: #{tpu_custom_call.1}
  #allocation0 [shape = 'u32[]', space=smem, size = 0x4, offset = 0x4, fixed_abs, tag = 'smem constant byte address 0x4 - core index']
  #allocation1 [shape = 'u32[144,128]{1,0:T(1,128)}', space=vmem, size = 0x12000, scoped, tag = 'internal scratch']
  #allocation2 [shape = 'bf16[128,32]{1,0:T(8,128)(2,1)}', space=vmem, size = 0x8000, scoped, tag = 'scratch operand']
  %s0 = inlined_call_operand.vmem [shape: bf16[512,32], index: 0, kind: input, shape index: {}]
  %s1 = inlined_call_operand.vmem [shape: bf16[32,96], index: 1, kind: input, shape index: {}]
  %s2 = inlined_call_operand.vmem [shape: f32[1,96], index: 2, kind: input, shape index: {}]
  %s3 = inlined_call_operand.vmem [shape: bf16[32,128], index: 3, kind: input, shape index: {}]
  %s4 = inlined_call_operand.vmem [shape: f32[1,128], index: 4, kind: input, shape index: {}]
  %s5 = inlined_call_operand.vmem [shape: bf16[4,4,16,16], index: 5, kind: input, shape index: {}]
  %s6 = inlined_call_operand.hbm [shape: f32[512,128], index: 6, kind: output, shape index: {}]
  %s7 = sld [smem:[#allocation0]]
  $region57: #{tpu_custom_call.1} parent=0
    _
  %s9 = ssub.s32 1, %s7
  %s10 = scalar_select 0, %s9, %s7
  $region1: #{tpu_custom_call.1} parent=0
    #allocation3 [shape = 'u8[131072]{0}', space=vmem, size = 0x20000, scoped, tag = 'output window, operand 0']
    #allocation4 [shape = 's32[2]{0}', space=sflag, size = 0x8, scoped, tag = 'scoped memory for tpu_custom_call.1']
    %11 = vsyncpa [#allocation4], 0
    %s12 = scalar_lea.sflag [#allocation4], 1
    %13 = vsyncpa %s12, 0
    loop: start=0, step=1, limit=6
    $region2: #{tpu_custom_call.1} parent=1 // loop_pre_header
      _
    $region3: #{tpu_custom_call.1} parent=1 // loop_header
      %s15 = sphi 0, %s19
      %p16 = scmp.ge.s32.totalorder %s15, 6
      %s25 = sphi 0, %s27
      %s28 = sphi 0, %s25
      %s29 = sphi 0, %s28
      %s45 = sphi 0, %s29
      %s49 = sphi 0, %s49
      %s51 = sphi 0, %s49
      %s52 = sphi 0, %s51
      %s66 = sphi 0, %s52
      %s70 = sphi 0, %s70
      %s72 = sphi 0, %s70
      %s73 = sphi 0, %s72
      %s87 = sphi 0, %s73
      %s91 = sphi 0, %s91
      %s93 = sphi 0, %s91
      %s94 = sphi 0, %s93
      %s108 = sphi 0, %s94
      %s112 = sphi 0, %s112
      %s114 = sphi 0, %s112
      %s115 = sphi 0, %s114
      %s129 = sphi 0, %s115
      %s133 = sphi 0, %s133
      %s135 = sphi 0, %s133
      %s136 = sphi 0, %s135
      %s150 = sphi 0, %s136
      %s156 = sphi 0, %s158
      %s159 = sphi 0, %s156
      %s160 = sphi 0, %s159
      %s176 = sphi 0, %s160
    $region4: #{tpu_custom_call.1} parent=1 // loop_header_branch
      %18 = sbr.rel (%p16) target = $region8
    $region5: #{tpu_custom_call.1} parent=1 // loop_body
      %s20 = ssub.s32 %s15, 1
      %s21 = ssub.s32 %s15, 2
      %s22 = sadd.s32 %s15, 1
      %s23 = ssub.s32 %s15, %s22
      %p24 = scmp.eq.s32.totalorder %s23, 0
      %s26 = sadd.s32 %s25, 1
      %s27 = scalar_select %p24, %s25, %s26
      %p30 = pneg %p24
      %p31 = scmp.eq.s32.totalorder %s15, 3
      %p32 = por %p30, %p31
      %p33 = scmp.ne.s32.totalorder %s25, %s28
      %p34 = scmp.eq.s32.totalorder %s15, 0
      %p35 = por %p33, %p34
      %p36 = scmp.ne.s32.totalorder %s25, %s28
      %p37 = scmp.eq.s32.totalorder %s20, 3
      %p38 = por %p36, %p37
      %p39 = scmp.ne.s32.totalorder %s28, %s29
      %p40 = scmp.eq.s32.totalorder %s20, 0
      %p41 = por %p39, %p40
      %p42 = scmp.ne.s32.totalorder %s28, %s29
      %p43 = scmp.eq.s32.totalorder %s21, 3
      %p44 = por %p42, %p43
      %p46 = scmp.ne.s32.totalorder %s29, %s45
      %p47 = scmp.eq.s32.totalorder %s21, 0
      %p48 = por %p46, %p47
      %s50 = sadd.s32 %s49, 1
      %p53 = scmp.eq.s32.totalorder %s15, 3
      %p54 = scmp.ne.s32.totalorder %s49, %s51
      %p55 = scmp.eq.s32.totalorder %s15, 0
      %p56 = por %p54, %p55
      %p57 = scmp.ne.s32.totalorder %s49, %s51
      %p58 = scmp.eq.s32.totalorder %s20, 3
      %p59 = por %p57, %p58
      %p60 = scmp.ne.s32.totalorder %s51, %s52
      %p61 = scmp.eq.s32.totalorder %s20, 0
      %p62 = por %p60, %p61
      %p63 = scmp.ne.s32.totalorder %s51, %s52
      %p64 = scmp.eq.s32.totalorder %s21, 3
      %p65 = por %p63, %p64
      %p67 = scmp.ne.s32.totalorder %s52, %s66
      %p68 = scmp.eq.s32.totalorder %s21, 0
      %p69 = por %p67, %p68
      %s71 = sadd.s32 %s70, 1
      %p74 = scmp.eq.s32.totalorder %s15, 3
      %p75 = scmp.ne.s32.totalorder %s70, %s72
      %p76 = scmp.eq.s32.totalorder %s15, 0
      %p77 = por %p75, %p76
      %p78 = scmp.ne.s32.totalorder %s70, %s72
      %p79 = scmp.eq.s32.totalorder %s20, 3
      %p80 = por %p78, %p79
      %p81 = scmp.ne.s32.totalorder %s72, %s73
      %p82 = scmp.eq.s32.totalorder %s20, 0
      %p83 = por %p81, %p82
      %p84 = scmp.ne.s32.totalorder %s72, %s73
      %p85 = scmp.eq.s32.totalorder %s21, 3
      %p86 = por %p84, %p85
      %p88 = scmp.ne.s32.totalorder %s73, %s87
      %p89 = scmp.eq.s32.totalorder %s21, 0
      %p90 = por %p88, %p89
      %s92 = sadd.s32 %s91, 1
      %p95 = scmp.eq.s32.totalorder %s15, 3
      %p96 = scmp.ne.s32.totalorder %s91, %s93
      %p97 = scmp.eq.s32.totalorder %s15, 0
      %p98 = por %p96, %p97
      %p99 = scmp.ne.s32.totalorder %s91, %s93
      %p100 = scmp.eq.s32.totalorder %s20, 3
      %p101 = por %p99, %p100
      %p102 = scmp.ne.s32.totalorder %s93, %s94
      %p103 = scmp.eq.s32.totalorder %s20, 0
      %p104 = por %p102, %p103
      %p105 = scmp.ne.s32.totalorder %s93, %s94
      %p106 = scmp.eq.s32.totalorder %s21, 3
      %p107 = por %p105, %p106
      %p109 = scmp.ne.s32.totalorder %s94, %s108
      %p110 = scmp.eq.s32.totalorder %s21, 0
      %p111 = por %p109, %p110
      %s113 = sadd.s32 %s112, 1
      %p116 = scmp.eq.s32.totalorder %s15, 3
      %p117 = scmp.ne.s32.totalorder %s112, %s114
      %p118 = scmp.eq.s32.totalorder %s15, 0
      %p119 = por %p117, %p118
      %p120 = scmp.ne.s32.totalorder %s112, %s114
      %p121 = scmp.eq.s32.totalorder %s20, 3
      %p122 = por %p120, %p121
      %p123 = scmp.ne.s32.totalorder %s114, %s115
      %p124 = scmp.eq.s32.totalorder %s20, 0
      %p125 = por %p123, %p124
      %p126 = scmp.ne.s32.totalorder %s114, %s115
      %p127 = scmp.eq.s32.totalorder %s21, 3
      %p128 = por %p126, %p127
      %p130 = scmp.ne.s32.totalorder %s115, %s129
      %p131 = scmp.eq.s32.totalorder %s21, 0
      %p132 = por %p130, %p131
      %s134 = sadd.s32 %s133, 1
      %p137 = scmp.eq.s32.totalorder %s15, 3
      %p138 = scmp.ne.s32.totalorder %s133, %s135
      %p139 = scmp.eq.s32.totalorder %s15, 0
      %p140 = por %p138, %p139
      %p141 = scmp.ne.s32.totalorder %s133, %s135
      %p142 = scmp.eq.s32.totalorder %s20, 3
      %p143 = por %p141, %p142
      %p144 = scmp.ne.s32.totalorder %s135, %s136
      %p145 = scmp.eq.s32.totalorder %s20, 0
      %p146 = por %p144, %p145
      %p147 = scmp.ne.s32.totalorder %s135, %s136
      %p148 = scmp.eq.s32.totalorder %s21, 3
      %p149 = por %p147, %p148
      %p151 = scmp.ne.s32.totalorder %s136, %s150
      %p152 = scmp.eq.s32.totalorder %s21, 0
      %p153 = por %p151, %p152
      %s154 = ssub.s32 %s15, %s22
      %p155 = scmp.eq.s32.totalorder %s154, 0
      %s157 = sadd.s32 %s156, 1
      %s158 = scalar_select %p155, %s156, %s157
      %p161 = pneg %p155
      %p162 = scmp.eq.s32.totalorder %s15, 3
      %p163 = por %p161, %p162
      %p164 = scmp.ne.s32.totalorder %s156, %s159
      %p165 = scmp.eq.s32.totalorder %s15, 0
      %p166 = por %p164, %p165
      %p167 = scmp.ne.s32.totalorder %s156, %s159
      %p168 = scmp.eq.s32.totalorder %s20, 3
      %p169 = por %p167, %p168
      %p170 = scmp.ne.s32.totalorder %s159, %s160
      %p171 = scmp.eq.s32.totalorder %s20, 0
      %p172 = por %p170, %p171
      %p173 = scmp.ne.s32.totalorder %s159, %s160
      %p174 = scmp.eq.s32.totalorder %s21, 3
      %p175 = por %p173, %p174
      %p177 = scmp.ne.s32.totalorder %s160, %s176
      %p178 = scmp.eq.s32.totalorder %s21, 0
      %p179 = por %p177, %p178
      %p180 = scmp.le.s32.totalorder 1, %s15
      %p181 = scmp.lt.s32.totalorder %s15, 5
      %p182 = pnand %p180, %p181
      %p183 = pneg %p182
      // Predicated region
      $region9: #{tpu_custom_call.1} parent=5 // pred_check
        _
      $region10: #{tpu_custom_call.1} parent=5 // pred_check_branch
        %185 = sbr.rel (%p182) target = $region12
      $region11: #{tpu_custom_call.1} parent=5 // pred_region
        %s186 = ssub.s32 %s15, 1
        // Predicated region
        $region13: #{tpu_custom_call.1} parent=11 // pred_check
          %p187 = pneg %p62
        $region14: #{tpu_custom_call.1} parent=11 // pred_check_branch
          %189 = sbr.rel (%p187) target = $region16
        $region15: #{tpu_custom_call.1} parent=11 // pred_region
          _
        $region16: #{tpu_custom_call.1} parent=11 // pred_fallthru
          _
        // Predicated region
        $region17: #{tpu_custom_call.1} parent=11 // pred_check
          %p190 = pneg %p83
        $region18: #{tpu_custom_call.1} parent=11 // pred_check_branch
          %192 = sbr.rel (%p190) target = $region20
        $region19: #{tpu_custom_call.1} parent=11 // pred_region
          _
        $region20: #{tpu_custom_call.1} parent=11 // pred_fallthru
          _
        // Predicated region
        $region21: #{tpu_custom_call.1} parent=11 // pred_check
          %p193 = pneg %p104
        $region22: #{tpu_custom_call.1} parent=11 // pred_check_branch
          %195 = sbr.rel (%p193) target = $region24
        $region23: #{tpu_custom_call.1} parent=11 // pred_region
          _
        $region24: #{tpu_custom_call.1} parent=11 // pred_fallthru
          _
        // Predicated region
        $region25: #{tpu_custom_call.1} parent=11 // pred_check
          %p196 = pneg %p125
        $region26: #{tpu_custom_call.1} parent=11 // pred_check_branch
          %198 = sbr.rel (%p196) target = $region28
        $region27: #{tpu_custom_call.1} parent=11 // pred_region
          _
        $region28: #{tpu_custom_call.1} parent=11 // pred_fallthru
          _
        // Predicated region
        $region29: #{tpu_custom_call.1} parent=11 // pred_check
          %p199 = pneg %p146
        $region30: #{tpu_custom_call.1} parent=11 // pred_check_branch
          %201 = sbr.rel (%p199) target = $region32
        $region31: #{tpu_custom_call.1} parent=11 // pred_region
          _
        $region32: #{tpu_custom_call.1} parent=11 // pred_fallthru
          _
      $region12: #{tpu_custom_call.1} parent=5 // pred_fallthru
        _
      %p202 = scmp.lt.s32.totalorder %s15, 4
      // Predicated region
      $region33: #{tpu_custom_call.1} parent=5 // pred_check
        %p203 = pneg %p202
      $region34: #{tpu_custom_call.1} parent=5 // pred_check_branch
        %205 = sbr.rel (%p203) target = $region36
      $region35: #{tpu_custom_call.1} parent=5 // pred_region
        // Predicated region
        $region37: #{tpu_custom_call.1} parent=35 // pred_check
          %p206 = pneg %p35
        $region38: #{tpu_custom_call.1} parent=35 // pred_check_branch
          %208 = sbr.rel (%p206) target = $region40
        $region39: #{tpu_custom_call.1} parent=35 // pred_region
          %s209 = smul.u32 16, %s15
          %p210 = scmp.lt.s32.totalorder %s209, 63
          %s211 = scalar_select %p210, %s209, 63
          %s212 = smul.addr %s211, 4
          %s213 = scalar_lea.vmem %s0, %s212
          %s214 = smul.u32 16, %s15
        $region40: #{tpu_custom_call.1} parent=35 // pred_fallthru
          _
      $region36: #{tpu_custom_call.1} parent=5 // pred_fallthru
        _
      %p215 = scmp.le.s32.totalorder 1, %s15
      %p216 = scmp.lt.s32.totalorder %s15, 5
      %p217 = pnand %p215, %p216
      %p218 = pneg %p217
      // Predicated region
      $region41: #{tpu_custom_call.1} parent=5 // pred_check
        _
      $region42: #{tpu_custom_call.1} parent=5 // pred_check_branch
        %220 = sbr.rel (%p217) target = $region44
      $region43: #{tpu_custom_call.1} parent=5 // pred_region
        %s221 = ssub.s32 %s15, 1
        %s222 = smul.u32 16, %s20
        %p223 = scmp.lt.s32.totalorder %s222, 63
        %s224 = scalar_select %p223, %s222, 63
        %s225 = smul.addr %s224, 4
        %s226 = scalar_lea.vmem %s0, %s225
        %p227 = pneg %p41
        %p228 = pneg %p38
        %p229 = pneg %p62
        %p230 = pneg %p59
        %p231 = pneg %p83
        %p232 = pneg %p80
        %p233 = pneg %p104
        %p234 = pneg %p101
        %p235 = pneg %p125
        %p236 = pneg %p122
        %p237 = pneg %p146
        %p238 = pneg %p143
        %p239 = pneg %p172
        %p240 = pneg %p169
        %s241 = sand.u32 %s159, 1
        %s242 = scalar_lea.sflag [#allocation4], %s241
        %s243 = sand.u32 %s159, 1
        %s244 = smul.addr %s243, 128
        %s245 = scalar_lea.vmem [#allocation3], %s244
        %s246 = smul.u32 16, %s20
        %p247 = scmp.lt.s32.totalorder %s246, 63
        %s248 = scalar_select %p247, %s246, 63
        %s249 = smul.addr %s248, 4
        %s250 = scalar_lea.vmem %s0, %s249
        %s251 = smul.u32 16, %s20
        %s252 = smul.u32 16, %s20
        %v254 = vld [vmem:[%s250] sm:$0xf]
        %v255 = vld [vmem:[%s250 + $0x4] sm:$0xf]
        %v256 = vld [vmem:[%s250 + $0x8] sm:$0xf]
        %v257 = vld [vmem:[%s250 + $0xc] sm:$0xf]
        %v258 = vld [vmem:[%s250 + $0x10] sm:$0xf]
        %v259 = vld [vmem:[%s250 + $0x14] sm:$0xf]
        %v260 = vld [vmem:[%s250 + $0x18] sm:$0xf]
        %v261 = vld [vmem:[%s250 + $0x1c] sm:$0xf]
        %v262 = vld [vmem:[%s250 + $0x20] sm:$0xf]
        %v263 = vld [vmem:[%s250 + $0x24] sm:$0xf]
        %v264 = vld [vmem:[%s250 + $0x28] sm:$0xf]
        %v265 = vld [vmem:[%s250 + $0x2c] sm:$0xf]
        %v266 = vld [vmem:[%s250 + $0x30] sm:$0xf]
        %v267 = vld [vmem:[%s250 + $0x34] sm:$0xf]
        %v268 = vld [vmem:[%s250 + $0x38] sm:$0xf]
        %v269 = vld [vmem:[%s250 + $0x3c] sm:$0xf]
        %v270 = vld [vmem:[%s1] sm:$0xf]
        %v271 = vld [vmem:[%s1 + $0x4] sm:$0xf]
        %v272 = vld [vmem:[%s1 + $0x8] sm:$0xf]
        %v273 = vld [vmem:[%s1 + $0xc] sm:$0xf]
        %v274 = vld [vmem:[%s2] sm:$0x1]
        %v276 = vlaneseq
        %v277 = vshrl.u32 %v276, 7
        %v278 = vsub.s32 0, %v277
        %v279 = vrot.slane %v274, %v278
        %v297 = vunpack.c.l.b16 %v254
        %v298 = vunpack.c.l.b16 %v255
        %v299 = vunpack.c.l.b16 %v256
        %v300 = vunpack.c.l.b16 %v257
        %v301 = vunpack.c.l.b16 %v258
        %v302 = vunpack.c.l.b16 %v259
        %v303 = vunpack.c.l.b16 %v260
        %v304 = vunpack.c.l.b16 %v261
        %v305 = vunpack.c.l.b16 %v262
        %v306 = vunpack.c.l.b16 %v263
        %v307 = vunpack.c.l.b16 %v264
        %v308 = vunpack.c.l.b16 %v265
        %v309 = vunpack.c.l.b16 %v266
        %v310 = vunpack.c.l.b16 %v267
        %v311 = vunpack.c.l.b16 %v268
        %v312 = vunpack.c.l.b16 %v269
        %v313 = vpack.c.b16 %v298, %v297
        %v314 = vpack.c.b16 %v300, %v299
        %v315 = vpack.c.b16 %v302, %v301
        %v316 = vpack.c.b16 %v304, %v303
        %v317 = vpack.c.b16 %v306, %v305
        %v318 = vpack.c.b16 %v308, %v307
        %v319 = vpack.c.b16 %v310, %v309
        %v320 = vpack.c.b16 %v312, %v311
        %v325 = vunpack.c.l.b16 %v270
        %v326 = vunpack.c.l.b16 %v271
        %v327 = vunpack.c.l.b16 %v272
        %v328 = vunpack.c.l.b16 %v273
        %v329 = vpack.c.b16 %v326, %v325
        %v330 = vpack.c.b16 %v328, %v327
        %vm333 = vcmask 261120
        %v335 = vsel %vm333, %v313, 0
        %v338 = vsel %vm333, %v314, 0
        %v341 = vsel %vm333, %v315, 0
        %v344 = vsel %vm333, %v316, 0
        %v347 = vsel %vm333, %v317, 0
        %v350 = vsel %vm333, %v318, 0
        %v353 = vsel %vm333, %v319, 0
        %v356 = vsel %vm333, %v320, 0
        %358 = vmatprep.subr.bf16.mxu0 0
        %359 = vmatpush1.bf16.msra.mxu0 0
        %360 = vmatprep.subr.bf16.mxu0 0
        %361 = vmatpush1.bf16.msra.mxu0 0
        %362 = vmatprep.subr.bf16.mxu0 0
        %363 = vmatpush1.bf16.msra.mxu0 0
        %364 = vmatprep.subr.bf16.mxu0 0
        %365 = vmatpush1.bf16.msra.mxu0 0
        %366 = vmatprep.subr.bf16.mxu0 0
        %367 = vmatpush1.bf16.msra.mxu0 0
        %368 = vmatprep.subr.bf16.mxu0 0
        %369 = vmatpush1.bf16.msra.mxu0 0
        %370 = vmatprep.subr.bf16.mxu0 0
        %371 = vmatpush1.bf16.msra.mxu0 %v330
        %372 = vmatprep.subr.bf16.mxu0 0
        %373 = vmatpush1.bf16.msra.mxu0 %v329
        %374 = vmatprep.subr.bf16.mxu0 0
        %375 = vmatpush2.bf16.msra.mxu0 0
        %376 = vmatprep.subr.bf16.mxu0 0
        %377 = vmatpush2.bf16.msra.mxu0 0
        %378 = vmatprep.subr.bf16.mxu0 0
        %379 = vmatpush2.bf16.msra.mxu0 0
        %380 = vmatprep.subr.bf16.mxu0 0
        %381 = vmatpush2.bf16.msra.mxu0 0
        %382 = vmatprep.subr.bf16.mxu0 0
        %383 = vmatpush2.bf16.msra.mxu0 0
        %384 = vmatprep.subr.bf16.mxu0 0
        %385 = vmatpush2.bf16.msra.mxu0 0
        %386 = vmatprep.subr.bf16.mxu0 0
        %387 = vmatpush2.bf16.msra.mxu0 0
        %388 = vmatprep.subr.bf16.mxu0 0
        %389 = vmatpush2.bf16.msra.mxu0 0
        %390 = vmatprep.mubr.bf16.mxu0 0
        %391 = vmatmul.mubr.bf16.gmra.mxu0 %v335
        %v392 = vpop.f32.mrf.mxu0
        %v393 = vadd.f32 %v279, %v392
        %v394 = vpop.f32.mrf.mxu0
        %v395 = vpop.f32.mrf.mxu0
        %v396 = vadd.f32 %v279, %v395
        %v397 = vpop.f32.mrf.mxu0
        %398 = vmatprep.mubr.bf16.mxu0 0
        %399 = vmatmul.mubr.bf16.gmra.mxu0 %v338
        %v400 = vpop.f32.mrf.mxu0
        %v401 = vadd.f32 %v279, %v400
        %v402 = vpop.f32.mrf.mxu0
        %v403 = vpop.f32.mrf.mxu0
        %v404 = vadd.f32 %v279, %v403
        %v405 = vpop.f32.mrf.mxu0
        %406 = vmatprep.mubr.bf16.mxu0 0
        %407 = vmatmul.mubr.bf16.gmra.mxu0 %v341
        %v408 = vpop.f32.mrf.mxu0
        %v409 = vadd.f32 %v279, %v408
        %v410 = vpop.f32.mrf.mxu0
        %v411 = vpop.f32.mrf.mxu0
        %v412 = vadd.f32 %v279, %v411
        %v413 = vpop.f32.mrf.mxu0
        %414 = vmatprep.mubr.bf16.mxu0 0
        %415 = vmatmul.mubr.bf16.gmra.mxu0 %v344
        %v416 = vpop.f32.mrf.mxu0
        %v417 = vadd.f32 %v279, %v416
        %v418 = vpop.f32.mrf.mxu0
        %v419 = vpop.f32.mrf.mxu0
        %v420 = vadd.f32 %v279, %v419
        %v421 = vpop.f32.mrf.mxu0
        %422 = vmatprep.mubr.bf16.mxu0 0
        %423 = vmatmul.mubr.bf16.gmra.mxu0 %v347
        %v424 = vpop.f32.mrf.mxu0
        %v425 = vadd.f32 %v279, %v424
        %v426 = vpop.f32.mrf.mxu0
        %v427 = vpop.f32.mrf.mxu0
        %v428 = vadd.f32 %v279, %v427
        %v429 = vpop.f32.mrf.mxu0
        %430 = vmatprep.mubr.bf16.mxu0 0
        %431 = vmatmul.mubr.bf16.gmra.mxu0 %v350
        %v432 = vpop.f32.mrf.mxu0
        %v433 = vadd.f32 %v279, %v432
        %v434 = vpop.f32.mrf.mxu0
        %v435 = vpop.f32.mrf.mxu0
        %v436 = vadd.f32 %v279, %v435
        %v437 = vpop.f32.mrf.mxu0
        %438 = vmatprep.mubr.bf16.mxu0 0
        %439 = vmatmul.mubr.bf16.gmra.mxu0 %v353
        %v440 = vpop.f32.mrf.mxu0
        %v441 = vadd.f32 %v279, %v440
        %v442 = vpop.f32.mrf.mxu0
        %v443 = vpop.f32.mrf.mxu0
        %v444 = vadd.f32 %v279, %v443
        %v445 = vpop.f32.mrf.mxu0
        %446 = vmatprep.mubr.bf16.mxu0 0
        %447 = vmatmul.mubr.bf16.gmra.mxu0 %v356
        %v448 = vpop.f32.mrf.mxu0
        %v449 = vadd.f32 %v279, %v448
        %v450 = vpop.f32.mrf.mxu0
        %v451 = vpop.f32.mrf.mxu0
        %v452 = vadd.f32 %v279, %v451
        %v453 = vpop.f32.mrf.mxu0
        %454 = vdwg.mxu0
        %v455 = vpack.c.bf16 %v396, %v393
        %v456 = vpack.c.bf16 %v404, %v401
        %v457 = vpack.c.bf16 %v412, %v409
        %v458 = vpack.c.bf16 %v420, %v417
        %v459 = vpack.c.bf16 %v428, %v425
        %v460 = vpack.c.bf16 %v436, %v433
        %v461 = vpack.c.bf16 %v444, %v441
        %v462 = vpack.c.bf16 %v452, %v449
        %464 = vrot.lane.b32.xlu0 %v455, 96
        %v465 = vpop.permute.xlu0 %464
        %vm466 = vcmask 64512
        %v468 = vsel %vm466, %v455, 0
        %v471 = vsel %vm466, %v465, 0
        %473 = vmatprep.subr.bf16.mxu0 0
        %474 = vmatpush1.bf16.xpose.msra.mxu0 0
        %475 = vmatprep.subr.bf16.mxu0 0
        %476 = vmatpush1.bf16.xpose.msra.mxu0 0
        %477 = vmatprep.subr.bf16.mxu0 0
        %478 = vmatpush1.bf16.xpose.msra.mxu0 0
        %479 = vmatprep.subr.bf16.mxu0 0
        %480 = vmatpush1.bf16.xpose.msra.mxu0 0
        %481 = vmatprep.subr.bf16.mxu0 0
        %482 = vmatpush1.bf16.xpose.msra.mxu0 0
        %483 = vmatprep.subr.bf16.mxu0 0
        %484 = vmatpush1.bf16.xpose.msra.mxu0 0
        %485 = vmatprep.subr.bf16.mxu0 0
        %486 = vmatpush1.bf16.xpose.msra.mxu0 0
        %487 = vmatprep.subr.bf16.mxu0 0
        %488 = vmatpush1.bf16.xpose.msra.mxu0 %v471
        %489 = vmatprep.subr.bf16.mxu0 0
        %490 = vmatpush2.bf16.xpose.msra.mxu0 0
        %491 = vmatprep.subr.bf16.mxu0 0
        %492 = vmatpush2.bf16.xpose.msra.mxu0 0
        %493 = vmatprep.subr.bf16.mxu0 0
        %494 = vmatpush2.bf16.xpose.msra.mxu0 0
        %495 = vmatprep.subr.bf16.mxu0 0
        %496 = vmatpush2.bf16.xpose.msra.mxu0 0
        %497 = vmatprep.subr.bf16.mxu0 0
        %498 = vmatpush2.bf16.xpose.msra.mxu0 0
        %499 = vmatprep.subr.bf16.mxu0 0
        %500 = vmatpush2.bf16.xpose.msra.mxu0 0
        %501 = vmatprep.subr.bf16.mxu0 0
        %502 = vmatpush2.bf16.xpose.msra.mxu0 0
        %503 = vmatprep.subr.bf16.mxu0 0
        %504 = vmatpush2.bf16.xpose.msra.mxu0 0
        %505 = vmatprep.mubr.bf16.mxu0 0
        %506 = vmatmul.mubr.bf16.gmra.mxu0 %v468
        %v507 = vpop.f32.mrf.mxu0
        %v508 = vadd.f32 0.0, %v507
        %v509 = vpop.f32.mrf.mxu0
        %v510 = vpop.f32.mrf.mxu0
        %v511 = vadd.f32 0.0, %v510
        %v512 = vpop.f32.mrf.mxu0
        %513 = vdwg.mxu0
        %515 = vrot.lane.b32.xlu0 %v456, 96
        %v516 = vpop.permute.xlu0 %515
        %v518 = vsel %vm466, %v456, 0
        %v521 = vsel %vm466, %v516, 0
        %523 = vmatprep.subr.bf16.mxu0 0
        %524 = vmatpush1.bf16.xpose.msra.mxu0 0
        %525 = vmatprep.subr.bf16.mxu0 0
        %526 = vmatpush1.bf16.xpose.msra.mxu0 0
        %527 = vmatprep.subr.bf16.mxu0 0
        %528 = vmatpush1.bf16.xpose.msra.mxu0 0
        %529 = vmatprep.subr.bf16.mxu0 0
        %530 = vmatpush1.bf16.xpose.msra.mxu0 0
        %531 = vmatprep.subr.bf16.mxu0 0
        %532 = vmatpush1.bf16.xpose.msra.mxu0 0
        %533 = vmatprep.subr.bf16.mxu0 0
        %534 = vmatpush1.bf16.xpose.msra.mxu0 0
        %535 = vmatprep.subr.bf16.mxu0 0
        %536 = vmatpush1.bf16.xpose.msra.mxu0 0
        %537 = vmatprep.subr.bf16.mxu0 0
        %538 = vmatpush1.bf16.xpose.msra.mxu0 %v521
        %539 = vmatprep.subr.bf16.mxu0 0
        %540 = vmatpush2.bf16.xpose.msra.mxu0 0
        %541 = vmatprep.subr.bf16.mxu0 0
        %542 = vmatpush2.bf16.xpose.msra.mxu0 0
        %543 = vmatprep.subr.bf16.mxu0 0
        %544 = vmatpush2.bf16.xpose.msra.mxu0 0
        %545 = vmatprep.subr.bf16.mxu0 0
        %546 = vmatpush2.bf16.xpose.msra.mxu0 0
        %547 = vmatprep.subr.bf16.mxu0 0
        %548 = vmatpush2.bf16.xpose.msra.mxu0 0
        %549 = vmatprep.subr.bf16.mxu0 0
        %550 = vmatpush2.bf16.xpose.msra.mxu0 0
        %551 = vmatprep.subr.bf16.mxu0 0
        %552 = vmatpush2.bf16.xpose.msra.mxu0 0
        %553 = vmatprep.subr.bf16.mxu0 0
        %554 = vmatpush2.bf16.xpose.msra.mxu0 0
        %555 = vmatprep.mubr.bf16.mxu0 0
        %556 = vmatmul.mubr.bf16.gmra.mxu0 %v518
        %v557 = vpop.f32.mrf.mxu0
        %v558 = vadd.f32 0.0, %v557
        %v559 = vpop.f32.mrf.mxu0
        %v560 = vpop.f32.mrf.mxu0
        %v561 = vadd.f32 0.0, %v560
        %v562 = vpop.f32.mrf.mxu0
        %563 = vdwg.mxu0
        %565 = vrot.lane.b32.xlu0 %v457, 96
        %v566 = vpop.permute.xlu0 %565
        %v568 = vsel %vm466, %v457, 0
        %v571 = vsel %vm466, %v566, 0
        %573 = vmatprep.subr.bf16.mxu0 0
        %574 = vmatpush1.bf16.xpose.msra.mxu0 0
        %575 = vmatprep.subr.bf16.mxu0 0
        %576 = vmatpush1.bf16.xpose.msra.mxu0 0
        %577 = vmatprep.subr.bf16.mxu0 0
        %578 = vmatpush1.bf16.xpose.msra.mxu0 0
        %579 = vmatprep.subr.bf16.mxu0 0
        %580 = vmatpush1.bf16.xpose.msra.mxu0 0
        %581 = vmatprep.subr.bf16.mxu0 0
        %582 = vmatpush1.bf16.xpose.msra.mxu0 0
        %583 = vmatprep.subr.bf16.mxu0 0
        %584 = vmatpush1.bf16.xpose.msra.mxu0 0
        %585 = vmatprep.subr.bf16.mxu0 0
        %586 = vmatpush1.bf16.xpose.msra.mxu0 0
        %587 = vmatprep.subr.bf16.mxu0 0
        %588 = vmatpush1.bf16.xpose.msra.mxu0 %v571
        %589 = vmatprep.subr.bf16.mxu0 0
        %590 = vmatpush2.bf16.xpose.msra.mxu0 0
        %591 = vmatprep.subr.bf16.mxu0 0
        %592 = vmatpush2.bf16.xpose.msra.mxu0 0
        %593 = vmatprep.subr.bf16.mxu0 0
        %594 = vmatpush2.bf16.xpose.msra.mxu0 0
        %595 = vmatprep.subr.bf16.mxu0 0
        %596 = vmatpush2.bf16.xpose.msra.mxu0 0
        %597 = vmatprep.subr.bf16.mxu0 0
        %598 = vmatpush2.bf16.xpose.msra.mxu0 0
        %599 = vmatprep.subr.bf16.mxu0 0
        %600 = vmatpush2.bf16.xpose.msra.mxu0 0
        %601 = vmatprep.subr.bf16.mxu0 0
        %602 = vmatpush2.bf16.xpose.msra.mxu0 0
        %603 = vmatprep.subr.bf16.mxu0 0
        %604 = vmatpush2.bf16.xpose.msra.mxu0 0
        %605 = vmatprep.mubr.bf16.mxu0 0
        %606 = vmatmul.mubr.bf16.gmra.mxu0 %v568
        %v607 = vpop.f32.mrf.mxu0
        %v608 = vadd.f32 0.0, %v607
        %v609 = vpop.f32.mrf.mxu0
        %v610 = vpop.f32.mrf.mxu0
        %v611 = vadd.f32 0.0, %v610
        %v612 = vpop.f32.mrf.mxu0
        %613 = vdwg.mxu0
        %615 = vrot.lane.b32.xlu0 %v458, 96
        %v616 = vpop.permute.xlu0 %615
        %v618 = vsel %vm466, %v458, 0
        %v621 = vsel %vm466, %v616, 0
        %623 = vmatprep.subr.bf16.mxu0 0
        %624 = vmatpush1.bf16.xpose.msra.mxu0 0
        %625 = vmatprep.subr.bf16.mxu0 0
        %626 = vmatpush1.bf16.xpose.msra.mxu0 0
        %627 = vmatprep.subr.bf16.mxu0 0
        %628 = vmatpush1.bf16.xpose.msra.mxu0 0
        %629 = vmatprep.subr.bf16.mxu0 0
        %630 = vmatpush1.bf16.xpose.msra.mxu0 0
        %631 = vmatprep.subr.bf16.mxu0 0
        %632 = vmatpush1.bf16.xpose.msra.mxu0 0
        %633 = vmatprep.subr.bf16.mxu0 0
        %634 = vmatpush1.bf16.xpose.msra.mxu0 0
        %635 = vmatprep.subr.bf16.mxu0 0
        %636 = vmatpush1.bf16.xpose.msra.mxu0 0
        %637 = vmatprep.subr.bf16.mxu0 0
        %638 = vmatpush1.bf16.xpose.msra.mxu0 %v621
        %639 = vmatprep.subr.bf16.mxu0 0
        %640 = vmatpush2.bf16.xpose.msra.mxu0 0
        %641 = vmatprep.subr.bf16.mxu0 0
        %642 = vmatpush2.bf16.xpose.msra.mxu0 0
        %643 = vmatprep.subr.bf16.mxu0 0
        %644 = vmatpush2.bf16.xpose.msra.mxu0 0
        %645 = vmatprep.subr.bf16.mxu0 0
        %646 = vmatpush2.bf16.xpose.msra.mxu0 0
        %647 = vmatprep.subr.bf16.mxu0 0
        %648 = vmatpush2.bf16.xpose.msra.mxu0 0
        %649 = vmatprep.subr.bf16.mxu0 0
        %650 = vmatpush2.bf16.xpose.msra.mxu0 0
        %651 = vmatprep.subr.bf16.mxu0 0
        %652 = vmatpush2.bf16.xpose.msra.mxu0 0
        %653 = vmatprep.subr.bf16.mxu0 0
        %654 = vmatpush2.bf16.xpose.msra.mxu0 0
        %655 = vmatprep.mubr.bf16.mxu0 0
        %656 = vmatmul.mubr.bf16.gmra.mxu0 %v618
        %v657 = vpop.f32.mrf.mxu0
        %v658 = vadd.f32 0.0, %v657
        %v659 = vpop.f32.mrf.mxu0
        %v660 = vpop.f32.mrf.mxu0
        %v661 = vadd.f32 0.0, %v660
        %v662 = vpop.f32.mrf.mxu0
        %663 = vdwg.mxu0
        %665 = vrot.lane.b32.xlu0 %v459, 96
        %v666 = vpop.permute.xlu0 %665
        %v668 = vsel %vm466, %v459, 0
        %v671 = vsel %vm466, %v666, 0
        %673 = vmatprep.subr.bf16.mxu0 0
        %674 = vmatpush1.bf16.xpose.msra.mxu0 0
        %675 = vmatprep.subr.bf16.mxu0 0
        %676 = vmatpush1.bf16.xpose.msra.mxu0 0
        %677 = vmatprep.subr.bf16.mxu0 0
        %678 = vmatpush1.bf16.xpose.msra.mxu0 0
        %679 = vmatprep.subr.bf16.mxu0 0
        %680 = vmatpush1.bf16.xpose.msra.mxu0 0
        %681 = vmatprep.subr.bf16.mxu0 0
        %682 = vmatpush1.bf16.xpose.msra.mxu0 0
        %683 = vmatprep.subr.bf16.mxu0 0
        %684 = vmatpush1.bf16.xpose.msra.mxu0 0
        %685 = vmatprep.subr.bf16.mxu0 0
        %686 = vmatpush1.bf16.xpose.msra.mxu0 0
        %687 = vmatprep.subr.bf16.mxu0 0
        %688 = vmatpush1.bf16.xpose.msra.mxu0 %v671
        %689 = vmatprep.subr.bf16.mxu0 0
        %690 = vmatpush2.bf16.xpose.msra.mxu0 0
        %691 = vmatprep.subr.bf16.mxu0 0
        %692 = vmatpush2.bf16.xpose.msra.mxu0 0
        %693 = vmatprep.subr.bf16.mxu0 0
        %694 = vmatpush2.bf16.xpose.msra.mxu0 0
        %695 = vmatprep.subr.bf16.mxu0 0
        %696 = vmatpush2.bf16.xpose.msra.mxu0 0
        %697 = vmatprep.subr.bf16.mxu0 0
        %698 = vmatpush2.bf16.xpose.msra.mxu0 0
        %699 = vmatprep.subr.bf16.mxu0 0
        %700 = vmatpush2.bf16.xpose.msra.mxu0 0
        %701 = vmatprep.subr.bf16.mxu0 0
        %702 = vmatpush2.bf16.xpose.msra.mxu0 0
        %703 = vmatprep.subr.bf16.mxu0 0
        %704 = vmatpush2.bf16.xpose.msra.mxu0 0
        %705 = vmatprep.mubr.bf16.mxu0 0
        %706 = vmatmul.mubr.bf16.gmra.mxu0 %v668
        %v707 = vpop.f32.mrf.mxu0
        %v708 = vadd.f32 0.0, %v707
        %v709 = vpop.f32.mrf.mxu0
        %v710 = vpop.f32.mrf.mxu0
        %v711 = vadd.f32 0.0, %v710
        %v712 = vpop.f32.mrf.mxu0
        %713 = vdwg.mxu0
        %715 = vrot.lane.b32.xlu0 %v460, 96
        %v716 = vpop.permute.xlu0 %715
        %v718 = vsel %vm466, %v460, 0
        %v721 = vsel %vm466, %v716, 0
        %723 = vmatprep.subr.bf16.mxu0 0
        %724 = vmatpush1.bf16.xpose.msra.mxu0 0
        %725 = vmatprep.subr.bf16.mxu0 0
        %726 = vmatpush1.bf16.xpose.msra.mxu0 0
        %727 = vmatprep.subr.bf16.mxu0 0
        %728 = vmatpush1.bf16.xpose.msra.mxu0 0
        %729 = vmatprep.subr.bf16.mxu0 0
        %730 = vmatpush1.bf16.xpose.msra.mxu0 0
        %731 = vmatprep.subr.bf16.mxu0 0
        %732 = vmatpush1.bf16.xpose.msra.mxu0 0
        %733 = vmatprep.subr.bf16.mxu0 0
        %734 = vmatpush1.bf16.xpose.msra.mxu0 0
        %735 = vmatprep.subr.bf16.mxu0 0
        %736 = vmatpush1.bf16.xpose.msra.mxu0 0
        %737 = vmatprep.subr.bf16.mxu0 0
        %738 = vmatpush1.bf16.xpose.msra.mxu0 %v721
        %739 = vmatprep.subr.bf16.mxu0 0
        %740 = vmatpush2.bf16.xpose.msra.mxu0 0
        %741 = vmatprep.subr.bf16.mxu0 0
        %742 = vmatpush2.bf16.xpose.msra.mxu0 0
        %743 = vmatprep.subr.bf16.mxu0 0
        %744 = vmatpush2.bf16.xpose.msra.mxu0 0
        %745 = vmatprep.subr.bf16.mxu0 0
        %746 = vmatpush2.bf16.xpose.msra.mxu0 0
        %747 = vmatprep.subr.bf16.mxu0 0
        %748 = vmatpush2.bf16.xpose.msra.mxu0 0
        %749 = vmatprep.subr.bf16.mxu0 0
        %750 = vmatpush2.bf16.xpose.msra.mxu0 0
        %751 = vmatprep.subr.bf16.mxu0 0
        %752 = vmatpush2.bf16.xpose.msra.mxu0 0
        %753 = vmatprep.subr.bf16.mxu0 0
        %754 = vmatpush2.bf16.xpose.msra.mxu0 0
        %755 = vmatprep.mubr.bf16.mxu0 0
        %756 = vmatmul.mubr.bf16.gmra.mxu0 %v718
        %v757 = vpop.f32.mrf.mxu0
        %v758 = vadd.f32 0.0, %v757
        %v759 = vpop.f32.mrf.mxu0
        %v760 = vpop.f32.mrf.mxu0
        %v761 = vadd.f32 0.0, %v760
        %v762 = vpop.f32.mrf.mxu0
        %763 = vdwg.mxu0
        %765 = vrot.lane.b32.xlu0 %v461, 96
        %v766 = vpop.permute.xlu0 %765
        %v768 = vsel %vm466, %v461, 0
        %v771 = vsel %vm466, %v766, 0
        %773 = vmatprep.subr.bf16.mxu0 0
        %774 = vmatpush1.bf16.xpose.msra.mxu0 0
        %775 = vmatprep.subr.bf16.mxu0 0
        %776 = vmatpush1.bf16.xpose.msra.mxu0 0
        %777 = vmatprep.subr.bf16.mxu0 0
        %778 = vmatpush1.bf16.xpose.msra.mxu0 0
        %779 = vmatprep.subr.bf16.mxu0 0
        %780 = vmatpush1.bf16.xpose.msra.mxu0 0
        %781 = vmatprep.subr.bf16.mxu0 0
        %782 = vmatpush1.bf16.xpose.msra.mxu0 0
        %783 = vmatprep.subr.bf16.mxu0 0
        %784 = vmatpush1.bf16.xpose.msra.mxu0 0
        %785 = vmatprep.subr.bf16.mxu0 0
        %786 = vmatpush1.bf16.xpose.msra.mxu0 0
        %787 = vmatprep.subr.bf16.mxu0 0
        %788 = vmatpush1.bf16.xpose.msra.mxu0 %v771
        %789 = vmatprep.subr.bf16.mxu0 0
        %790 = vmatpush2.bf16.xpose.msra.mxu0 0
        %791 = vmatprep.subr.bf16.mxu0 0
        %792 = vmatpush2.bf16.xpose.msra.mxu0 0
        %793 = vmatprep.subr.bf16.mxu0 0
        %794 = vmatpush2.bf16.xpose.msra.mxu0 0
        %795 = vmatprep.subr.bf16.mxu0 0
        %796 = vmatpush2.bf16.xpose.msra.mxu0 0
        %797 = vmatprep.subr.bf16.mxu0 0
        %798 = vmatpush2.bf16.xpose.msra.mxu0 0
        %799 = vmatprep.subr.bf16.mxu0 0
        %800 = vmatpush2.bf16.xpose.msra.mxu0 0
        %801 = vmatprep.subr.bf16.mxu0 0
        %802 = vmatpush2.bf16.xpose.msra.mxu0 0
        %803 = vmatprep.subr.bf16.mxu0 0
        %804 = vmatpush2.bf16.xpose.msra.mxu0 0
        %805 = vmatprep.mubr.bf16.mxu0 0
        %806 = vmatmul.mubr.bf16.gmra.mxu0 %v768
        %v807 = vpop.f32.mrf.mxu0
        %v808 = vadd.f32 0.0, %v807
        %v809 = vpop.f32.mrf.mxu0
        %v810 = vpop.f32.mrf.mxu0
        %v811 = vadd.f32 0.0, %v810
        %v812 = vpop.f32.mrf.mxu0
        %813 = vdwg.mxu0
        %815 = vrot.lane.b32.xlu0 %v462, 96
        %v816 = vpop.permute.xlu0 %815
        %v818 = vsel %vm466, %v462, 0
        %v821 = vsel %vm466, %v816, 0
        %823 = vmatprep.subr.bf16.mxu0 0
        %824 = vmatpush1.bf16.xpose.msra.mxu0 0
        %825 = vmatprep.subr.bf16.mxu0 0
        %826 = vmatpush1.bf16.xpose.msra.mxu0 0
        %827 = vmatprep.subr.bf16.mxu0 0
        %828 = vmatpush1.bf16.xpose.msra.mxu0 0
        %829 = vmatprep.subr.bf16.mxu0 0
        %830 = vmatpush1.bf16.xpose.msra.mxu0 0
        %831 = vmatprep.subr.bf16.mxu0 0
        %832 = vmatpush1.bf16.xpose.msra.mxu0 0
        %833 = vmatprep.subr.bf16.mxu0 0
        %834 = vmatpush1.bf16.xpose.msra.mxu0 0
        %835 = vmatprep.subr.bf16.mxu0 0
        %836 = vmatpush1.bf16.xpose.msra.mxu0 0
        %837 = vmatprep.subr.bf16.mxu0 0
        %838 = vmatpush1.bf16.xpose.msra.mxu0 %v821
        %839 = vmatprep.subr.bf16.mxu0 0
        %840 = vmatpush2.bf16.xpose.msra.mxu0 0
        %841 = vmatprep.subr.bf16.mxu0 0
        %842 = vmatpush2.bf16.xpose.msra.mxu0 0
        %843 = vmatprep.subr.bf16.mxu0 0
        %844 = vmatpush2.bf16.xpose.msra.mxu0 0
        %845 = vmatprep.subr.bf16.mxu0 0
        %846 = vmatpush2.bf16.xpose.msra.mxu0 0
        %847 = vmatprep.subr.bf16.mxu0 0
        %848 = vmatpush2.bf16.xpose.msra.mxu0 0
        %849 = vmatprep.subr.bf16.mxu0 0
        %850 = vmatpush2.bf16.xpose.msra.mxu0 0
        %851 = vmatprep.subr.bf16.mxu0 0
        %852 = vmatpush2.bf16.xpose.msra.mxu0 0
        %853 = vmatprep.subr.bf16.mxu0 0
        %854 = vmatpush2.bf16.xpose.msra.mxu0 0
        %855 = vmatprep.mubr.bf16.mxu0 0
        %856 = vmatmul.mubr.bf16.gmra.mxu0 %v818
        %v857 = vpop.f32.mrf.mxu0
        %v858 = vadd.f32 0.0, %v857
        %v859 = vpop.f32.mrf.mxu0
        %v860 = vpop.f32.mrf.mxu0
        %v861 = vadd.f32 0.0, %v860
        %v862 = vpop.f32.mrf.mxu0
        %863 = vdwg.mxu0
        %v864 = vld [vmem:[%s5] sm:$0xf]
        %v865 = vld [vmem:[%s5 + $0x4] sm:$0xf]
        %v866 = vld [vmem:[%s5 + $0x8] sm:$0xf]
        %v867 = vld [vmem:[%s5 + $0xc] sm:$0xf]
        %v868 = vld [vmem:[%s5 + $0x10] sm:$0xf]
        %v869 = vld [vmem:[%s5 + $0x14] sm:$0xf]
        %v870 = vld [vmem:[%s5 + $0x18] sm:$0xf]
        %v871 = vld [vmem:[%s5 + $0x1c] sm:$0xf]
        %v872 = vunpack.c.l.bf16 %v864
        %v873 = vunpack.c.l.bf16 %v865
        %v874 = vunpack.c.l.bf16 %v866
        %v875 = vunpack.c.l.bf16 %v867
        %v876 = vunpack.c.l.bf16 %v868
        %v877 = vunpack.c.l.bf16 %v869
        %v878 = vunpack.c.l.bf16 %v870
        %v879 = vunpack.c.l.bf16 %v871
        %v880 = vadd.f32 %v508, %v872
        %v881 = vadd.f32 %v511, %v873
        %v882 = vadd.f32 %v558, %v874
        %v883 = vadd.f32 %v561, %v875
        %v884 = vadd.f32 %v608, %v876
        %v885 = vadd.f32 %v611, %v877
        %v886 = vadd.f32 %v658, %v878
        %v887 = vadd.f32 %v661, %v879
        %v888 = vadd.f32 %v708, %v872
        %v889 = vadd.f32 %v711, %v873
        %v890 = vadd.f32 %v758, %v874
        %v891 = vadd.f32 %v761, %v875
        %v892 = vadd.f32 %v808, %v876
        %v893 = vadd.f32 %v811, %v877
        %v894 = vadd.f32 %v858, %v878
        %v895 = vadd.f32 %v861, %v879
        %vm896 = vcmask 130048
        %v897 = vsel %vm896, %v880, -inf
        %898 = vmax.xlane.f32.xlu0 %v897
        %v899 = vpop.xlane.xlu0 %898
        %v900 = vsel %vm896, %v881, -inf
        %901 = vmax.xlane.f32.xlu0 %v900
        %v902 = vpop.xlane.xlu0 %901
        %v903 = vsel %vm896, %v882, -inf
        %904 = vmax.xlane.f32.xlu0 %v903
        %v905 = vpop.xlane.xlu0 %904
        %v906 = vsel %vm896, %v883, -inf
        %907 = vmax.xlane.f32.xlu0 %v906
        %v908 = vpop.xlane.xlu0 %907
        %v909 = vsel %vm896, %v884, -inf
        %910 = vmax.xlane.f32.xlu0 %v909
        %v911 = vpop.xlane.xlu0 %910
        %v912 = vsel %vm896, %v885, -inf
        %913 = vmax.xlane.f32.xlu0 %v912
        %v914 = vpop.xlane.xlu0 %913
        %v915 = vsel %vm896, %v886, -inf
        %916 = vmax.xlane.f32.xlu0 %v915
        %v917 = vpop.xlane.xlu0 %916
        %v918 = vsel %vm896, %v887, -inf
        %919 = vmax.xlane.f32.xlu0 %v918
        %v920 = vpop.xlane.xlu0 %919
        %v921 = vsel %vm896, %v888, -inf
        %922 = vmax.xlane.f32.xlu0 %v921
        %v923 = vpop.xlane.xlu0 %922
        %v924 = vsel %vm896, %v889, -inf
        %925 = vmax.xlane.f32.xlu0 %v924
        %v926 = vpop.xlane.xlu0 %925
        %v927 = vsel %vm896, %v890, -inf
        %928 = vmax.xlane.f32.xlu0 %v927
        %v929 = vpop.xlane.xlu0 %928
        %v930 = vsel %vm896, %v891, -inf
        %931 = vmax.xlane.f32.xlu0 %v930
        %v932 = vpop.xlane.xlu0 %931
        %v933 = vsel %vm896, %v892, -inf
        %934 = vmax.xlane.f32.xlu0 %v933
        %v935 = vpop.xlane.xlu0 %934
        %v936 = vsel %vm896, %v893, -inf
        %937 = vmax.xlane.f32.xlu0 %v936
        %v938 = vpop.xlane.xlu0 %937
        %v939 = vsel %vm896, %v894, -inf
        %940 = vmax.xlane.f32.xlu0 %v939
        %v941 = vpop.xlane.xlu0 %940
        %v942 = vsel %vm896, %v895, -inf
        %943 = vmax.xlane.f32.xlu0 %v942
        %v944 = vpop.xlane.xlu0 %943
        %v945 = vsub.f32 %v880, %v899
        %v946 = vsub.f32 %v881, %v902
        %v947 = vsub.f32 %v882, %v905
        %v948 = vsub.f32 %v883, %v908
        %v949 = vsub.f32 %v884, %v911
        %v950 = vsub.f32 %v885, %v914
        %v951 = vsub.f32 %v886, %v917
        %v952 = vsub.f32 %v887, %v920
        %v953 = vsub.f32 %v888, %v923
        %v954 = vsub.f32 %v889, %v926
        %v955 = vsub.f32 %v890, %v929
        %v956 = vsub.f32 %v891, %v932
        %v957 = vsub.f32 %v892, %v935
        %v958 = vsub.f32 %v893, %v938
        %v959 = vsub.f32 %v894, %v941
        %v960 = vsub.f32 %v895, %v944
        %v961 = vmul.f32 %v945, 1.442695
        %v962 = vpow.pop %v961
        %v963 = vmul.f32 %v946, 1.442695
        %v964 = vpow.pop %v963
        %v965 = vmul.f32 %v947, 1.442695
        %v966 = vpow.pop %v965
        %v967 = vmul.f32 %v948, 1.442695
        %v968 = vpow.pop %v967
        %v969 = vmul.f32 %v949, 1.442695
        %v970 = vpow.pop %v969
        %v971 = vmul.f32 %v950, 1.442695
        %v972 = vpow.pop %v971
        %v973 = vmul.f32 %v951, 1.442695
        %v974 = vpow.pop %v973
        %v975 = vmul.f32 %v952, 1.442695
        %v976 = vpow.pop %v975
        %v977 = vmul.f32 %v953, 1.442695
        %v978 = vpow.pop %v977
        %v979 = vmul.f32 %v954, 1.442695
        %v980 = vpow.pop %v979
        %v981 = vmul.f32 %v955, 1.442695
        %v982 = vpow.pop %v981
        %v983 = vmul.f32 %v956, 1.442695
        %v984 = vpow.pop %v983
        %v985 = vmul.f32 %v957, 1.442695
        %v986 = vpow.pop %v985
        %v987 = vmul.f32 %v958, 1.442695
        %v988 = vpow.pop %v987
        %v989 = vmul.f32 %v959, 1.442695
        %v990 = vpow.pop %v989
        %v991 = vmul.f32 %v960, 1.442695
        %v992 = vpow.pop %v991
        %v993 = vsel %vm896, %v962, 0.0
        %994 = vadd.xlane.f32.xlu0 %v993
        %v995 = vpop.xlane.xlu0 %994
        %v996 = vsel %vm896, %v964, 0.0
        %997 = vadd.xlane.f32.xlu0 %v996
        %v998 = vpop.xlane.xlu0 %997
        %v999 = vsel %vm896, %v966, 0.0
        %1000 = vadd.xlane.f32.xlu0 %v999
        %v1001 = vpop.xlane.xlu0 %1000
        %v1002 = vsel %vm896, %v968, 0.0
        %1003 = vadd.xlane.f32.xlu0 %v1002
        %v1004 = vpop.xlane.xlu0 %1003
        %v1005 = vsel %vm896, %v970, 0.0
        %1006 = vadd.xlane.f32.xlu0 %v1005
        %v1007 = vpop.xlane.xlu0 %1006
        %v1008 = vsel %vm896, %v972, 0.0
        %1009 = vadd.xlane.f32.xlu0 %v1008
        %v1010 = vpop.xlane.xlu0 %1009
        %v1011 = vsel %vm896, %v974, 0.0
        %1012 = vadd.xlane.f32.xlu0 %v1011
        %v1013 = vpop.xlane.xlu0 %1012
        %v1014 = vsel %vm896, %v976, 0.0
        %1015 = vadd.xlane.f32.xlu0 %v1014
        %v1016 = vpop.xlane.xlu0 %1015
        %v1017 = vsel %vm896, %v978, 0.0
        %1018 = vadd.xlane.f32.xlu0 %v1017
        %v1019 = vpop.xlane.xlu0 %1018
        %v1020 = vsel %vm896, %v980, 0.0
        %1021 = vadd.xlane.f32.xlu0 %v1020
        %v1022 = vpop.xlane.xlu0 %1021
        %v1023 = vsel %vm896, %v982, 0.0
        %1024 = vadd.xlane.f32.xlu0 %v1023
        %v1025 = vpop.xlane.xlu0 %1024
        %v1026 = vsel %vm896, %v984, 0.0
        %1027 = vadd.xlane.f32.xlu0 %v1026
        %v1028 = vpop.xlane.xlu0 %1027
        %v1029 = vsel %vm896, %v986, 0.0
        %1030 = vadd.xlane.f32.xlu0 %v1029
        %v1031 = vpop.xlane.xlu0 %1030
        %v1032 = vsel %vm896, %v988, 0.0
        %1033 = vadd.xlane.f32.xlu0 %v1032
        %v1034 = vpop.xlane.xlu0 %1033
        %v1035 = vsel %vm896, %v990, 0.0
        %1036 = vadd.xlane.f32.xlu0 %v1035
        %v1037 = vpop.xlane.xlu0 %1036
        %v1038 = vsel %vm896, %v992, 0.0
        %1039 = vadd.xlane.f32.xlu0 %v1038
        %v1040 = vpop.xlane.xlu0 %1039
        %v1041 = vrcp.pop %v995
        %v1042 = vrcp.pop %v998
        %v1043 = vrcp.pop %v1001
        %v1044 = vrcp.pop %v1004
        %v1045 = vrcp.pop %v1007
        %v1046 = vrcp.pop %v1010
        %v1047 = vrcp.pop %v1013
        %v1048 = vrcp.pop %v1016
        %v1049 = vrcp.pop %v1019
        %v1050 = vrcp.pop %v1022
        %v1051 = vrcp.pop %v1025
        %v1052 = vrcp.pop %v1028
        %v1053 = vrcp.pop %v1031
        %v1054 = vrcp.pop %v1034
        %v1055 = vrcp.pop %v1037
        %v1056 = vrcp.pop %v1040
        %v1057 = vmul.f32 %v962, %v1041
        %v1058 = vmul.f32 %v964, %v1042
        %v1059 = vmul.f32 %v966, %v1043
        %v1060 = vmul.f32 %v968, %v1044
        %v1061 = vmul.f32 %v970, %v1045
        %v1062 = vmul.f32 %v972, %v1046
        %v1063 = vmul.f32 %v974, %v1047
        %v1064 = vmul.f32 %v976, %v1048
        %v1065 = vmul.f32 %v978, %v1049
        %v1066 = vmul.f32 %v980, %v1050
        %v1067 = vmul.f32 %v982, %v1051
        %v1068 = vmul.f32 %v984, %v1052
        %v1069 = vmul.f32 %v986, %v1053
        %v1070 = vmul.f32 %v988, %v1054
        %v1071 = vmul.f32 %v990, %v1055
        %v1072 = vmul.f32 %v992, %v1056
        %v1073 = vpack.c.bf16 %v1058, %v1057
        %v1074 = vpack.c.bf16 %v1060, %v1059
        %v1075 = vpack.c.bf16 %v1062, %v1061
        %v1076 = vpack.c.bf16 %v1064, %v1063
        %v1077 = vpack.c.bf16 %v1066, %v1065
        %v1078 = vpack.c.bf16 %v1068, %v1067
        %v1079 = vpack.c.bf16 %v1070, %v1069
        %v1080 = vpack.c.bf16 %v1072, %v1071
        %1081 = vrot.lane.b32.xlu0 %v455, 64
        %v1082 = vpop.permute.xlu0 %1081
        %v1085 = vsel %vm896, %v1073, 0
        %1087 = vmatprep.subr.bf16.mxu0 0
        %1088 = vmatpush1.bf16.msra.mxu0 0
        %1089 = vmatprep.subr.bf16.mxu0 0
        %1090 = vmatpush1.bf16.msra.mxu0 0
        %1091 = vmatprep.subr.bf16.mxu0 0
        %1092 = vmatpush1.bf16.msra.mxu0 0
        %1093 = vmatprep.subr.bf16.mxu0 0
        %1094 = vmatpush1.bf16.msra.mxu0 0
        %1095 = vmatprep.subr.bf16.mxu0 0
        %1096 = vmatpush1.bf16.msra.mxu0 0
        %1097 = vmatprep.subr.bf16.mxu0 0
        %1098 = vmatpush1.bf16.msra.mxu0 0
        %1099 = vmatprep.subr.bf16.mxu0 0
        %1100 = vmatpush1.bf16.msra.mxu0 0
        %1101 = vmatprep.subr.bf16.mxu0 0
        %1102 = vmatpush1.bf16.msra.mxu0 %v1082
        %1103 = vmatprep.subr.bf16.mxu0 0
        %1104 = vmatpush2.bf16.msra.mxu0 0
        %1105 = vmatprep.subr.bf16.mxu0 0
        %1106 = vmatpush2.bf16.msra.mxu0 0
        %1107 = vmatprep.subr.bf16.mxu0 0
        %1108 = vmatpush2.bf16.msra.mxu0 0
        %1109 = vmatprep.subr.bf16.mxu0 0
        %1110 = vmatpush2.bf16.msra.mxu0 0
        %1111 = vmatprep.subr.bf16.mxu0 0
        %1112 = vmatpush2.bf16.msra.mxu0 0
        %1113 = vmatprep.subr.bf16.mxu0 0
        %1114 = vmatpush2.bf16.msra.mxu0 0
        %1115 = vmatprep.subr.bf16.mxu0 0
        %1116 = vmatpush2.bf16.msra.mxu0 0
        %1117 = vmatprep.subr.bf16.mxu0 0
        %1118 = vmatpush2.bf16.msra.mxu0 0
        %1119 = vmatprep.mubr.bf16.mxu0 0
        %1120 = vmatmul.mubr.bf16.gmra.mxu0 %v1085
        %v1121 = vpop.f32.mrf.mxu0
        %v1122 = vadd.f32 0.0, %v1121
        %v1123 = vpop.f32.mrf.mxu0
        %v1124 = vpop.f32.mrf.mxu0
        %v1125 = vadd.f32 0.0, %v1124
        %v1126 = vpop.f32.mrf.mxu0
        %1127 = vdwg.mxu0
        %1128 = vrot.lane.b32.xlu0 %v456, 64
        %v1129 = vpop.permute.xlu0 %1128
        %v1132 = vsel %vm896, %v1074, 0
        %1134 = vmatprep.subr.bf16.mxu0 0
        %1135 = vmatpush1.bf16.msra.mxu0 0
        %1136 = vmatprep.subr.bf16.mxu0 0
        %1137 = vmatpush1.bf16.msra.mxu0 0
        %1138 = vmatprep.subr.bf16.mxu0 0
        %1139 = vmatpush1.bf16.msra.mxu0 0
        %1140 = vmatprep.subr.bf16.mxu0 0
        %1141 = vmatpush1.bf16.msra.mxu0 0
        %1142 = vmatprep.subr.bf16.mxu0 0
        %1143 = vmatpush1.bf16.msra.mxu0 0
        %1144 = vmatprep.subr.bf16.mxu0 0
        %1145 = vmatpush1.bf16.msra.mxu0 0
        %1146 = vmatprep.subr.bf16.mxu0 0
        %1147 = vmatpush1.bf16.msra.mxu0 0
        %1148 = vmatprep.subr.bf16.mxu0 0
        %1149 = vmatpush1.bf16.msra.mxu0 %v1129
        %1150 = vmatprep.subr.bf16.mxu0 0
        %1151 = vmatpush2.bf16.msra.mxu0 0
        %1152 = vmatprep.subr.bf16.mxu0 0
        %1153 = vmatpush2.bf16.msra.mxu0 0
        %1154 = vmatprep.subr.bf16.mxu0 0
        %1155 = vmatpush2.bf16.msra.mxu0 0
        %1156 = vmatprep.subr.bf16.mxu0 0
        %1157 = vmatpush2.bf16.msra.mxu0 0
        %1158 = vmatprep.subr.bf16.mxu0 0
        %1159 = vmatpush2.bf16.msra.mxu0 0
        %1160 = vmatprep.subr.bf16.mxu0 0
        %1161 = vmatpush2.bf16.msra.mxu0 0
        %1162 = vmatprep.subr.bf16.mxu0 0
        %1163 = vmatpush2.bf16.msra.mxu0 0
        %1164 = vmatprep.subr.bf16.mxu0 0
        %1165 = vmatpush2.bf16.msra.mxu0 0
        %1166 = vmatprep.mubr.bf16.mxu0 0
        %1167 = vmatmul.mubr.bf16.gmra.mxu0 %v1132
        %v1168 = vpop.f32.mrf.mxu0
        %v1169 = vadd.f32 0.0, %v1168
        %v1170 = vpop.f32.mrf.mxu0
        %v1171 = vpop.f32.mrf.mxu0
        %v1172 = vadd.f32 0.0, %v1171
        %v1173 = vpop.f32.mrf.mxu0
        %1174 = vdwg.mxu0
        %1175 = vrot.lane.b32.xlu0 %v457, 64
        %v1176 = vpop.permute.xlu0 %1175
        %v1179 = vsel %vm896, %v1075, 0
        %1181 = vmatprep.subr.bf16.mxu0 0
        %1182 = vmatpush1.bf16.msra.mxu0 0
        %1183 = vmatprep.subr.bf16.mxu0 0
        %1184 = vmatpush1.bf16.msra.mxu0 0
        %1185 = vmatprep.subr.bf16.mxu0 0
        %1186 = vmatpush1.bf16.msra.mxu0 0
        %1187 = vmatprep.subr.bf16.mxu0 0
        %1188 = vmatpush1.bf16.msra.mxu0 0
        %1189 = vmatprep.subr.bf16.mxu0 0
        %1190 = vmatpush1.bf16.msra.mxu0 0
        %1191 = vmatprep.subr.bf16.mxu0 0
        %1192 = vmatpush1.bf16.msra.mxu0 0
        %1193 = vmatprep.subr.bf16.mxu0 0
        %1194 = vmatpush1.bf16.msra.mxu0 0
        %1195 = vmatprep.subr.bf16.mxu0 0
        %1196 = vmatpush1.bf16.msra.mxu0 %v1176
        %1197 = vmatprep.subr.bf16.mxu0 0
        %1198 = vmatpush2.bf16.msra.mxu0 0
        %1199 = vmatprep.subr.bf16.mxu0 0
        %1200 = vmatpush2.bf16.msra.mxu0 0
        %1201 = vmatprep.subr.bf16.mxu0 0
        %1202 = vmatpush2.bf16.msra.mxu0 0
        %1203 = vmatprep.subr.bf16.mxu0 0
        %1204 = vmatpush2.bf16.msra.mxu0 0
        %1205 = vmatprep.subr.bf16.mxu0 0
        %1206 = vmatpush2.bf16.msra.mxu0 0
        %1207 = vmatprep.subr.bf16.mxu0 0
        %1208 = vmatpush2.bf16.msra.mxu0 0
        %1209 = vmatprep.subr.bf16.mxu0 0
        %1210 = vmatpush2.bf16.msra.mxu0 0
        %1211 = vmatprep.subr.bf16.mxu0 0
        %1212 = vmatpush2.bf16.msra.mxu0 0
        %1213 = vmatprep.mubr.bf16.mxu0 0
        %1214 = vmatmul.mubr.bf16.gmra.mxu0 %v1179
        %v1215 = vpop.f32.mrf.mxu0
        %v1216 = vadd.f32 0.0, %v1215
        %v1217 = vpop.f32.mrf.mxu0
        %v1218 = vpop.f32.mrf.mxu0
        %v1219 = vadd.f32 0.0, %v1218
        %v1220 = vpop.f32.mrf.mxu0
        %1221 = vdwg.mxu0
        %1222 = vrot.lane.b32.xlu0 %v458, 64
        %v1223 = vpop.permute.xlu0 %1222
        %v1226 = vsel %vm896, %v1076, 0
        %1228 = vmatprep.subr.bf16.mxu0 0
        %1229 = vmatpush1.bf16.msra.mxu0 0
        %1230 = vmatprep.subr.bf16.mxu0 0
        %1231 = vmatpush1.bf16.msra.mxu0 0
        %1232 = vmatprep.subr.bf16.mxu0 0
        %1233 = vmatpush1.bf16.msra.mxu0 0
        %1234 = vmatprep.subr.bf16.mxu0 0
        %1235 = vmatpush1.bf16.msra.mxu0 0
        %1236 = vmatprep.subr.bf16.mxu0 0
        %1237 = vmatpush1.bf16.msra.mxu0 0
        %1238 = vmatprep.subr.bf16.mxu0 0
        %1239 = vmatpush1.bf16.msra.mxu0 0
        %1240 = vmatprep.subr.bf16.mxu0 0
        %1241 = vmatpush1.bf16.msra.mxu0 0
        %1242 = vmatprep.subr.bf16.mxu0 0
        %1243 = vmatpush1.bf16.msra.mxu0 %v1223
        %1244 = vmatprep.subr.bf16.mxu0 0
        %1245 = vmatpush2.bf16.msra.mxu0 0
        %1246 = vmatprep.subr.bf16.mxu0 0
        %1247 = vmatpush2.bf16.msra.mxu0 0
        %1248 = vmatprep.subr.bf16.mxu0 0
        %1249 = vmatpush2.bf16.msra.mxu0 0
        %1250 = vmatprep.subr.bf16.mxu0 0
        %1251 = vmatpush2.bf16.msra.mxu0 0
        %1252 = vmatprep.subr.bf16.mxu0 0
        %1253 = vmatpush2.bf16.msra.mxu0 0
        %1254 = vmatprep.subr.bf16.mxu0 0
        %1255 = vmatpush2.bf16.msra.mxu0 0
        %1256 = vmatprep.subr.bf16.mxu0 0
        %1257 = vmatpush2.bf16.msra.mxu0 0
        %1258 = vmatprep.subr.bf16.mxu0 0
        %1259 = vmatpush2.bf16.msra.mxu0 0
        %1260 = vmatprep.mubr.bf16.mxu0 0
        %1261 = vmatmul.mubr.bf16.gmra.mxu0 %v1226
        %v1262 = vpop.f32.mrf.mxu0
        %v1263 = vadd.f32 0.0, %v1262
        %v1264 = vpop.f32.mrf.mxu0
        %v1265 = vpop.f32.mrf.mxu0
        %v1266 = vadd.f32 0.0, %v1265
        %v1267 = vpop.f32.mrf.mxu0
        %1268 = vdwg.mxu0
        %1269 = vrot.lane.b32.xlu0 %v459, 64
        %v1270 = vpop.permute.xlu0 %1269
        %v1273 = vsel %vm896, %v1077, 0
        %1275 = vmatprep.subr.bf16.mxu0 0
        %1276 = vmatpush1.bf16.msra.mxu0 0
        %1277 = vmatprep.subr.bf16.mxu0 0
        %1278 = vmatpush1.bf16.msra.mxu0 0
        %1279 = vmatprep.subr.bf16.mxu0 0
        %1280 = vmatpush1.bf16.msra.mxu0 0
        %1281 = vmatprep.subr.bf16.mxu0 0
        %1282 = vmatpush1.bf16.msra.mxu0 0
        %1283 = vmatprep.subr.bf16.mxu0 0
        %1284 = vmatpush1.bf16.msra.mxu0 0
        %1285 = vmatprep.subr.bf16.mxu0 0
        %1286 = vmatpush1.bf16.msra.mxu0 0
        %1287 = vmatprep.subr.bf16.mxu0 0
        %1288 = vmatpush1.bf16.msra.mxu0 0
        %1289 = vmatprep.subr.bf16.mxu0 0
        %1290 = vmatpush1.bf16.msra.mxu0 %v1270
        %1291 = vmatprep.subr.bf16.mxu0 0
        %1292 = vmatpush2.bf16.msra.mxu0 0
        %1293 = vmatprep.subr.bf16.mxu0 0
        %1294 = vmatpush2.bf16.msra.mxu0 0
        %1295 = vmatprep.subr.bf16.mxu0 0
        %1296 = vmatpush2.bf16.msra.mxu0 0
        %1297 = vmatprep.subr.bf16.mxu0 0
        %1298 = vmatpush2.bf16.msra.mxu0 0
        %1299 = vmatprep.subr.bf16.mxu0 0
        %1300 = vmatpush2.bf16.msra.mxu0 0
        %1301 = vmatprep.subr.bf16.mxu0 0
        %1302 = vmatpush2.bf16.msra.mxu0 0
        %1303 = vmatprep.subr.bf16.mxu0 0
        %1304 = vmatpush2.bf16.msra.mxu0 0
        %1305 = vmatprep.subr.bf16.mxu0 0
        %1306 = vmatpush2.bf16.msra.mxu0 0
        %1307 = vmatprep.mubr.bf16.mxu0 0
        %1308 = vmatmul.mubr.bf16.gmra.mxu0 %v1273
        %v1309 = vpop.f32.mrf.mxu0
        %v1310 = vadd.f32 0.0, %v1309
        %v1311 = vpop.f32.mrf.mxu0
        %v1312 = vpop.f32.mrf.mxu0
        %v1313 = vadd.f32 0.0, %v1312
        %v1314 = vpop.f32.mrf.mxu0
        %1315 = vdwg.mxu0
        %1316 = vrot.lane.b32.xlu0 %v460, 64
        %v1317 = vpop.permute.xlu0 %1316
        %v1320 = vsel %vm896, %v1078, 0
        %1322 = vmatprep.subr.bf16.mxu0 0
        %1323 = vmatpush1.bf16.msra.mxu0 0
        %1324 = vmatprep.subr.bf16.mxu0 0
        %1325 = vmatpush1.bf16.msra.mxu0 0
        %1326 = vmatprep.subr.bf16.mxu0 0
        %1327 = vmatpush1.bf16.msra.mxu0 0
        %1328 = vmatprep.subr.bf16.mxu0 0
        %1329 = vmatpush1.bf16.msra.mxu0 0
        %1330 = vmatprep.subr.bf16.mxu0 0
        %1331 = vmatpush1.bf16.msra.mxu0 0
        %1332 = vmatprep.subr.bf16.mxu0 0
        %1333 = vmatpush1.bf16.msra.mxu0 0
        %1334 = vmatprep.subr.bf16.mxu0 0
        %1335 = vmatpush1.bf16.msra.mxu0 0
        %1336 = vmatprep.subr.bf16.mxu0 0
        %1337 = vmatpush1.bf16.msra.mxu0 %v1317
        %1338 = vmatprep.subr.bf16.mxu0 0
        %1339 = vmatpush2.bf16.msra.mxu0 0
        %1340 = vmatprep.subr.bf16.mxu0 0
        %1341 = vmatpush2.bf16.msra.mxu0 0
        %1342 = vmatprep.subr.bf16.mxu0 0
        %1343 = vmatpush2.bf16.msra.mxu0 0
        %1344 = vmatprep.subr.bf16.mxu0 0
        %1345 = vmatpush2.bf16.msra.mxu0 0
        %1346 = vmatprep.subr.bf16.mxu0 0
        %1347 = vmatpush2.bf16.msra.mxu0 0
        %1348 = vmatprep.subr.bf16.mxu0 0
        %1349 = vmatpush2.bf16.msra.mxu0 0
        %1350 = vmatprep.subr.bf16.mxu0 0
        %1351 = vmatpush2.bf16.msra.mxu0 0
        %1352 = vmatprep.subr.bf16.mxu0 0
        %1353 = vmatpush2.bf16.msra.mxu0 0
        %1354 = vmatprep.mubr.bf16.mxu0 0
        %1355 = vmatmul.mubr.bf16.gmra.mxu0 %v1320
        %v1356 = vpop.f32.mrf.mxu0
        %v1357 = vadd.f32 0.0, %v1356
        %v1358 = vpop.f32.mrf.mxu0
        %v1359 = vpop.f32.mrf.mxu0
        %v1360 = vadd.f32 0.0, %v1359
        %v1361 = vpop.f32.mrf.mxu0
        %1362 = vdwg.mxu0
        %1363 = vrot.lane.b32.xlu0 %v461, 64
        %v1364 = vpop.permute.xlu0 %1363
        %v1367 = vsel %vm896, %v1079, 0
        %1369 = vmatprep.subr.bf16.mxu0 0
        %1370 = vmatpush1.bf16.msra.mxu0 0
        %1371 = vmatprep.subr.bf16.mxu0 0
        %1372 = vmatpush1.bf16.msra.mxu0 0
        %1373 = vmatprep.subr.bf16.mxu0 0
        %1374 = vmatpush1.bf16.msra.mxu0 0
        %1375 = vmatprep.subr.bf16.mxu0 0
        %1376 = vmatpush1.bf16.msra.mxu0 0
        %1377 = vmatprep.subr.bf16.mxu0 0
        %1378 = vmatpush1.bf16.msra.mxu0 0
        %1379 = vmatprep.subr.bf16.mxu0 0
        %1380 = vmatpush1.bf16.msra.mxu0 0
        %1381 = vmatprep.subr.bf16.mxu0 0
        %1382 = vmatpush1.bf16.msra.mxu0 0
        %1383 = vmatprep.subr.bf16.mxu0 0
        %1384 = vmatpush1.bf16.msra.mxu0 %v1364
        %1385 = vmatprep.subr.bf16.mxu0 0
        %1386 = vmatpush2.bf16.msra.mxu0 0
        %1387 = vmatprep.subr.bf16.mxu0 0
        %1388 = vmatpush2.bf16.msra.mxu0 0
        %1389 = vmatprep.subr.bf16.mxu0 0
        %1390 = vmatpush2.bf16.msra.mxu0 0
        %1391 = vmatprep.subr.bf16.mxu0 0
        %1392 = vmatpush2.bf16.msra.mxu0 0
        %1393 = vmatprep.subr.bf16.mxu0 0
        %1394 = vmatpush2.bf16.msra.mxu0 0
        %1395 = vmatprep.subr.bf16.mxu0 0
        %1396 = vmatpush2.bf16.msra.mxu0 0
        %1397 = vmatprep.subr.bf16.mxu0 0
        %1398 = vmatpush2.bf16.msra.mxu0 0
        %1399 = vmatprep.subr.bf16.mxu0 0
        %1400 = vmatpush2.bf16.msra.mxu0 0
        %1401 = vmatprep.mubr.bf16.mxu0 0
        %1402 = vmatmul.mubr.bf16.gmra.mxu0 %v1367
        %v1403 = vpop.f32.mrf.mxu0
        %v1404 = vadd.f32 0.0, %v1403
        %v1405 = vpop.f32.mrf.mxu0
        %v1406 = vpop.f32.mrf.mxu0
        %v1407 = vadd.f32 0.0, %v1406
        %v1408 = vpop.f32.mrf.mxu0
        %1409 = vdwg.mxu0
        %1410 = vrot.lane.b32.xlu0 %v462, 64
        %v1411 = vpop.permute.xlu0 %1410
        %v1414 = vsel %vm896, %v1080, 0
        %1416 = vmatprep.subr.bf16.mxu0 0
        %1417 = vmatpush1.bf16.msra.mxu0 0
        %1418 = vmatprep.subr.bf16.mxu0 0
        %1419 = vmatpush1.bf16.msra.mxu0 0
        %1420 = vmatprep.subr.bf16.mxu0 0
        %1421 = vmatpush1.bf16.msra.mxu0 0
        %1422 = vmatprep.subr.bf16.mxu0 0
        %1423 = vmatpush1.bf16.msra.mxu0 0
        %1424 = vmatprep.subr.bf16.mxu0 0
        %1425 = vmatpush1.bf16.msra.mxu0 0
        %1426 = vmatprep.subr.bf16.mxu0 0
        %1427 = vmatpush1.bf16.msra.mxu0 0
        %1428 = vmatprep.subr.bf16.mxu0 0
        %1429 = vmatpush1.bf16.msra.mxu0 0
        %1430 = vmatprep.subr.bf16.mxu0 0
        %1431 = vmatpush1.bf16.msra.mxu0 %v1411
        %1432 = vmatprep.subr.bf16.mxu0 0
        %1433 = vmatpush2.bf16.msra.mxu0 0
        %1434 = vmatprep.subr.bf16.mxu0 0
        %1435 = vmatpush2.bf16.msra.mxu0 0
        %1436 = vmatprep.subr.bf16.mxu0 0
        %1437 = vmatpush2.bf16.msra.mxu0 0
        %1438 = vmatprep.subr.bf16.mxu0 0
        %1439 = vmatpush2.bf16.msra.mxu0 0
        %1440 = vmatprep.subr.bf16.mxu0 0
        %1441 = vmatpush2.bf16.msra.mxu0 0
        %1442 = vmatprep.subr.bf16.mxu0 0
        %1443 = vmatpush2.bf16.msra.mxu0 0
        %1444 = vmatprep.subr.bf16.mxu0 0
        %1445 = vmatpush2.bf16.msra.mxu0 0
        %1446 = vmatprep.subr.bf16.mxu0 0
        %1447 = vmatpush2.bf16.msra.mxu0 0
        %1448 = vmatprep.mubr.bf16.mxu0 0
        %1449 = vmatmul.mubr.bf16.gmra.mxu0 %v1414
        %v1450 = vpop.f32.mrf.mxu0
        %v1451 = vadd.f32 0.0, %v1450
        %v1452 = vpop.f32.mrf.mxu0
        %v1453 = vpop.f32.mrf.mxu0
        %v1454 = vadd.f32 0.0, %v1453
        %v1455 = vpop.f32.mrf.mxu0
        %1456 = vdwg.mxu0
        %v1457 = vpack.c.bf16 %v1125, %v1122
        %v1458 = vpack.c.bf16 %v1172, %v1169
        %v1459 = vpack.c.bf16 %v1219, %v1216
        %v1460 = vpack.c.bf16 %v1266, %v1263
        %v1461 = vpack.c.bf16 %v1313, %v1310
        %v1462 = vpack.c.bf16 %v1360, %v1357
        %v1463 = vpack.c.bf16 %v1407, %v1404
        %v1464 = vpack.c.bf16 %v1454, %v1451
        %v1473 = vunpack.c.l.b16 %v1457
        %v1474 = vunpack.c.h.b16 %v1457
        %v1475 = vunpack.c.l.b16 %v1458
        %v1476 = vunpack.c.h.b16 %v1458
        %v1477 = vunpack.c.l.b16 %v1459
        %v1478 = vunpack.c.h.b16 %v1459
        %v1479 = vunpack.c.l.b16 %v1460
        %v1480 = vunpack.c.h.b16 %v1460
        %v1481 = vunpack.c.l.b16 %v1461
        %v1482 = vunpack.c.h.b16 %v1461
        %v1483 = vunpack.c.l.b16 %v1462
        %v1484 = vunpack.c.h.b16 %v1462
        %v1485 = vunpack.c.l.b16 %v1463
        %v1486 = vunpack.c.h.b16 %v1463
        %v1487 = vunpack.c.l.b16 %v1464
        %v1488 = vunpack.c.h.b16 %v1464
        %v1489 = vpack.c.b16 %v1473, %v1473
        %v1490 = vpack.c.b16 %v1474, %v1474
        %v1491 = vpack.c.b16 %v1475, %v1475
        %v1492 = vpack.c.b16 %v1476, %v1476
        %v1493 = vpack.c.b16 %v1477, %v1477
        %v1494 = vpack.c.b16 %v1478, %v1478
        %v1495 = vpack.c.b16 %v1479, %v1479
        %v1496 = vpack.c.b16 %v1480, %v1480
        %v1497 = vpack.c.b16 %v1481, %v1481
        %v1498 = vpack.c.b16 %v1482, %v1482
        %v1499 = vpack.c.b16 %v1483, %v1483
        %v1500 = vpack.c.b16 %v1484, %v1484
        %v1501 = vpack.c.b16 %v1485, %v1485
        %v1502 = vpack.c.b16 %v1486, %v1486
        %v1503 = vpack.c.b16 %v1487, %v1487
        %v1504 = vpack.c.b16 %v1488, %v1488
        %vm1521 = vcmask 60416
        %1522 = vst.msk [vmem:[#allocation2] sm:$0xf] %vm1521, %v1489
        %1523 = vst.msk [vmem:[#allocation2 + $0x4] sm:$0xf] %vm1521, %v1490
        %1524 = vst.msk [vmem:[#allocation2 + $0x8] sm:$0xf] %vm1521, %v1491
        %1525 = vst.msk [vmem:[#allocation2 + $0xc] sm:$0xf] %vm1521, %v1492
        %1526 = vst.msk [vmem:[#allocation2 + $0x10] sm:$0xf] %vm1521, %v1493
        %1527 = vst.msk [vmem:[#allocation2 + $0x14] sm:$0xf] %vm1521, %v1494
        %1528 = vst.msk [vmem:[#allocation2 + $0x18] sm:$0xf] %vm1521, %v1495
        %1529 = vst.msk [vmem:[#allocation2 + $0x1c] sm:$0xf] %vm1521, %v1496
        %1530 = vst.msk [vmem:[#allocation2 + $0x20] sm:$0xf] %vm1521, %v1497
        %1531 = vst.msk [vmem:[#allocation2 + $0x24] sm:$0xf] %vm1521, %v1498
        %1532 = vst.msk [vmem:[#allocation2 + $0x28] sm:$0xf] %vm1521, %v1499
        %1533 = vst.msk [vmem:[#allocation2 + $0x2c] sm:$0xf] %vm1521, %v1500
        %1534 = vst.msk [vmem:[#allocation2 + $0x30] sm:$0xf] %vm1521, %v1501
        %1535 = vst.msk [vmem:[#allocation2 + $0x34] sm:$0xf] %vm1521, %v1502
        %1536 = vst.msk [vmem:[#allocation2 + $0x38] sm:$0xf] %vm1521, %v1503
        %1537 = vst.msk [vmem:[#allocation2 + $0x3c] sm:$0xf] %vm1521, %v1504
        %1538 = vrot.lane.b32.xlu0 %v455, 120
        %v1539 = vpop.permute.xlu0 %1538
        %1540 = vrot.lane.b32.xlu0 %v455, 88
        %v1541 = vpop.permute.xlu0 %1540
        %v1543 = vsel %vm466, %v1539, 0
        %v1546 = vsel %vm466, %v1541, 0
        %1548 = vmatprep.subr.bf16.mxu0 0
        %1549 = vmatpush1.bf16.xpose.msra.mxu0 0
        %1550 = vmatprep.subr.bf16.mxu0 0
        %1551 = vmatpush1.bf16.xpose.msra.mxu0 0
        %1552 = vmatprep.subr.bf16.mxu0 0
        %1553 = vmatpush1.bf16.xpose.msra.mxu0 0
        %1554 = vmatprep.subr.bf16.mxu0 0
        %1555 = vmatpush1.bf16.xpose.msra.mxu0 0
        %1556 = vmatprep.subr.bf16.mxu0 0
        %1557 = vmatpush1.bf16.xpose.msra.mxu0 0
        %1558 = vmatprep.subr.bf16.mxu0 0
        %1559 = vmatpush1.bf16.xpose.msra.mxu0 0
        %1560 = vmatprep.subr.bf16.mxu0 0
        %1561 = vmatpush1.bf16.xpose.msra.mxu0 0
        %1562 = vmatprep.subr.bf16.mxu0 0
        %1563 = vmatpush1.bf16.xpose.msra.mxu0 %v1546
        %1564 = vmatprep.subr.bf16.mxu0 0
        %1565 = vmatpush2.bf16.xpose.msra.mxu0 0
        %1566 = vmatprep.subr.bf16.mxu0 0
        %1567 = vmatpush2.bf16.xpose.msra.mxu0 0
        %1568 = vmatprep.subr.bf16.mxu0 0
        %1569 = vmatpush2.bf16.xpose.msra.mxu0 0
        %1570 = vmatprep.subr.bf16.mxu0 0
        %1571 = vmatpush2.bf16.xpose.msra.mxu0 0
        %1572 = vmatprep.subr.bf16.mxu0 0
        %1573 = vmatpush2.bf16.xpose.msra.mxu0 0
        %1574 = vmatprep.subr.bf16.mxu0 0
        %1575 = vmatpush2.bf16.xpose.msra.mxu0 0
        %1576 = vmatprep.subr.bf16.mxu0 0
        %1577 = vmatpush2.bf16.xpose.msra.mxu0 0
        %1578 = vmatprep.subr.bf16.mxu0 0
        %1579 = vmatpush2.bf16.xpose.msra.mxu0 0
        %1580 = vmatprep.mubr.bf16.mxu0 0
        %1581 = vmatmul.mubr.bf16.gmra.mxu0 %v1543
        %v1582 = vpop.f32.mrf.mxu0
        %v1583 = vadd.f32 0.0, %v1582
        %v1584 = vpop.f32.mrf.mxu0
        %v1585 = vpop.f32.mrf.mxu0
        %v1586 = vadd.f32 0.0, %v1585
        %v1587 = vpop.f32.mrf.mxu0
        %1588 = vdwg.mxu0
        %1589 = vrot.lane.b32.xlu0 %v456, 120
        %v1590 = vpop.permute.xlu0 %1589
        %1591 = vrot.lane.b32.xlu0 %v456, 88
        %v1592 = vpop.permute.xlu0 %1591
        %v1594 = vsel %vm466, %v1590, 0
        %v1597 = vsel %vm466, %v1592, 0
        %1599 = vmatprep.subr.bf16.mxu0 0
        %1600 = vmatpush1.bf16.xpose.msra.mxu0 0
        %1601 = vmatprep.subr.bf16.mxu0 0
        %1602 = vmatpush1.bf16.xpose.msra.mxu0 0
        %1603 = vmatprep.subr.bf16.mxu0 0
        %1604 = vmatpush1.bf16.xpose.msra.mxu0 0
        %1605 = vmatprep.subr.bf16.mxu0 0
        %1606 = vmatpush1.bf16.xpose.msra.mxu0 0
        %1607 = vmatprep.subr.bf16.mxu0 0
        %1608 = vmatpush1.bf16.xpose.msra.mxu0 0
        %1609 = vmatprep.subr.bf16.mxu0 0
        %1610 = vmatpush1.bf16.xpose.msra.mxu0 0
        %1611 = vmatprep.subr.bf16.mxu0 0
        %1612 = vmatpush1.bf16.xpose.msra.mxu0 0
        %1613 = vmatprep.subr.bf16.mxu0 0
        %1614 = vmatpush1.bf16.xpose.msra.mxu0 %v1597
        %1615 = vmatprep.subr.bf16.mxu0 0
        %1616 = vmatpush2.bf16.xpose.msra.mxu0 0
        %1617 = vmatprep.subr.bf16.mxu0 0
        %1618 = vmatpush2.bf16.xpose.msra.mxu0 0
        %1619 = vmatprep.subr.bf16.mxu0 0
        %1620 = vmatpush2.bf16.xpose.msra.mxu0 0
        %1621 = vmatprep.subr.bf16.mxu0 0
        %1622 = vmatpush2.bf16.xpose.msra.mxu0 0
        %1623 = vmatprep.subr.bf16.mxu0 0
        %1624 = vmatpush2.bf16.xpose.msra.mxu0 0
        %1625 = vmatprep.subr.bf16.mxu0 0
        %1626 = vmatpush2.bf16.xpose.msra.mxu0 0
        %1627 = vmatprep.subr.bf16.mxu0 0
        %1628 = vmatpush2.bf16.xpose.msra.mxu0 0
        %1629 = vmatprep.subr.bf16.mxu0 0
        %1630 = vmatpush2.bf16.xpose.msra.mxu0 0
        %1631 = vmatprep.mubr.bf16.mxu0 0
        %1632 = vmatmul.mubr.bf16.gmra.mxu0 %v1594
        %v1633 = vpop.f32.mrf.mxu0
        %v1634 = vadd.f32 0.0, %v1633
        %v1635 = vpop.f32.mrf.mxu0
        %v1636 = vpop.f32.mrf.mxu0
        %v1637 = vadd.f32 0.0, %v1636
        %v1638 = vpop.f32.mrf.mxu0
        %1639 = vdwg.mxu0
        %1640 = vrot.lane.b32.xlu0 %v457, 120
        %v1641 = vpop.permute.xlu0 %1640
        %1642 = vrot.lane.b32.xlu0 %v457, 88
        %v1643 = vpop.permute.xlu0 %1642
        %v1645 = vsel %vm466, %v1641, 0
        %v1648 = vsel %vm466, %v1643, 0
        %1650 = vmatprep.subr.bf16.mxu0 0
        %1651 = vmatpush1.bf16.xpose.msra.mxu0 0
        %1652 = vmatprep.subr.bf16.mxu0 0
        %1653 = vmatpush1.bf16.xpose.msra.mxu0 0
        %1654 = vmatprep.subr.bf16.mxu0 0
        %1655 = vmatpush1.bf16.xpose.msra.mxu0 0
        %1656 = vmatprep.subr.bf16.mxu0 0
        %1657 = vmatpush1.bf16.xpose.msra.mxu0 0
        %1658 = vmatprep.subr.bf16.mxu0 0
        %1659 = vmatpush1.bf16.xpose.msra.mxu0 0
        %1660 = vmatprep.subr.bf16.mxu0 0
        %1661 = vmatpush1.bf16.xpose.msra.mxu0 0
        %1662 = vmatprep.subr.bf16.mxu0 0
        %1663 = vmatpush1.bf16.xpose.msra.mxu0 0
        %1664 = vmatprep.subr.bf16.mxu0 0
        %1665 = vmatpush1.bf16.xpose.msra.mxu0 %v1648
        %1666 = vmatprep.subr.bf16.mxu0 0
        %1667 = vmatpush2.bf16.xpose.msra.mxu0 0
        %1668 = vmatprep.subr.bf16.mxu0 0
        %1669 = vmatpush2.bf16.xpose.msra.mxu0 0
        %1670 = vmatprep.subr.bf16.mxu0 0
        %1671 = vmatpush2.bf16.xpose.msra.mxu0 0
        %1672 = vmatprep.subr.bf16.mxu0 0
        %1673 = vmatpush2.bf16.xpose.msra.mxu0 0
        %1674 = vmatprep.subr.bf16.mxu0 0
        %1675 = vmatpush2.bf16.xpose.msra.mxu0 0
        %1676 = vmatprep.subr.bf16.mxu0 0
        %1677 = vmatpush2.bf16.xpose.msra.mxu0 0
        %1678 = vmatprep.subr.bf16.mxu0 0
        %1679 = vmatpush2.bf16.xpose.msra.mxu0 0
        %1680 = vmatprep.subr.bf16.mxu0 0
        %1681 = vmatpush2.bf16.xpose.msra.mxu0 0
        %1682 = vmatprep.mubr.bf16.mxu0 0
        %1683 = vmatmul.mubr.bf16.gmra.mxu0 %v1645
        %v1684 = vpop.f32.mrf.mxu0
        %v1685 = vadd.f32 0.0, %v1684
        %v1686 = vpop.f32.mrf.mxu0
        %v1687 = vpop.f32.mrf.mxu0
        %v1688 = vadd.f32 0.0, %v1687
        %v1689 = vpop.f32.mrf.mxu0
        %1690 = vdwg.mxu0
        %1691 = vrot.lane.b32.xlu0 %v458, 120
        %v1692 = vpop.permute.xlu0 %1691
        %1693 = vrot.lane.b32.xlu0 %v458, 88
        %v1694 = vpop.permute.xlu0 %1693
        %v1696 = vsel %vm466, %v1692, 0
        %v1699 = vsel %vm466, %v1694, 0
        %1701 = vmatprep.subr.bf16.mxu0 0
        %1702 = vmatpush1.bf16.xpose.msra.mxu0 0
        %1703 = vmatprep.subr.bf16.mxu0 0
        %1704 = vmatpush1.bf16.xpose.msra.mxu0 0
        %1705 = vmatprep.subr.bf16.mxu0 0
        %1706 = vmatpush1.bf16.xpose.msra.mxu0 0
        %1707 = vmatprep.subr.bf16.mxu0 0
        %1708 = vmatpush1.bf16.xpose.msra.mxu0 0
        %1709 = vmatprep.subr.bf16.mxu0 0
        %1710 = vmatpush1.bf16.xpose.msra.mxu0 0
        %1711 = vmatprep.subr.bf16.mxu0 0
        %1712 = vmatpush1.bf16.xpose.msra.mxu0 0
        %1713 = vmatprep.subr.bf16.mxu0 0
        %1714 = vmatpush1.bf16.xpose.msra.mxu0 0
        %1715 = vmatprep.subr.bf16.mxu0 0
        %1716 = vmatpush1.bf16.xpose.msra.mxu0 %v1699
        %1717 = vmatprep.subr.bf16.mxu0 0
        %1718 = vmatpush2.bf16.xpose.msra.mxu0 0
        %1719 = vmatprep.subr.bf16.mxu0 0
        %1720 = vmatpush2.bf16.xpose.msra.mxu0 0
        %1721 = vmatprep.subr.bf16.mxu0 0
        %1722 = vmatpush2.bf16.xpose.msra.mxu0 0
        %1723 = vmatprep.subr.bf16.mxu0 0
        %1724 = vmatpush2.bf16.xpose.msra.mxu0 0
        %1725 = vmatprep.subr.bf16.mxu0 0
        %1726 = vmatpush2.bf16.xpose.msra.mxu0 0
        %1727 = vmatprep.subr.bf16.mxu0 0
        %1728 = vmatpush2.bf16.xpose.msra.mxu0 0
        %1729 = vmatprep.subr.bf16.mxu0 0
        %1730 = vmatpush2.bf16.xpose.msra.mxu0 0
        %1731 = vmatprep.subr.bf16.mxu0 0
        %1732 = vmatpush2.bf16.xpose.msra.mxu0 0
        %1733 = vmatprep.mubr.bf16.mxu0 0
        %1734 = vmatmul.mubr.bf16.gmra.mxu0 %v1696
        %v1735 = vpop.f32.mrf.mxu0
        %v1736 = vadd.f32 0.0, %v1735
        %v1737 = vpop.f32.mrf.mxu0
        %v1738 = vpop.f32.mrf.mxu0
        %v1739 = vadd.f32 0.0, %v1738
        %v1740 = vpop.f32.mrf.mxu0
        %1741 = vdwg.mxu0
        %1742 = vrot.lane.b32.xlu0 %v459, 120
        %v1743 = vpop.permute.xlu0 %1742
        %1744 = vrot.lane.b32.xlu0 %v459, 88
        %v1745 = vpop.permute.xlu0 %1744
        %v1747 = vsel %vm466, %v1743, 0
        %v1750 = vsel %vm466, %v1745, 0
        %1752 = vmatprep.subr.bf16.mxu0 0
        %1753 = vmatpush1.bf16.xpose.msra.mxu0 0
        %1754 = vmatprep.subr.bf16.mxu0 0
        %1755 = vmatpush1.bf16.xpose.msra.mxu0 0
        %1756 = vmatprep.subr.bf16.mxu0 0
        %1757 = vmatpush1.bf16.xpose.msra.mxu0 0
        %1758 = vmatprep.subr.bf16.mxu0 0
        %1759 = vmatpush1.bf16.xpose.msra.mxu0 0
        %1760 = vmatprep.subr.bf16.mxu0 0
        %1761 = vmatpush1.bf16.xpose.msra.mxu0 0
        %1762 = vmatprep.subr.bf16.mxu0 0
        %1763 = vmatpush1.bf16.xpose.msra.mxu0 0
        %1764 = vmatprep.subr.bf16.mxu0 0
        %1765 = vmatpush1.bf16.xpose.msra.mxu0 0
        %1766 = vmatprep.subr.bf16.mxu0 0
        %1767 = vmatpush1.bf16.xpose.msra.mxu0 %v1750
        %1768 = vmatprep.subr.bf16.mxu0 0
        %1769 = vmatpush2.bf16.xpose.msra.mxu0 0
        %1770 = vmatprep.subr.bf16.mxu0 0
        %1771 = vmatpush2.bf16.xpose.msra.mxu0 0
        %1772 = vmatprep.subr.bf16.mxu0 0
        %1773 = vmatpush2.bf16.xpose.msra.mxu0 0
        %1774 = vmatprep.subr.bf16.mxu0 0
        %1775 = vmatpush2.bf16.xpose.msra.mxu0 0
        %1776 = vmatprep.subr.bf16.mxu0 0
        %1777 = vmatpush2.bf16.xpose.msra.mxu0 0
        %1778 = vmatprep.subr.bf16.mxu0 0
        %1779 = vmatpush2.bf16.xpose.msra.mxu0 0
        %1780 = vmatprep.subr.bf16.mxu0 0
        %1781 = vmatpush2.bf16.xpose.msra.mxu0 0
        %1782 = vmatprep.subr.bf16.mxu0 0
        %1783 = vmatpush2.bf16.xpose.msra.mxu0 0
        %1784 = vmatprep.mubr.bf16.mxu0 0
        %1785 = vmatmul.mubr.bf16.gmra.mxu0 %v1747
        %v1786 = vpop.f32.mrf.mxu0
        %v1787 = vadd.f32 0.0, %v1786
        %v1788 = vpop.f32.mrf.mxu0
        %v1789 = vpop.f32.mrf.mxu0
        %v1790 = vadd.f32 0.0, %v1789
        %v1791 = vpop.f32.mrf.mxu0
        %1792 = vdwg.mxu0
        %1793 = vrot.lane.b32.xlu0 %v460, 120
        %v1794 = vpop.permute.xlu0 %1793
        %1795 = vrot.lane.b32.xlu0 %v460, 88
        %v1796 = vpop.permute.xlu0 %1795
        %v1798 = vsel %vm466, %v1794, 0
        %v1801 = vsel %vm466, %v1796, 0
        %1803 = vmatprep.subr.bf16.mxu0 0
        %1804 = vmatpush1.bf16.xpose.msra.mxu0 0
        %1805 = vmatprep.subr.bf16.mxu0 0
        %1806 = vmatpush1.bf16.xpose.msra.mxu0 0
        %1807 = vmatprep.subr.bf16.mxu0 0
        %1808 = vmatpush1.bf16.xpose.msra.mxu0 0
        %1809 = vmatprep.subr.bf16.mxu0 0
        %1810 = vmatpush1.bf16.xpose.msra.mxu0 0
        %1811 = vmatprep.subr.bf16.mxu0 0
        %1812 = vmatpush1.bf16.xpose.msra.mxu0 0
        %1813 = vmatprep.subr.bf16.mxu0 0
        %1814 = vmatpush1.bf16.xpose.msra.mxu0 0
        %1815 = vmatprep.subr.bf16.mxu0 0
        %1816 = vmatpush1.bf16.xpose.msra.mxu0 0
        %1817 = vmatprep.subr.bf16.mxu0 0
        %1818 = vmatpush1.bf16.xpose.msra.mxu0 %v1801
        %1819 = vmatprep.subr.bf16.mxu0 0
        %1820 = vmatpush2.bf16.xpose.msra.mxu0 0
        %1821 = vmatprep.subr.bf16.mxu0 0
        %1822 = vmatpush2.bf16.xpose.msra.mxu0 0
        %1823 = vmatprep.subr.bf16.mxu0 0
        %1824 = vmatpush2.bf16.xpose.msra.mxu0 0
        %1825 = vmatprep.subr.bf16.mxu0 0
        %1826 = vmatpush2.bf16.xpose.msra.mxu0 0
        %1827 = vmatprep.subr.bf16.mxu0 0
        %1828 = vmatpush2.bf16.xpose.msra.mxu0 0
        %1829 = vmatprep.subr.bf16.mxu0 0
        %1830 = vmatpush2.bf16.xpose.msra.mxu0 0
        %1831 = vmatprep.subr.bf16.mxu0 0
        %1832 = vmatpush2.bf16.xpose.msra.mxu0 0
        %1833 = vmatprep.subr.bf16.mxu0 0
        %1834 = vmatpush2.bf16.xpose.msra.mxu0 0
        %1835 = vmatprep.mubr.bf16.mxu0 0
        %1836 = vmatmul.mubr.bf16.gmra.mxu0 %v1798
        %v1837 = vpop.f32.mrf.mxu0
        %v1838 = vadd.f32 0.0, %v1837
        %v1839 = vpop.f32.mrf.mxu0
        %v1840 = vpop.f32.mrf.mxu0
        %v1841 = vadd.f32 0.0, %v1840
        %v1842 = vpop.f32.mrf.mxu0
        %1843 = vdwg.mxu0
        %1844 = vrot.lane.b32.xlu0 %v461, 120
        %v1845 = vpop.permute.xlu0 %1844
        %1846 = vrot.lane.b32.xlu0 %v461, 88
        %v1847 = vpop.permute.xlu0 %1846
        %v1849 = vsel %vm466, %v1845, 0
        %v1852 = vsel %vm466, %v1847, 0
        %1854 = vmatprep.subr.bf16.mxu0 0
        %1855 = vmatpush1.bf16.xpose.msra.mxu0 0
        %1856 = vmatprep.subr.bf16.mxu0 0
        %1857 = vmatpush1.bf16.xpose.msra.mxu0 0
        %1858 = vmatprep.subr.bf16.mxu0 0
        %1859 = vmatpush1.bf16.xpose.msra.mxu0 0
        %1860 = vmatprep.subr.bf16.mxu0 0
        %1861 = vmatpush1.bf16.xpose.msra.mxu0 0
        %1862 = vmatprep.subr.bf16.mxu0 0
        %1863 = vmatpush1.bf16.xpose.msra.mxu0 0
        %1864 = vmatprep.subr.bf16.mxu0 0
        %1865 = vmatpush1.bf16.xpose.msra.mxu0 0
        %1866 = vmatprep.subr.bf16.mxu0 0
        %1867 = vmatpush1.bf16.xpose.msra.mxu0 0
        %1868 = vmatprep.subr.bf16.mxu0 0
        %1869 = vmatpush1.bf16.xpose.msra.mxu0 %v1852
        %1870 = vmatprep.subr.bf16.mxu0 0
        %1871 = vmatpush2.bf16.xpose.msra.mxu0 0
        %1872 = vmatprep.subr.bf16.mxu0 0
        %1873 = vmatpush2.bf16.xpose.msra.mxu0 0
        %1874 = vmatprep.subr.bf16.mxu0 0
        %1875 = vmatpush2.bf16.xpose.msra.mxu0 0
        %1876 = vmatprep.subr.bf16.mxu0 0
        %1877 = vmatpush2.bf16.xpose.msra.mxu0 0
        %1878 = vmatprep.subr.bf16.mxu0 0
        %1879 = vmatpush2.bf16.xpose.msra.mxu0 0
        %1880 = vmatprep.subr.bf16.mxu0 0
        %1881 = vmatpush2.bf16.xpose.msra.mxu0 0
        %1882 = vmatprep.subr.bf16.mxu0 0
        %1883 = vmatpush2.bf16.xpose.msra.mxu0 0
        %1884 = vmatprep.subr.bf16.mxu0 0
        %1885 = vmatpush2.bf16.xpose.msra.mxu0 0
        %1886 = vmatprep.mubr.bf16.mxu0 0
        %1887 = vmatmul.mubr.bf16.gmra.mxu0 %v1849
        %v1888 = vpop.f32.mrf.mxu0
        %v1889 = vadd.f32 0.0, %v1888
        %v1890 = vpop.f32.mrf.mxu0
        %v1891 = vpop.f32.mrf.mxu0
        %v1892 = vadd.f32 0.0, %v1891
        %v1893 = vpop.f32.mrf.mxu0
        %1894 = vdwg.mxu0
        %1895 = vrot.lane.b32.xlu0 %v462, 120
        %v1896 = vpop.permute.xlu0 %1895
        %1897 = vrot.lane.b32.xlu0 %v462, 88
        %v1898 = vpop.permute.xlu0 %1897
        %v1900 = vsel %vm466, %v1896, 0
        %v1903 = vsel %vm466, %v1898, 0
        %1905 = vmatprep.subr.bf16.mxu0 0
        %1906 = vmatpush1.bf16.xpose.msra.mxu0 0
        %1907 = vmatprep.subr.bf16.mxu0 0
        %1908 = vmatpush1.bf16.xpose.msra.mxu0 0
        %1909 = vmatprep.subr.bf16.mxu0 0
        %1910 = vmatpush1.bf16.xpose.msra.mxu0 0
        %1911 = vmatprep.subr.bf16.mxu0 0
        %1912 = vmatpush1.bf16.xpose.msra.mxu0 0
        %1913 = vmatprep.subr.bf16.mxu0 0
        %1914 = vmatpush1.bf16.xpose.msra.mxu0 0
        %1915 = vmatprep.subr.bf16.mxu0 0
        %1916 = vmatpush1.bf16.xpose.msra.mxu0 0
        %1917 = vmatprep.subr.bf16.mxu0 0
        %1918 = vmatpush1.bf16.xpose.msra.mxu0 0
        %1919 = vmatprep.subr.bf16.mxu0 0
        %1920 = vmatpush1.bf16.xpose.msra.mxu0 %v1903
        %1921 = vmatprep.subr.bf16.mxu0 0
        %1922 = vmatpush2.bf16.xpose.msra.mxu0 0
        %1923 = vmatprep.subr.bf16.mxu0 0
        %1924 = vmatpush2.bf16.xpose.msra.mxu0 0
        %1925 = vmatprep.subr.bf16.mxu0 0
        %1926 = vmatpush2.bf16.xpose.msra.mxu0 0
        %1927 = vmatprep.subr.bf16.mxu0 0
        %1928 = vmatpush2.bf16.xpose.msra.mxu0 0
        %1929 = vmatprep.subr.bf16.mxu0 0
        %1930 = vmatpush2.bf16.xpose.msra.mxu0 0
        %1931 = vmatprep.subr.bf16.mxu0 0
        %1932 = vmatpush2.bf16.xpose.msra.mxu0 0
        %1933 = vmatprep.subr.bf16.mxu0 0
        %1934 = vmatpush2.bf16.xpose.msra.mxu0 0
        %1935 = vmatprep.subr.bf16.mxu0 0
        %1936 = vmatpush2.bf16.xpose.msra.mxu0 0
        %1937 = vmatprep.mubr.bf16.mxu0 0
        %1938 = vmatmul.mubr.bf16.gmra.mxu0 %v1900
        %v1939 = vpop.f32.mrf.mxu0
        %v1940 = vadd.f32 0.0, %v1939
        %v1941 = vpop.f32.mrf.mxu0
        %v1942 = vpop.f32.mrf.mxu0
        %v1943 = vadd.f32 0.0, %v1942
        %v1944 = vpop.f32.mrf.mxu0
        %1945 = vdwg.mxu0
        %s1946 = scalar_lea.vmem %s5, 32
        %v1947 = vld [vmem:[%s1946] sm:$0xf]
        %v1948 = vld [vmem:[%s1946 + $0x4] sm:$0xf]
        %v1949 = vld [vmem:[%s1946 + $0x8] sm:$0xf]
        %v1950 = vld [vmem:[%s1946 + $0xc] sm:$0xf]
        %v1951 = vld [vmem:[%s1946 + $0x10] sm:$0xf]
        %v1952 = vld [vmem:[%s1946 + $0x14] sm:$0xf]
        %v1953 = vld [vmem:[%s1946 + $0x18] sm:$0xf]
        %v1954 = vld [vmem:[%s1946 + $0x1c] sm:$0xf]
        %v1955 = vunpack.c.l.bf16 %v1947
        %v1956 = vunpack.c.l.bf16 %v1948
        %v1957 = vunpack.c.l.bf16 %v1949
        %v1958 = vunpack.c.l.bf16 %v1950
        %v1959 = vunpack.c.l.bf16 %v1951
        %v1960 = vunpack.c.l.bf16 %v1952
        %v1961 = vunpack.c.l.bf16 %v1953
        %v1962 = vunpack.c.l.bf16 %v1954
        %v1963 = vadd.f32 %v1583, %v1955
        %v1964 = vadd.f32 %v1586, %v1956
        %v1965 = vadd.f32 %v1634, %v1957
        %v1966 = vadd.f32 %v1637, %v1958
        %v1967 = vadd.f32 %v1685, %v1959
        %v1968 = vadd.f32 %v1688, %v1960
        %v1969 = vadd.f32 %v1736, %v1961
        %v1970 = vadd.f32 %v1739, %v1962
        %v1971 = vadd.f32 %v1787, %v1955
        %v1972 = vadd.f32 %v1790, %v1956
        %v1973 = vadd.f32 %v1838, %v1957
        %v1974 = vadd.f32 %v1841, %v1958
        %v1975 = vadd.f32 %v1889, %v1959
        %v1976 = vadd.f32 %v1892, %v1960
        %v1977 = vadd.f32 %v1940, %v1961
        %v1978 = vadd.f32 %v1943, %v1962
        %v1979 = vsel %vm896, %v1963, -inf
        %1980 = vmax.xlane.f32.xlu0 %v1979
        %v1981 = vpop.xlane.xlu0 %1980
        %v1982 = vsel %vm896, %v1964, -inf
        %1983 = vmax.xlane.f32.xlu0 %v1982
        %v1984 = vpop.xlane.xlu0 %1983
        %v1985 = vsel %vm896, %v1965, -inf
        %1986 = vmax.xlane.f32.xlu0 %v1985
        %v1987 = vpop.xlane.xlu0 %1986
        %v1988 = vsel %vm896, %v1966, -inf
        %1989 = vmax.xlane.f32.xlu0 %v1988
        %v1990 = vpop.xlane.xlu0 %1989
        %v1991 = vsel %vm896, %v1967, -inf
        %1992 = vmax.xlane.f32.xlu0 %v1991
        %v1993 = vpop.xlane.xlu0 %1992
        %v1994 = vsel %vm896, %v1968, -inf
        %1995 = vmax.xlane.f32.xlu0 %v1994
        %v1996 = vpop.xlane.xlu0 %1995
        %v1997 = vsel %vm896, %v1969, -inf
        %1998 = vmax.xlane.f32.xlu0 %v1997
        %v1999 = vpop.xlane.xlu0 %1998
        %v2000 = vsel %vm896, %v1970, -inf
        %2001 = vmax.xlane.f32.xlu0 %v2000
        %v2002 = vpop.xlane.xlu0 %2001
        %v2003 = vsel %vm896, %v1971, -inf
        %2004 = vmax.xlane.f32.xlu0 %v2003
        %v2005 = vpop.xlane.xlu0 %2004
        %v2006 = vsel %vm896, %v1972, -inf
        %2007 = vmax.xlane.f32.xlu0 %v2006
        %v2008 = vpop.xlane.xlu0 %2007
        %v2009 = vsel %vm896, %v1973, -inf
        %2010 = vmax.xlane.f32.xlu0 %v2009
        %v2011 = vpop.xlane.xlu0 %2010
        %v2012 = vsel %vm896, %v1974, -inf
        %2013 = vmax.xlane.f32.xlu0 %v2012
        %v2014 = vpop.xlane.xlu0 %2013
        %v2015 = vsel %vm896, %v1975, -inf
        %2016 = vmax.xlane.f32.xlu0 %v2015
        %v2017 = vpop.xlane.xlu0 %2016
        %v2018 = vsel %vm896, %v1976, -inf
        %2019 = vmax.xlane.f32.xlu0 %v2018
        %v2020 = vpop.xlane.xlu0 %2019
        %v2021 = vsel %vm896, %v1977, -inf
        %2022 = vmax.xlane.f32.xlu0 %v2021
        %v2023 = vpop.xlane.xlu0 %2022
        %v2024 = vsel %vm896, %v1978, -inf
        %2025 = vmax.xlane.f32.xlu0 %v2024
        %v2026 = vpop.xlane.xlu0 %2025
        %v2027 = vsub.f32 %v1963, %v1981
        %v2028 = vsub.f32 %v1964, %v1984
        %v2029 = vsub.f32 %v1965, %v1987
        %v2030 = vsub.f32 %v1966, %v1990
        %v2031 = vsub.f32 %v1967, %v1993
        %v2032 = vsub.f32 %v1968, %v1996
        %v2033 = vsub.f32 %v1969, %v1999
        %v2034 = vsub.f32 %v1970, %v2002
        %v2035 = vsub.f32 %v1971, %v2005
        %v2036 = vsub.f32 %v1972, %v2008
        %v2037 = vsub.f32 %v1973, %v2011
        %v2038 = vsub.f32 %v1974, %v2014
        %v2039 = vsub.f32 %v1975, %v2017
        %v2040 = vsub.f32 %v1976, %v2020
        %v2041 = vsub.f32 %v1977, %v2023
        %v2042 = vsub.f32 %v1978, %v2026
        %v2043 = vmul.f32 %v2027, 1.442695
        %v2044 = vpow.pop %v2043
        %v2045 = vmul.f32 %v2028, 1.442695
        %v2046 = vpow.pop %v2045
        %v2047 = vmul.f32 %v2029, 1.442695
        %v2048 = vpow.pop %v2047
        %v2049 = vmul.f32 %v2030, 1.442695
        %v2050 = vpow.pop %v2049
        %v2051 = vmul.f32 %v2031, 1.442695
        %v2052 = vpow.pop %v2051
        %v2053 = vmul.f32 %v2032, 1.442695
        %v2054 = vpow.pop %v2053
        %v2055 = vmul.f32 %v2033, 1.442695
        %v2056 = vpow.pop %v2055
        %v2057 = vmul.f32 %v2034, 1.442695
        %v2058 = vpow.pop %v2057
        %v2059 = vmul.f32 %v2035, 1.442695
        %v2060 = vpow.pop %v2059
        %v2061 = vmul.f32 %v2036, 1.442695
        %v2062 = vpow.pop %v2061
        %v2063 = vmul.f32 %v2037, 1.442695
        %v2064 = vpow.pop %v2063
        %v2065 = vmul.f32 %v2038, 1.442695
        %v2066 = vpow.pop %v2065
        %v2067 = vmul.f32 %v2039, 1.442695
        %v2068 = vpow.pop %v2067
        %v2069 = vmul.f32 %v2040, 1.442695
        %v2070 = vpow.pop %v2069
        %v2071 = vmul.f32 %v2041, 1.442695
        %v2072 = vpow.pop %v2071
        %v2073 = vmul.f32 %v2042, 1.442695
        %v2074 = vpow.pop %v2073
        %v2075 = vsel %vm896, %v2044, 0.0
        %2076 = vadd.xlane.f32.xlu0 %v2075
        %v2077 = vpop.xlane.xlu0 %2076
        %v2078 = vsel %vm896, %v2046, 0.0
        %2079 = vadd.xlane.f32.xlu0 %v2078
        %v2080 = vpop.xlane.xlu0 %2079
        %v2081 = vsel %vm896, %v2048, 0.0
        %2082 = vadd.xlane.f32.xlu0 %v2081
        %v2083 = vpop.xlane.xlu0 %2082
        %v2084 = vsel %vm896, %v2050, 0.0
        %2085 = vadd.xlane.f32.xlu0 %v2084
        %v2086 = vpop.xlane.xlu0 %2085
        %v2087 = vsel %vm896, %v2052, 0.0
        %2088 = vadd.xlane.f32.xlu0 %v2087
        %v2089 = vpop.xlane.xlu0 %2088
        %v2090 = vsel %vm896, %v2054, 0.0
        %2091 = vadd.xlane.f32.xlu0 %v2090
        %v2092 = vpop.xlane.xlu0 %2091
        %v2093 = vsel %vm896, %v2056, 0.0
        %2094 = vadd.xlane.f32.xlu0 %v2093
        %v2095 = vpop.xlane.xlu0 %2094
        %v2096 = vsel %vm896, %v2058, 0.0
        %2097 = vadd.xlane.f32.xlu0 %v2096
        %v2098 = vpop.xlane.xlu0 %2097
        %v2099 = vsel %vm896, %v2060, 0.0
        %2100 = vadd.xlane.f32.xlu0 %v2099
        %v2101 = vpop.xlane.xlu0 %2100
        %v2102 = vsel %vm896, %v2062, 0.0
        %2103 = vadd.xlane.f32.xlu0 %v2102
        %v2104 = vpop.xlane.xlu0 %2103
        %v2105 = vsel %vm896, %v2064, 0.0
        %2106 = vadd.xlane.f32.xlu0 %v2105
        %v2107 = vpop.xlane.xlu0 %2106
        %v2108 = vsel %vm896, %v2066, 0.0
        %2109 = vadd.xlane.f32.xlu0 %v2108
        %v2110 = vpop.xlane.xlu0 %2109
        %v2111 = vsel %vm896, %v2068, 0.0
        %2112 = vadd.xlane.f32.xlu0 %v2111
        %v2113 = vpop.xlane.xlu0 %2112
        %v2114 = vsel %vm896, %v2070, 0.0
        %2115 = vadd.xlane.f32.xlu0 %v2114
        %v2116 = vpop.xlane.xlu0 %2115
        %v2117 = vsel %vm896, %v2072, 0.0
        %2118 = vadd.xlane.f32.xlu0 %v2117
        %v2119 = vpop.xlane.xlu0 %2118
        %v2120 = vsel %vm896, %v2074, 0.0
        %2121 = vadd.xlane.f32.xlu0 %v2120
        %v2122 = vpop.xlane.xlu0 %2121
        %v2123 = vrcp.pop %v2077
        %v2124 = vrcp.pop %v2080
        %v2125 = vrcp.pop %v2083
        %v2126 = vrcp.pop %v2086
        %v2127 = vrcp.pop %v2089
        %v2128 = vrcp.pop %v2092
        %v2129 = vrcp.pop %v2095
        %v2130 = vrcp.pop %v2098
        %v2131 = vrcp.pop %v2101
        %v2132 = vrcp.pop %v2104
        %v2133 = vrcp.pop %v2107
        %v2134 = vrcp.pop %v2110
        %v2135 = vrcp.pop %v2113
        %v2136 = vrcp.pop %v2116
        %v2137 = vrcp.pop %v2119
        %v2138 = vrcp.pop %v2122
        %v2139 = vmul.f32 %v2044, %v2123
        %v2140 = vmul.f32 %v2046, %v2124
        %v2141 = vmul.f32 %v2048, %v2125
        %v2142 = vmul.f32 %v2050, %v2126
        %v2143 = vmul.f32 %v2052, %v2127
        %v2144 = vmul.f32 %v2054, %v2128
        %v2145 = vmul.f32 %v2056, %v2129
        %v2146 = vmul.f32 %v2058, %v2130
        %v2147 = vmul.f32 %v2060, %v2131
        %v2148 = vmul.f32 %v2062, %v2132
        %v2149 = vmul.f32 %v2064, %v2133
        %v2150 = vmul.f32 %v2066, %v2134
        %v2151 = vmul.f32 %v2068, %v2135
        %v2152 = vmul.f32 %v2070, %v2136
        %v2153 = vmul.f32 %v2072, %v2137
        %v2154 = vmul.f32 %v2074, %v2138
        %v2155 = vpack.c.bf16 %v2140, %v2139
        %v2156 = vpack.c.bf16 %v2142, %v2141
        %v2157 = vpack.c.bf16 %v2144, %v2143
        %v2158 = vpack.c.bf16 %v2146, %v2145
        %v2159 = vpack.c.bf16 %v2148, %v2147
        %v2160 = vpack.c.bf16 %v2150, %v2149
        %v2161 = vpack.c.bf16 %v2152, %v2151
        %v2162 = vpack.c.bf16 %v2154, %v2153
        %2163 = vrot.lane.b32.xlu0 %v455, 56
        %v2164 = vpop.permute.xlu0 %2163
        %v2167 = vsel %vm896, %v2155, 0
        %2169 = vmatprep.subr.bf16.mxu0 0
        %2170 = vmatpush1.bf16.msra.mxu0 0
        %2171 = vmatprep.subr.bf16.mxu0 0
        %2172 = vmatpush1.bf16.msra.mxu0 0
        %2173 = vmatprep.subr.bf16.mxu0 0
        %2174 = vmatpush1.bf16.msra.mxu0 0
        %2175 = vmatprep.subr.bf16.mxu0 0
        %2176 = vmatpush1.bf16.msra.mxu0 0
        %2177 = vmatprep.subr.bf16.mxu0 0
        %2178 = vmatpush1.bf16.msra.mxu0 0
        %2179 = vmatprep.subr.bf16.mxu0 0
        %2180 = vmatpush1.bf16.msra.mxu0 0
        %2181 = vmatprep.subr.bf16.mxu0 0
        %2182 = vmatpush1.bf16.msra.mxu0 0
        %2183 = vmatprep.subr.bf16.mxu0 0
        %2184 = vmatpush1.bf16.msra.mxu0 %v2164
        %2185 = vmatprep.subr.bf16.mxu0 0
        %2186 = vmatpush2.bf16.msra.mxu0 0
        %2187 = vmatprep.subr.bf16.mxu0 0
        %2188 = vmatpush2.bf16.msra.mxu0 0
        %2189 = vmatprep.subr.bf16.mxu0 0
        %2190 = vmatpush2.bf16.msra.mxu0 0
        %2191 = vmatprep.subr.bf16.mxu0 0
        %2192 = vmatpush2.bf16.msra.mxu0 0
        %2193 = vmatprep.subr.bf16.mxu0 0
        %2194 = vmatpush2.bf16.msra.mxu0 0
        %2195 = vmatprep.subr.bf16.mxu0 0
        %2196 = vmatpush2.bf16.msra.mxu0 0
        %2197 = vmatprep.subr.bf16.mxu0 0
        %2198 = vmatpush2.bf16.msra.mxu0 0
        %2199 = vmatprep.subr.bf16.mxu0 0
        %2200 = vmatpush2.bf16.msra.mxu0 0
        %2201 = vmatprep.mubr.bf16.mxu0 0
        %2202 = vmatmul.mubr.bf16.gmra.mxu0 %v2167
        %v2203 = vpop.f32.mrf.mxu0
        %v2204 = vadd.f32 0.0, %v2203
        %v2205 = vpop.f32.mrf.mxu0
        %v2206 = vpop.f32.mrf.mxu0
        %v2207 = vadd.f32 0.0, %v2206
        %v2208 = vpop.f32.mrf.mxu0
        %2209 = vdwg.mxu0
        %2210 = vrot.lane.b32.xlu0 %v456, 56
        %v2211 = vpop.permute.xlu0 %2210
        %v2214 = vsel %vm896, %v2156, 0
        %2216 = vmatprep.subr.bf16.mxu0 0
        %2217 = vmatpush1.bf16.msra.mxu0 0
        %2218 = vmatprep.subr.bf16.mxu0 0
        %2219 = vmatpush1.bf16.msra.mxu0 0
        %2220 = vmatprep.subr.bf16.mxu0 0
        %2221 = vmatpush1.bf16.msra.mxu0 0
        %2222 = vmatprep.subr.bf16.mxu0 0
        %2223 = vmatpush1.bf16.msra.mxu0 0
        %2224 = vmatprep.subr.bf16.mxu0 0
        %2225 = vmatpush1.bf16.msra.mxu0 0
        %2226 = vmatprep.subr.bf16.mxu0 0
        %2227 = vmatpush1.bf16.msra.mxu0 0
        %2228 = vmatprep.subr.bf16.mxu0 0
        %2229 = vmatpush1.bf16.msra.mxu0 0
        %2230 = vmatprep.subr.bf16.mxu0 0
        %2231 = vmatpush1.bf16.msra.mxu0 %v2211
        %2232 = vmatprep.subr.bf16.mxu0 0
        %2233 = vmatpush2.bf16.msra.mxu0 0
        %2234 = vmatprep.subr.bf16.mxu0 0
        %2235 = vmatpush2.bf16.msra.mxu0 0
        %2236 = vmatprep.subr.bf16.mxu0 0
        %2237 = vmatpush2.bf16.msra.mxu0 0
        %2238 = vmatprep.subr.bf16.mxu0 0
        %2239 = vmatpush2.bf16.msra.mxu0 0
        %2240 = vmatprep.subr.bf16.mxu0 0
        %2241 = vmatpush2.bf16.msra.mxu0 0
        %2242 = vmatprep.subr.bf16.mxu0 0
        %2243 = vmatpush2.bf16.msra.mxu0 0
        %2244 = vmatprep.subr.bf16.mxu0 0
        %2245 = vmatpush2.bf16.msra.mxu0 0
        %2246 = vmatprep.subr.bf16.mxu0 0
        %2247 = vmatpush2.bf16.msra.mxu0 0
        %2248 = vmatprep.mubr.bf16.mxu0 0
        %2249 = vmatmul.mubr.bf16.gmra.mxu0 %v2214
        %v2250 = vpop.f32.mrf.mxu0
        %v2251 = vadd.f32 0.0, %v2250
        %v2252 = vpop.f32.mrf.mxu0
        %v2253 = vpop.f32.mrf.mxu0
        %v2254 = vadd.f32 0.0, %v2253
        %v2255 = vpop.f32.mrf.mxu0
        %2256 = vdwg.mxu0
        %2257 = vrot.lane.b32.xlu0 %v457, 56
        %v2258 = vpop.permute.xlu0 %2257
        %v2261 = vsel %vm896, %v2157, 0
        %2263 = vmatprep.subr.bf16.mxu0 0
        %2264 = vmatpush1.bf16.msra.mxu0 0
        %2265 = vmatprep.subr.bf16.mxu0 0
        %2266 = vmatpush1.bf16.msra.mxu0 0
        %2267 = vmatprep.subr.bf16.mxu0 0
        %2268 = vmatpush1.bf16.msra.mxu0 0
        %2269 = vmatprep.subr.bf16.mxu0 0
        %2270 = vmatpush1.bf16.msra.mxu0 0
        %2271 = vmatprep.subr.bf16.mxu0 0
        %2272 = vmatpush1.bf16.msra.mxu0 0
        %2273 = vmatprep.subr.bf16.mxu0 0
        %2274 = vmatpush1.bf16.msra.mxu0 0
        %2275 = vmatprep.subr.bf16.mxu0 0
        %2276 = vmatpush1.bf16.msra.mxu0 0
        %2277 = vmatprep.subr.bf16.mxu0 0
        %2278 = vmatpush1.bf16.msra.mxu0 %v2258
        %2279 = vmatprep.subr.bf16.mxu0 0
        %2280 = vmatpush2.bf16.msra.mxu0 0
        %2281 = vmatprep.subr.bf16.mxu0 0
        %2282 = vmatpush2.bf16.msra.mxu0 0
        %2283 = vmatprep.subr.bf16.mxu0 0
        %2284 = vmatpush2.bf16.msra.mxu0 0
        %2285 = vmatprep.subr.bf16.mxu0 0
        %2286 = vmatpush2.bf16.msra.mxu0 0
        %2287 = vmatprep.subr.bf16.mxu0 0
        %2288 = vmatpush2.bf16.msra.mxu0 0
        %2289 = vmatprep.subr.bf16.mxu0 0
        %2290 = vmatpush2.bf16.msra.mxu0 0
        %2291 = vmatprep.subr.bf16.mxu0 0
        %2292 = vmatpush2.bf16.msra.mxu0 0
        %2293 = vmatprep.subr.bf16.mxu0 0
        %2294 = vmatpush2.bf16.msra.mxu0 0
        %2295 = vmatprep.mubr.bf16.mxu0 0
        %2296 = vmatmul.mubr.bf16.gmra.mxu0 %v2261
        %v2297 = vpop.f32.mrf.mxu0
        %v2298 = vadd.f32 0.0, %v2297
        %v2299 = vpop.f32.mrf.mxu0
        %v2300 = vpop.f32.mrf.mxu0
        %v2301 = vadd.f32 0.0, %v2300
        %v2302 = vpop.f32.mrf.mxu0
        %2303 = vdwg.mxu0
        %2304 = vrot.lane.b32.xlu0 %v458, 56
        %v2305 = vpop.permute.xlu0 %2304
        %v2308 = vsel %vm896, %v2158, 0
        %2310 = vmatprep.subr.bf16.mxu0 0
        %2311 = vmatpush1.bf16.msra.mxu0 0
        %2312 = vmatprep.subr.bf16.mxu0 0
        %2313 = vmatpush1.bf16.msra.mxu0 0
        %2314 = vmatprep.subr.bf16.mxu0 0
        %2315 = vmatpush1.bf16.msra.mxu0 0
        %2316 = vmatprep.subr.bf16.mxu0 0
        %2317 = vmatpush1.bf16.msra.mxu0 0
        %2318 = vmatprep.subr.bf16.mxu0 0
        %2319 = vmatpush1.bf16.msra.mxu0 0
        %2320 = vmatprep.subr.bf16.mxu0 0
        %2321 = vmatpush1.bf16.msra.mxu0 0
        %2322 = vmatprep.subr.bf16.mxu0 0
        %2323 = vmatpush1.bf16.msra.mxu0 0
        %2324 = vmatprep.subr.bf16.mxu0 0
        %2325 = vmatpush1.bf16.msra.mxu0 %v2305
        %2326 = vmatprep.subr.bf16.mxu0 0
        %2327 = vmatpush2.bf16.msra.mxu0 0
        %2328 = vmatprep.subr.bf16.mxu0 0
        %2329 = vmatpush2.bf16.msra.mxu0 0
        %2330 = vmatprep.subr.bf16.mxu0 0
        %2331 = vmatpush2.bf16.msra.mxu0 0
        %2332 = vmatprep.subr.bf16.mxu0 0
        %2333 = vmatpush2.bf16.msra.mxu0 0
        %2334 = vmatprep.subr.bf16.mxu0 0
        %2335 = vmatpush2.bf16.msra.mxu0 0
        %2336 = vmatprep.subr.bf16.mxu0 0
        %2337 = vmatpush2.bf16.msra.mxu0 0
        %2338 = vmatprep.subr.bf16.mxu0 0
        %2339 = vmatpush2.bf16.msra.mxu0 0
        %2340 = vmatprep.subr.bf16.mxu0 0
        %2341 = vmatpush2.bf16.msra.mxu0 0
        %2342 = vmatprep.mubr.bf16.mxu0 0
        %2343 = vmatmul.mubr.bf16.gmra.mxu0 %v2308
        %v2344 = vpop.f32.mrf.mxu0
        %v2345 = vadd.f32 0.0, %v2344
        %v2346 = vpop.f32.mrf.mxu0
        %v2347 = vpop.f32.mrf.mxu0
        %v2348 = vadd.f32 0.0, %v2347
        %v2349 = vpop.f32.mrf.mxu0
        %2350 = vdwg.mxu0
        %2351 = vrot.lane.b32.xlu0 %v459, 56
        %v2352 = vpop.permute.xlu0 %2351
        %v2355 = vsel %vm896, %v2159, 0
        %2357 = vmatprep.subr.bf16.mxu0 0
        %2358 = vmatpush1.bf16.msra.mxu0 0
        %2359 = vmatprep.subr.bf16.mxu0 0
        %2360 = vmatpush1.bf16.msra.mxu0 0
        %2361 = vmatprep.subr.bf16.mxu0 0
        %2362 = vmatpush1.bf16.msra.mxu0 0
        %2363 = vmatprep.subr.bf16.mxu0 0
        %2364 = vmatpush1.bf16.msra.mxu0 0
        %2365 = vmatprep.subr.bf16.mxu0 0
        %2366 = vmatpush1.bf16.msra.mxu0 0
        %2367 = vmatprep.subr.bf16.mxu0 0
        %2368 = vmatpush1.bf16.msra.mxu0 0
        %2369 = vmatprep.subr.bf16.mxu0 0
        %2370 = vmatpush1.bf16.msra.mxu0 0
        %2371 = vmatprep.subr.bf16.mxu0 0
        %2372 = vmatpush1.bf16.msra.mxu0 %v2352
        %2373 = vmatprep.subr.bf16.mxu0 0
        %2374 = vmatpush2.bf16.msra.mxu0 0
        %2375 = vmatprep.subr.bf16.mxu0 0
        %2376 = vmatpush2.bf16.msra.mxu0 0
        %2377 = vmatprep.subr.bf16.mxu0 0
        %2378 = vmatpush2.bf16.msra.mxu0 0
        %2379 = vmatprep.subr.bf16.mxu0 0
        %2380 = vmatpush2.bf16.msra.mxu0 0
        %2381 = vmatprep.subr.bf16.mxu0 0
        %2382 = vmatpush2.bf16.msra.mxu0 0
        %2383 = vmatprep.subr.bf16.mxu0 0
        %2384 = vmatpush2.bf16.msra.mxu0 0
        %2385 = vmatprep.subr.bf16.mxu0 0
        %2386 = vmatpush2.bf16.msra.mxu0 0
        %2387 = vmatprep.subr.bf16.mxu0 0
        %2388 = vmatpush2.bf16.msra.mxu0 0
        %2389 = vmatprep.mubr.bf16.mxu0 0
        %2390 = vmatmul.mubr.bf16.gmra.mxu0 %v2355
        %v2391 = vpop.f32.mrf.mxu0
        %v2392 = vadd.f32 0.0, %v2391
        %v2393 = vpop.f32.mrf.mxu0
        %v2394 = vpop.f32.mrf.mxu0
        %v2395 = vadd.f32 0.0, %v2394
        %v2396 = vpop.f32.mrf.mxu0
        %2397 = vdwg.mxu0
        %2398 = vrot.lane.b32.xlu0 %v460, 56
        %v2399 = vpop.permute.xlu0 %2398
        %v2402 = vsel %vm896, %v2160, 0
        %2404 = vmatprep.subr.bf16.mxu0 0
        %2405 = vmatpush1.bf16.msra.mxu0 0
        %2406 = vmatprep.subr.bf16.mxu0 0
        %2407 = vmatpush1.bf16.msra.mxu0 0
        %2408 = vmatprep.subr.bf16.mxu0 0
        %2409 = vmatpush1.bf16.msra.mxu0 0
        %2410 = vmatprep.subr.bf16.mxu0 0
        %2411 = vmatpush1.bf16.msra.mxu0 0
        %2412 = vmatprep.subr.bf16.mxu0 0
        %2413 = vmatpush1.bf16.msra.mxu0 0
        %2414 = vmatprep.subr.bf16.mxu0 0
        %2415 = vmatpush1.bf16.msra.mxu0 0
        %2416 = vmatprep.subr.bf16.mxu0 0
        %2417 = vmatpush1.bf16.msra.mxu0 0
        %2418 = vmatprep.subr.bf16.mxu0 0
        %2419 = vmatpush1.bf16.msra.mxu0 %v2399
        %2420 = vmatprep.subr.bf16.mxu0 0
        %2421 = vmatpush2.bf16.msra.mxu0 0
        %2422 = vmatprep.subr.bf16.mxu0 0
        %2423 = vmatpush2.bf16.msra.mxu0 0
        %2424 = vmatprep.subr.bf16.mxu0 0
        %2425 = vmatpush2.bf16.msra.mxu0 0
        %2426 = vmatprep.subr.bf16.mxu0 0
        %2427 = vmatpush2.bf16.msra.mxu0 0
        %2428 = vmatprep.subr.bf16.mxu0 0
        %2429 = vmatpush2.bf16.msra.mxu0 0
        %2430 = vmatprep.subr.bf16.mxu0 0
        %2431 = vmatpush2.bf16.msra.mxu0 0
        %2432 = vmatprep.subr.bf16.mxu0 0
        %2433 = vmatpush2.bf16.msra.mxu0 0
        %2434 = vmatprep.subr.bf16.mxu0 0
        %2435 = vmatpush2.bf16.msra.mxu0 0
        %2436 = vmatprep.mubr.bf16.mxu0 0
        %2437 = vmatmul.mubr.bf16.gmra.mxu0 %v2402
        %v2438 = vpop.f32.mrf.mxu0
        %v2439 = vadd.f32 0.0, %v2438
        %v2440 = vpop.f32.mrf.mxu0
        %v2441 = vpop.f32.mrf.mxu0
        %v2442 = vadd.f32 0.0, %v2441
        %v2443 = vpop.f32.mrf.mxu0
        %2444 = vdwg.mxu0
        %2445 = vrot.lane.b32.xlu0 %v461, 56
        %v2446 = vpop.permute.xlu0 %2445
        %v2449 = vsel %vm896, %v2161, 0
        %2451 = vmatprep.subr.bf16.mxu0 0
        %2452 = vmatpush1.bf16.msra.mxu0 0
        %2453 = vmatprep.subr.bf16.mxu0 0
        %2454 = vmatpush1.bf16.msra.mxu0 0
        %2455 = vmatprep.subr.bf16.mxu0 0
        %2456 = vmatpush1.bf16.msra.mxu0 0
        %2457 = vmatprep.subr.bf16.mxu0 0
        %2458 = vmatpush1.bf16.msra.mxu0 0
        %2459 = vmatprep.subr.bf16.mxu0 0
        %2460 = vmatpush1.bf16.msra.mxu0 0
        %2461 = vmatprep.subr.bf16.mxu0 0
        %2462 = vmatpush1.bf16.msra.mxu0 0
        %2463 = vmatprep.subr.bf16.mxu0 0
        %2464 = vmatpush1.bf16.msra.mxu0 0
        %2465 = vmatprep.subr.bf16.mxu0 0
        %2466 = vmatpush1.bf16.msra.mxu0 %v2446
        %2467 = vmatprep.subr.bf16.mxu0 0
        %2468 = vmatpush2.bf16.msra.mxu0 0
        %2469 = vmatprep.subr.bf16.mxu0 0
        %2470 = vmatpush2.bf16.msra.mxu0 0
        %2471 = vmatprep.subr.bf16.mxu0 0
        %2472 = vmatpush2.bf16.msra.mxu0 0
        %2473 = vmatprep.subr.bf16.mxu0 0
        %2474 = vmatpush2.bf16.msra.mxu0 0
        %2475 = vmatprep.subr.bf16.mxu0 0
        %2476 = vmatpush2.bf16.msra.mxu0 0
        %2477 = vmatprep.subr.bf16.mxu0 0
        %2478 = vmatpush2.bf16.msra.mxu0 0
        %2479 = vmatprep.subr.bf16.mxu0 0
        %2480 = vmatpush2.bf16.msra.mxu0 0
        %2481 = vmatprep.subr.bf16.mxu0 0
        %2482 = vmatpush2.bf16.msra.mxu0 0
        %2483 = vmatprep.mubr.bf16.mxu0 0
        %2484 = vmatmul.mubr.bf16.gmra.mxu0 %v2449
        %v2485 = vpop.f32.mrf.mxu0
        %v2486 = vadd.f32 0.0, %v2485
        %v2487 = vpop.f32.mrf.mxu0
        %v2488 = vpop.f32.mrf.mxu0
        %v2489 = vadd.f32 0.0, %v2488
        %v2490 = vpop.f32.mrf.mxu0
        %2491 = vdwg.mxu0
        %2492 = vrot.lane.b32.xlu0 %v462, 56
        %v2493 = vpop.permute.xlu0 %2492
        %v2496 = vsel %vm896, %v2162, 0
        %2498 = vmatprep.subr.bf16.mxu0 0
        %2499 = vmatpush1.bf16.msra.mxu0 0
        %2500 = vmatprep.subr.bf16.mxu0 0
        %2501 = vmatpush1.bf16.msra.mxu0 0
        %2502 = vmatprep.subr.bf16.mxu0 0
        %2503 = vmatpush1.bf16.msra.mxu0 0
        %2504 = vmatprep.subr.bf16.mxu0 0
        %2505 = vmatpush1.bf16.msra.mxu0 0
        %2506 = vmatprep.subr.bf16.mxu0 0
        %2507 = vmatpush1.bf16.msra.mxu0 0
        %2508 = vmatprep.subr.bf16.mxu0 0
        %2509 = vmatpush1.bf16.msra.mxu0 0
        %2510 = vmatprep.subr.bf16.mxu0 0
        %2511 = vmatpush1.bf16.msra.mxu0 0
        %2512 = vmatprep.subr.bf16.mxu0 0
        %2513 = vmatpush1.bf16.msra.mxu0 %v2493
        %2514 = vmatprep.subr.bf16.mxu0 0
        %2515 = vmatpush2.bf16.msra.mxu0 0
        %2516 = vmatprep.subr.bf16.mxu0 0
        %2517 = vmatpush2.bf16.msra.mxu0 0
        %2518 = vmatprep.subr.bf16.mxu0 0
        %2519 = vmatpush2.bf16.msra.mxu0 0
        %2520 = vmatprep.subr.bf16.mxu0 0
        %2521 = vmatpush2.bf16.msra.mxu0 0
        %2522 = vmatprep.subr.bf16.mxu0 0
        %2523 = vmatpush2.bf16.msra.mxu0 0
        %2524 = vmatprep.subr.bf16.mxu0 0
        %2525 = vmatpush2.bf16.msra.mxu0 0
        %2526 = vmatprep.subr.bf16.mxu0 0
        %2527 = vmatpush2.bf16.msra.mxu0 0
        %2528 = vmatprep.subr.bf16.mxu0 0
        %2529 = vmatpush2.bf16.msra.mxu0 0
        %2530 = vmatprep.mubr.bf16.mxu0 0
        %2531 = vmatmul.mubr.bf16.gmra.mxu0 %v2496
        %v2532 = vpop.f32.mrf.mxu0
        %v2533 = vadd.f32 0.0, %v2532
        %v2534 = vpop.f32.mrf.mxu0
        %v2535 = vpop.f32.mrf.mxu0
        %v2536 = vadd.f32 0.0, %v2535
        %v2537 = vpop.f32.mrf.mxu0
        %2538 = vdwg.mxu0
        %v2539 = vpack.c.bf16 %v2207, %v2204
        %v2540 = vpack.c.bf16 %v2254, %v2251
        %v2541 = vpack.c.bf16 %v2301, %v2298
        %v2542 = vpack.c.bf16 %v2348, %v2345
        %v2543 = vpack.c.bf16 %v2395, %v2392
        %v2544 = vpack.c.bf16 %v2442, %v2439
        %v2545 = vpack.c.bf16 %v2489, %v2486
        %v2546 = vpack.c.bf16 %v2536, %v2533
        %v2555 = vunpack.c.l.b16 %v2539
        %v2556 = vunpack.c.h.b16 %v2539
        %v2557 = vunpack.c.l.b16 %v2540
        %v2558 = vunpack.c.h.b16 %v2540
        %v2559 = vunpack.c.l.b16 %v2541
        %v2560 = vunpack.c.h.b16 %v2541
        %v2561 = vunpack.c.l.b16 %v2542
        %v2562 = vunpack.c.h.b16 %v2542
        %v2563 = vunpack.c.l.b16 %v2543
        %v2564 = vunpack.c.h.b16 %v2543
        %v2565 = vunpack.c.l.b16 %v2544
        %v2566 = vunpack.c.h.b16 %v2544
        %v2567 = vunpack.c.l.b16 %v2545
        %v2568 = vunpack.c.h.b16 %v2545
        %v2569 = vunpack.c.l.b16 %v2546
        %v2570 = vunpack.c.h.b16 %v2546
        %v2571 = vpack.c.b16 %v2555, %v2555
        %v2572 = vpack.c.b16 %v2556, %v2556
        %v2573 = vpack.c.b16 %v2557, %v2557
        %v2574 = vpack.c.b16 %v2558, %v2558
        %v2575 = vpack.c.b16 %v2559, %v2559
        %v2576 = vpack.c.b16 %v2560, %v2560
        %v2577 = vpack.c.b16 %v2561, %v2561
        %v2578 = vpack.c.b16 %v2562, %v2562
        %v2579 = vpack.c.b16 %v2563, %v2563
        %v2580 = vpack.c.b16 %v2564, %v2564
        %v2581 = vpack.c.b16 %v2565, %v2565
        %v2582 = vpack.c.b16 %v2566, %v2566
        %v2583 = vpack.c.b16 %v2567, %v2567
        %v2584 = vpack.c.b16 %v2568, %v2568
        %v2585 = vpack.c.b16 %v2569, %v2569
        %v2586 = vpack.c.b16 %v2570, %v2570
        %2587 = vrot.lane.b32.xlu0 %v2571, 8
        %v2588 = vpop.permute.xlu0 %2587
        %2589 = vrot.lane.b32.xlu0 %v2572, 8
        %v2590 = vpop.permute.xlu0 %2589
        %2591 = vrot.lane.b32.xlu0 %v2573, 8
        %v2592 = vpop.permute.xlu0 %2591
        %2593 = vrot.lane.b32.xlu0 %v2574, 8
        %v2594 = vpop.permute.xlu0 %2593
        %2595 = vrot.lane.b32.xlu0 %v2575, 8
        %v2596 = vpop.permute.xlu0 %2595
        %2597 = vrot.lane.b32.xlu0 %v2576, 8
        %v2598 = vpop.permute.xlu0 %2597
        %2599 = vrot.lane.b32.xlu0 %v2577, 8
        %v2600 = vpop.permute.xlu0 %2599
        %2601 = vrot.lane.b32.xlu0 %v2578, 8
        %v2602 = vpop.permute.xlu0 %2601
        %2603 = vrot.lane.b32.xlu0 %v2579, 8
        %v2604 = vpop.permute.xlu0 %2603
        %2605 = vrot.lane.b32.xlu0 %v2580, 8
        %v2606 = vpop.permute.xlu0 %2605
        %2607 = vrot.lane.b32.xlu0 %v2581, 8
        %v2608 = vpop.permute.xlu0 %2607
        %2609 = vrot.lane.b32.xlu0 %v2582, 8
        %v2610 = vpop.permute.xlu0 %2609
        %2611 = vrot.lane.b32.xlu0 %v2583, 8
        %v2612 = vpop.permute.xlu0 %2611
        %2613 = vrot.lane.b32.xlu0 %v2584, 8
        %v2614 = vpop.permute.xlu0 %2613
        %2615 = vrot.lane.b32.xlu0 %v2585, 8
        %v2616 = vpop.permute.xlu0 %2615
        %2617 = vrot.lane.b32.xlu0 %v2586, 8
        %v2618 = vpop.permute.xlu0 %2617
        %vm2635 = vcmask 126016
        %2636 = vst.msk [vmem:[#allocation2] sm:$0xf] %vm2635, %v2588
        %2637 = vst.msk [vmem:[#allocation2 + $0x4] sm:$0xf] %vm2635, %v2590
        %2638 = vst.msk [vmem:[#allocation2 + $0x8] sm:$0xf] %vm2635, %v2592
        %2639 = vst.msk [vmem:[#allocation2 + $0xc] sm:$0xf] %vm2635, %v2594
        %2640 = vst.msk [vmem:[#allocation2 + $0x10] sm:$0xf] %vm2635, %v2596
        %2641 = vst.msk [vmem:[#allocation2 + $0x14] sm:$0xf] %vm2635, %v2598
        %2642 = vst.msk [vmem:[#allocation2 + $0x18] sm:$0xf] %vm2635, %v2600
        %2643 = vst.msk [vmem:[#allocation2 + $0x1c] sm:$0xf] %vm2635, %v2602
        %2644 = vst.msk [vmem:[#allocation2 + $0x20] sm:$0xf] %vm2635, %v2604
        %2645 = vst.msk [vmem:[#allocation2 + $0x24] sm:$0xf] %vm2635, %v2606
        %2646 = vst.msk [vmem:[#allocation2 + $0x28] sm:$0xf] %vm2635, %v2608
        %2647 = vst.msk [vmem:[#allocation2 + $0x2c] sm:$0xf] %vm2635, %v2610
        %2648 = vst.msk [vmem:[#allocation2 + $0x30] sm:$0xf] %vm2635, %v2612
        %2649 = vst.msk [vmem:[#allocation2 + $0x34] sm:$0xf] %vm2635, %v2614
        %2650 = vst.msk [vmem:[#allocation2 + $0x38] sm:$0xf] %vm2635, %v2616
        %2651 = vst.msk [vmem:[#allocation2 + $0x3c] sm:$0xf] %vm2635, %v2618
        %2652 = vrot.lane.b32.xlu0 %v455, 112
        %v2653 = vpop.permute.xlu0 %2652
        %2654 = vrot.lane.b32.xlu0 %v455, 80
        %v2655 = vpop.permute.xlu0 %2654
        %v2657 = vsel %vm466, %v2653, 0
        %v2660 = vsel %vm466, %v2655, 0
        %2662 = vmatprep.subr.bf16.mxu0 0
        %2663 = vmatpush1.bf16.xpose.msra.mxu0 0
        %2664 = vmatprep.subr.bf16.mxu0 0
        %2665 = vmatpush1.bf16.xpose.msra.mxu0 0
        %2666 = vmatprep.subr.bf16.mxu0 0
        %2667 = vmatpush1.bf16.xpose.msra.mxu0 0
        %2668 = vmatprep.subr.bf16.mxu0 0
        %2669 = vmatpush1.bf16.xpose.msra.mxu0 0
        %2670 = vmatprep.subr.bf16.mxu0 0
        %2671 = vmatpush1.bf16.xpose.msra.mxu0 0
        %2672 = vmatprep.subr.bf16.mxu0 0
        %2673 = vmatpush1.bf16.xpose.msra.mxu0 0
        %2674 = vmatprep.subr.bf16.mxu0 0
        %2675 = vmatpush1.bf16.xpose.msra.mxu0 0
        %2676 = vmatprep.subr.bf16.mxu0 0
        %2677 = vmatpush1.bf16.xpose.msra.mxu0 %v2660
        %2678 = vmatprep.subr.bf16.mxu0 0
        %2679 = vmatpush2.bf16.xpose.msra.mxu0 0
        %2680 = vmatprep.subr.bf16.mxu0 0
        %2681 = vmatpush2.bf16.xpose.msra.mxu0 0
        %2682 = vmatprep.subr.bf16.mxu0 0
        %2683 = vmatpush2.bf16.xpose.msra.mxu0 0
        %2684 = vmatprep.subr.bf16.mxu0 0
        %2685 = vmatpush2.bf16.xpose.msra.mxu0 0
        %2686 = vmatprep.subr.bf16.mxu0 0
        %2687 = vmatpush2.bf16.xpose.msra.mxu0 0
        %2688 = vmatprep.subr.bf16.mxu0 0
        %2689 = vmatpush2.bf16.xpose.msra.mxu0 0
        %2690 = vmatprep.subr.bf16.mxu0 0
        %2691 = vmatpush2.bf16.xpose.msra.mxu0 0
        %2692 = vmatprep.subr.bf16.mxu0 0
        %2693 = vmatpush2.bf16.xpose.msra.mxu0 0
        %2694 = vmatprep.mubr.bf16.mxu0 0
        %2695 = vmatmul.mubr.bf16.gmra.mxu0 %v2657
        %v2696 = vpop.f32.mrf.mxu0
        %v2697 = vadd.f32 0.0, %v2696
        %v2698 = vpop.f32.mrf.mxu0
        %v2699 = vpop.f32.mrf.mxu0
        %v2700 = vadd.f32 0.0, %v2699
        %v2701 = vpop.f32.mrf.mxu0
        %2702 = vdwg.mxu0
        %2703 = vrot.lane.b32.xlu0 %v456, 112
        %v2704 = vpop.permute.xlu0 %2703
        %2705 = vrot.lane.b32.xlu0 %v456, 80
        %v2706 = vpop.permute.xlu0 %2705
        %v2708 = vsel %vm466, %v2704, 0
        %v2711 = vsel %vm466, %v2706, 0
        %2713 = vmatprep.subr.bf16.mxu0 0
        %2714 = vmatpush1.bf16.xpose.msra.mxu0 0
        %2715 = vmatprep.subr.bf16.mxu0 0
        %2716 = vmatpush1.bf16.xpose.msra.mxu0 0
        %2717 = vmatprep.subr.bf16.mxu0 0
        %2718 = vmatpush1.bf16.xpose.msra.mxu0 0
        %2719 = vmatprep.subr.bf16.mxu0 0
        %2720 = vmatpush1.bf16.xpose.msra.mxu0 0
        %2721 = vmatprep.subr.bf16.mxu0 0
        %2722 = vmatpush1.bf16.xpose.msra.mxu0 0
        %2723 = vmatprep.subr.bf16.mxu0 0
        %2724 = vmatpush1.bf16.xpose.msra.mxu0 0
        %2725 = vmatprep.subr.bf16.mxu0 0
        %2726 = vmatpush1.bf16.xpose.msra.mxu0 0
        %2727 = vmatprep.subr.bf16.mxu0 0
        %2728 = vmatpush1.bf16.xpose.msra.mxu0 %v2711
        %2729 = vmatprep.subr.bf16.mxu0 0
        %2730 = vmatpush2.bf16.xpose.msra.mxu0 0
        %2731 = vmatprep.subr.bf16.mxu0 0
        %2732 = vmatpush2.bf16.xpose.msra.mxu0 0
        %2733 = vmatprep.subr.bf16.mxu0 0
        %2734 = vmatpush2.bf16.xpose.msra.mxu0 0
        %2735 = vmatprep.subr.bf16.mxu0 0
        %2736 = vmatpush2.bf16.xpose.msra.mxu0 0
        %2737 = vmatprep.subr.bf16.mxu0 0
        %2738 = vmatpush2.bf16.xpose.msra.mxu0 0
        %2739 = vmatprep.subr.bf16.mxu0 0
        %2740 = vmatpush2.bf16.xpose.msra.mxu0 0
        %2741 = vmatprep.subr.bf16.mxu0 0
        %2742 = vmatpush2.bf16.xpose.msra.mxu0 0
        %2743 = vmatprep.subr.bf16.mxu0 0
        %2744 = vmatpush2.bf16.xpose.msra.mxu0 0
        %2745 = vmatprep.mubr.bf16.mxu0 0
        %2746 = vmatmul.mubr.bf16.gmra.mxu0 %v2708
        %v2747 = vpop.f32.mrf.mxu0
        %v2748 = vadd.f32 0.0, %v2747
        %v2749 = vpop.f32.mrf.mxu0
        %v2750 = vpop.f32.mrf.mxu0
        %v2751 = vadd.f32 0.0, %v2750
        %v2752 = vpop.f32.mrf.mxu0
        %2753 = vdwg.mxu0
        %2754 = vrot.lane.b32.xlu0 %v457, 112
        %v2755 = vpop.permute.xlu0 %2754
        %2756 = vrot.lane.b32.xlu0 %v457, 80
        %v2757 = vpop.permute.xlu0 %2756
        %v2759 = vsel %vm466, %v2755, 0
        %v2762 = vsel %vm466, %v2757, 0
        %2764 = vmatprep.subr.bf16.mxu0 0
        %2765 = vmatpush1.bf16.xpose.msra.mxu0 0
        %2766 = vmatprep.subr.bf16.mxu0 0
        %2767 = vmatpush1.bf16.xpose.msra.mxu0 0
        %2768 = vmatprep.subr.bf16.mxu0 0
        %2769 = vmatpush1.bf16.xpose.msra.mxu0 0
        %2770 = vmatprep.subr.bf16.mxu0 0
        %2771 = vmatpush1.bf16.xpose.msra.mxu0 0
        %2772 = vmatprep.subr.bf16.mxu0 0
        %2773 = vmatpush1.bf16.xpose.msra.mxu0 0
        %2774 = vmatprep.subr.bf16.mxu0 0
        %2775 = vmatpush1.bf16.xpose.msra.mxu0 0
        %2776 = vmatprep.subr.bf16.mxu0 0
        %2777 = vmatpush1.bf16.xpose.msra.mxu0 0
        %2778 = vmatprep.subr.bf16.mxu0 0
        %2779 = vmatpush1.bf16.xpose.msra.mxu0 %v2762
        %2780 = vmatprep.subr.bf16.mxu0 0
        %2781 = vmatpush2.bf16.xpose.msra.mxu0 0
        %2782 = vmatprep.subr.bf16.mxu0 0
        %2783 = vmatpush2.bf16.xpose.msra.mxu0 0
        %2784 = vmatprep.subr.bf16.mxu0 0
        %2785 = vmatpush2.bf16.xpose.msra.mxu0 0
        %2786 = vmatprep.subr.bf16.mxu0 0
        %2787 = vmatpush2.bf16.xpose.msra.mxu0 0
        %2788 = vmatprep.subr.bf16.mxu0 0
        %2789 = vmatpush2.bf16.xpose.msra.mxu0 0
        %2790 = vmatprep.subr.bf16.mxu0 0
        %2791 = vmatpush2.bf16.xpose.msra.mxu0 0
        %2792 = vmatprep.subr.bf16.mxu0 0
        %2793 = vmatpush2.bf16.xpose.msra.mxu0 0
        %2794 = vmatprep.subr.bf16.mxu0 0
        %2795 = vmatpush2.bf16.xpose.msra.mxu0 0
        %2796 = vmatprep.mubr.bf16.mxu0 0
        %2797 = vmatmul.mubr.bf16.gmra.mxu0 %v2759
        %v2798 = vpop.f32.mrf.mxu0
        %v2799 = vadd.f32 0.0, %v2798
        %v2800 = vpop.f32.mrf.mxu0
        %v2801 = vpop.f32.mrf.mxu0
        %v2802 = vadd.f32 0.0, %v2801
        %v2803 = vpop.f32.mrf.mxu0
        %2804 = vdwg.mxu0
        %2805 = vrot.lane.b32.xlu0 %v458, 112
        %v2806 = vpop.permute.xlu0 %2805
        %2807 = vrot.lane.b32.xlu0 %v458, 80
        %v2808 = vpop.permute.xlu0 %2807
        %v2810 = vsel %vm466, %v2806, 0
        %v2813 = vsel %vm466, %v2808, 0
        %2815 = vmatprep.subr.bf16.mxu0 0
        %2816 = vmatpush1.bf16.xpose.msra.mxu0 0
        %2817 = vmatprep.subr.bf16.mxu0 0
        %2818 = vmatpush1.bf16.xpose.msra.mxu0 0
        %2819 = vmatprep.subr.bf16.mxu0 0
        %2820 = vmatpush1.bf16.xpose.msra.mxu0 0
        %2821 = vmatprep.subr.bf16.mxu0 0
        %2822 = vmatpush1.bf16.xpose.msra.mxu0 0
        %2823 = vmatprep.subr.bf16.mxu0 0
        %2824 = vmatpush1.bf16.xpose.msra.mxu0 0
        %2825 = vmatprep.subr.bf16.mxu0 0
        %2826 = vmatpush1.bf16.xpose.msra.mxu0 0
        %2827 = vmatprep.subr.bf16.mxu0 0
        %2828 = vmatpush1.bf16.xpose.msra.mxu0 0
        %2829 = vmatprep.subr.bf16.mxu0 0
        %2830 = vmatpush1.bf16.xpose.msra.mxu0 %v2813
        %2831 = vmatprep.subr.bf16.mxu0 0
        %2832 = vmatpush2.bf16.xpose.msra.mxu0 0
        %2833 = vmatprep.subr.bf16.mxu0 0
        %2834 = vmatpush2.bf16.xpose.msra.mxu0 0
        %2835 = vmatprep.subr.bf16.mxu0 0
        %2836 = vmatpush2.bf16.xpose.msra.mxu0 0
        %2837 = vmatprep.subr.bf16.mxu0 0
        %2838 = vmatpush2.bf16.xpose.msra.mxu0 0
        %2839 = vmatprep.subr.bf16.mxu0 0
        %2840 = vmatpush2.bf16.xpose.msra.mxu0 0
        %2841 = vmatprep.subr.bf16.mxu0 0
        %2842 = vmatpush2.bf16.xpose.msra.mxu0 0
        %2843 = vmatprep.subr.bf16.mxu0 0
        %2844 = vmatpush2.bf16.xpose.msra.mxu0 0
        %2845 = vmatprep.subr.bf16.mxu0 0
        %2846 = vmatpush2.bf16.xpose.msra.mxu0 0
        %2847 = vmatprep.mubr.bf16.mxu0 0
        %2848 = vmatmul.mubr.bf16.gmra.mxu0 %v2810
        %v2849 = vpop.f32.mrf.mxu0
        %v2850 = vadd.f32 0.0, %v2849
        %v2851 = vpop.f32.mrf.mxu0
        %v2852 = vpop.f32.mrf.mxu0
        %v2853 = vadd.f32 0.0, %v2852
        %v2854 = vpop.f32.mrf.mxu0
        %2855 = vdwg.mxu0
        %2856 = vrot.lane.b32.xlu0 %v459, 112
        %v2857 = vpop.permute.xlu0 %2856
        %2858 = vrot.lane.b32.xlu0 %v459, 80
        %v2859 = vpop.permute.xlu0 %2858
        %v2861 = vsel %vm466, %v2857, 0
        %v2864 = vsel %vm466, %v2859, 0
        %2866 = vmatprep.subr.bf16.mxu0 0
        %2867 = vmatpush1.bf16.xpose.msra.mxu0 0
        %2868 = vmatprep.subr.bf16.mxu0 0
        %2869 = vmatpush1.bf16.xpose.msra.mxu0 0
        %2870 = vmatprep.subr.bf16.mxu0 0
        %2871 = vmatpush1.bf16.xpose.msra.mxu0 0
        %2872 = vmatprep.subr.bf16.mxu0 0
        %2873 = vmatpush1.bf16.xpose.msra.mxu0 0
        %2874 = vmatprep.subr.bf16.mxu0 0
        %2875 = vmatpush1.bf16.xpose.msra.mxu0 0
        %2876 = vmatprep.subr.bf16.mxu0 0
        %2877 = vmatpush1.bf16.xpose.msra.mxu0 0
        %2878 = vmatprep.subr.bf16.mxu0 0
        %2879 = vmatpush1.bf16.xpose.msra.mxu0 0
        %2880 = vmatprep.subr.bf16.mxu0 0
        %2881 = vmatpush1.bf16.xpose.msra.mxu0 %v2864
        %2882 = vmatprep.subr.bf16.mxu0 0
        %2883 = vmatpush2.bf16.xpose.msra.mxu0 0
        %2884 = vmatprep.subr.bf16.mxu0 0
        %2885 = vmatpush2.bf16.xpose.msra.mxu0 0
        %2886 = vmatprep.subr.bf16.mxu0 0
        %2887 = vmatpush2.bf16.xpose.msra.mxu0 0
        %2888 = vmatprep.subr.bf16.mxu0 0
        %2889 = vmatpush2.bf16.xpose.msra.mxu0 0
        %2890 = vmatprep.subr.bf16.mxu0 0
        %2891 = vmatpush2.bf16.xpose.msra.mxu0 0
        %2892 = vmatprep.subr.bf16.mxu0 0
        %2893 = vmatpush2.bf16.xpose.msra.mxu0 0
        %2894 = vmatprep.subr.bf16.mxu0 0
        %2895 = vmatpush2.bf16.xpose.msra.mxu0 0
        %2896 = vmatprep.subr.bf16.mxu0 0
        %2897 = vmatpush2.bf16.xpose.msra.mxu0 0
        %2898 = vmatprep.mubr.bf16.mxu0 0
        %2899 = vmatmul.mubr.bf16.gmra.mxu0 %v2861
        %v2900 = vpop.f32.mrf.mxu0
        %v2901 = vadd.f32 0.0, %v2900
        %v2902 = vpop.f32.mrf.mxu0
        %v2903 = vpop.f32.mrf.mxu0
        %v2904 = vadd.f32 0.0, %v2903
        %v2905 = vpop.f32.mrf.mxu0
        %2906 = vdwg.mxu0
        %2907 = vrot.lane.b32.xlu0 %v460, 112
        %v2908 = vpop.permute.xlu0 %2907
        %2909 = vrot.lane.b32.xlu0 %v460, 80
        %v2910 = vpop.permute.xlu0 %2909
        %v2912 = vsel %vm466, %v2908, 0
        %v2915 = vsel %vm466, %v2910, 0
        %2917 = vmatprep.subr.bf16.mxu0 0
        %2918 = vmatpush1.bf16.xpose.msra.mxu0 0
        %2919 = vmatprep.subr.bf16.mxu0 0
        %2920 = vmatpush1.bf16.xpose.msra.mxu0 0
        %2921 = vmatprep.subr.bf16.mxu0 0
        %2922 = vmatpush1.bf16.xpose.msra.mxu0 0
        %2923 = vmatprep.subr.bf16.mxu0 0
        %2924 = vmatpush1.bf16.xpose.msra.mxu0 0
        %2925 = vmatprep.subr.bf16.mxu0 0
        %2926 = vmatpush1.bf16.xpose.msra.mxu0 0
        %2927 = vmatprep.subr.bf16.mxu0 0
        %2928 = vmatpush1.bf16.xpose.msra.mxu0 0
        %2929 = vmatprep.subr.bf16.mxu0 0
        %2930 = vmatpush1.bf16.xpose.msra.mxu0 0
        %2931 = vmatprep.subr.bf16.mxu0 0
        %2932 = vmatpush1.bf16.xpose.msra.mxu0 %v2915
        %2933 = vmatprep.subr.bf16.mxu0 0
        %2934 = vmatpush2.bf16.xpose.msra.mxu0 0
        %2935 = vmatprep.subr.bf16.mxu0 0
        %2936 = vmatpush2.bf16.xpose.msra.mxu0 0
        %2937 = vmatprep.subr.bf16.mxu0 0
        %2938 = vmatpush2.bf16.xpose.msra.mxu0 0
        %2939 = vmatprep.subr.bf16.mxu0 0
        %2940 = vmatpush2.bf16.xpose.msra.mxu0 0
        %2941 = vmatprep.subr.bf16.mxu0 0
        %2942 = vmatpush2.bf16.xpose.msra.mxu0 0
        %2943 = vmatprep.subr.bf16.mxu0 0
        %2944 = vmatpush2.bf16.xpose.msra.mxu0 0
        %2945 = vmatprep.subr.bf16.mxu0 0
        %2946 = vmatpush2.bf16.xpose.msra.mxu0 0
        %2947 = vmatprep.subr.bf16.mxu0 0
        %2948 = vmatpush2.bf16.xpose.msra.mxu0 0
        %2949 = vmatprep.mubr.bf16.mxu0 0
        %2950 = vmatmul.mubr.bf16.gmra.mxu0 %v2912
        %v2951 = vpop.f32.mrf.mxu0
        %v2952 = vadd.f32 0.0, %v2951
        %v2953 = vpop.f32.mrf.mxu0
        %v2954 = vpop.f32.mrf.mxu0
        %v2955 = vadd.f32 0.0, %v2954
        %v2956 = vpop.f32.mrf.mxu0
        %2957 = vdwg.mxu0
        %2958 = vrot.lane.b32.xlu0 %v461, 112
        %v2959 = vpop.permute.xlu0 %2958
        %2960 = vrot.lane.b32.xlu0 %v461, 80
        %v2961 = vpop.permute.xlu0 %2960
        %v2963 = vsel %vm466, %v2959, 0
        %v2966 = vsel %vm466, %v2961, 0
        %2968 = vmatprep.subr.bf16.mxu0 0
        %2969 = vmatpush1.bf16.xpose.msra.mxu0 0
        %2970 = vmatprep.subr.bf16.mxu0 0
        %2971 = vmatpush1.bf16.xpose.msra.mxu0 0
        %2972 = vmatprep.subr.bf16.mxu0 0
        %2973 = vmatpush1.bf16.xpose.msra.mxu0 0
        %2974 = vmatprep.subr.bf16.mxu0 0
        %2975 = vmatpush1.bf16.xpose.msra.mxu0 0
        %2976 = vmatprep.subr.bf16.mxu0 0
        %2977 = vmatpush1.bf16.xpose.msra.mxu0 0
        %2978 = vmatprep.subr.bf16.mxu0 0
        %2979 = vmatpush1.bf16.xpose.msra.mxu0 0
        %2980 = vmatprep.subr.bf16.mxu0 0
        %2981 = vmatpush1.bf16.xpose.msra.mxu0 0
        %2982 = vmatprep.subr.bf16.mxu0 0
        %2983 = vmatpush1.bf16.xpose.msra.mxu0 %v2966
        %2984 = vmatprep.subr.bf16.mxu0 0
        %2985 = vmatpush2.bf16.xpose.msra.mxu0 0
        %2986 = vmatprep.subr.bf16.mxu0 0
        %2987 = vmatpush2.bf16.xpose.msra.mxu0 0
        %2988 = vmatprep.subr.bf16.mxu0 0
        %2989 = vmatpush2.bf16.xpose.msra.mxu0 0
        %2990 = vmatprep.subr.bf16.mxu0 0
        %2991 = vmatpush2.bf16.xpose.msra.mxu0 0
        %2992 = vmatprep.subr.bf16.mxu0 0
        %2993 = vmatpush2.bf16.xpose.msra.mxu0 0
        %2994 = vmatprep.subr.bf16.mxu0 0
        %2995 = vmatpush2.bf16.xpose.msra.mxu0 0
        %2996 = vmatprep.subr.bf16.mxu0 0
        %2997 = vmatpush2.bf16.xpose.msra.mxu0 0
        %2998 = vmatprep.subr.bf16.mxu0 0
        %2999 = vmatpush2.bf16.xpose.msra.mxu0 0
        %3000 = vmatprep.mubr.bf16.mxu0 0
        %3001 = vmatmul.mubr.bf16.gmra.mxu0 %v2963
        %v3002 = vpop.f32.mrf.mxu0
        %v3003 = vadd.f32 0.0, %v3002
        %v3004 = vpop.f32.mrf.mxu0
        %v3005 = vpop.f32.mrf.mxu0
        %v3006 = vadd.f32 0.0, %v3005
        %v3007 = vpop.f32.mrf.mxu0
        %3008 = vdwg.mxu0
        %3009 = vrot.lane.b32.xlu0 %v462, 112
        %v3010 = vpop.permute.xlu0 %3009
        %3011 = vrot.lane.b32.xlu0 %v462, 80
        %v3012 = vpop.permute.xlu0 %3011
        %v3014 = vsel %vm466, %v3010, 0
        %v3017 = vsel %vm466, %v3012, 0
        %3019 = vmatprep.subr.bf16.mxu0 0
        %3020 = vmatpush1.bf16.xpose.msra.mxu0 0
        %3021 = vmatprep.subr.bf16.mxu0 0
        %3022 = vmatpush1.bf16.xpose.msra.mxu0 0
        %3023 = vmatprep.subr.bf16.mxu0 0
        %3024 = vmatpush1.bf16.xpose.msra.mxu0 0
        %3025 = vmatprep.subr.bf16.mxu0 0
        %3026 = vmatpush1.bf16.xpose.msra.mxu0 0
        %3027 = vmatprep.subr.bf16.mxu0 0
        %3028 = vmatpush1.bf16.xpose.msra.mxu0 0
        %3029 = vmatprep.subr.bf16.mxu0 0
        %3030 = vmatpush1.bf16.xpose.msra.mxu0 0
        %3031 = vmatprep.subr.bf16.mxu0 0
        %3032 = vmatpush1.bf16.xpose.msra.mxu0 0
        %3033 = vmatprep.subr.bf16.mxu0 0
        %3034 = vmatpush1.bf16.xpose.msra.mxu0 %v3017
        %3035 = vmatprep.subr.bf16.mxu0 0
        %3036 = vmatpush2.bf16.xpose.msra.mxu0 0
        %3037 = vmatprep.subr.bf16.mxu0 0
        %3038 = vmatpush2.bf16.xpose.msra.mxu0 0
        %3039 = vmatprep.subr.bf16.mxu0 0
        %3040 = vmatpush2.bf16.xpose.msra.mxu0 0
        %3041 = vmatprep.subr.bf16.mxu0 0
        %3042 = vmatpush2.bf16.xpose.msra.mxu0 0
        %3043 = vmatprep.subr.bf16.mxu0 0
        %3044 = vmatpush2.bf16.xpose.msra.mxu0 0
        %3045 = vmatprep.subr.bf16.mxu0 0
        %3046 = vmatpush2.bf16.xpose.msra.mxu0 0
        %3047 = vmatprep.subr.bf16.mxu0 0
        %3048 = vmatpush2.bf16.xpose.msra.mxu0 0
        %3049 = vmatprep.subr.bf16.mxu0 0
        %3050 = vmatpush2.bf16.xpose.msra.mxu0 0
        %3051 = vmatprep.mubr.bf16.mxu0 0
        %3052 = vmatmul.mubr.bf16.gmra.mxu0 %v3014
        %v3053 = vpop.f32.mrf.mxu0
        %v3054 = vadd.f32 0.0, %v3053
        %v3055 = vpop.f32.mrf.mxu0
        %v3056 = vpop.f32.mrf.mxu0
        %v3057 = vadd.f32 0.0, %v3056
        %v3058 = vpop.f32.mrf.mxu0
        %3059 = vdwg.mxu0
        %s3060 = scalar_lea.vmem %s5, 64
        %v3061 = vld [vmem:[%s3060] sm:$0xf]
        %v3062 = vld [vmem:[%s3060 + $0x4] sm:$0xf]
        %v3063 = vld [vmem:[%s3060 + $0x8] sm:$0xf]
        %v3064 = vld [vmem:[%s3060 + $0xc] sm:$0xf]
        %v3065 = vld [vmem:[%s3060 + $0x10] sm:$0xf]
        %v3066 = vld [vmem:[%s3060 + $0x14] sm:$0xf]
        %v3067 = vld [vmem:[%s3060 + $0x18] sm:$0xf]
        %v3068 = vld [vmem:[%s3060 + $0x1c] sm:$0xf]
        %v3069 = vunpack.c.l.bf16 %v3061
        %v3070 = vunpack.c.l.bf16 %v3062
        %v3071 = vunpack.c.l.bf16 %v3063
        %v3072 = vunpack.c.l.bf16 %v3064
        %v3073 = vunpack.c.l.bf16 %v3065
        %v3074 = vunpack.c.l.bf16 %v3066
        %v3075 = vunpack.c.l.bf16 %v3067
        %v3076 = vunpack.c.l.bf16 %v3068
        %v3077 = vadd.f32 %v2697, %v3069
        %v3078 = vadd.f32 %v2700, %v3070
        %v3079 = vadd.f32 %v2748, %v3071
        %v3080 = vadd.f32 %v2751, %v3072
        %v3081 = vadd.f32 %v2799, %v3073
        %v3082 = vadd.f32 %v2802, %v3074
        %v3083 = vadd.f32 %v2850, %v3075
        %v3084 = vadd.f32 %v2853, %v3076
        %v3085 = vadd.f32 %v2901, %v3069
        %v3086 = vadd.f32 %v2904, %v3070
        %v3087 = vadd.f32 %v2952, %v3071
        %v3088 = vadd.f32 %v2955, %v3072
        %v3089 = vadd.f32 %v3003, %v3073
        %v3090 = vadd.f32 %v3006, %v3074
        %v3091 = vadd.f32 %v3054, %v3075
        %v3092 = vadd.f32 %v3057, %v3076
        %v3093 = vsel %vm896, %v3077, -inf
        %3094 = vmax.xlane.f32.xlu0 %v3093
        %v3095 = vpop.xlane.xlu0 %3094
        %v3096 = vsel %vm896, %v3078, -inf
        %3097 = vmax.xlane.f32.xlu0 %v3096
        %v3098 = vpop.xlane.xlu0 %3097
        %v3099 = vsel %vm896, %v3079, -inf
        %3100 = vmax.xlane.f32.xlu0 %v3099
        %v3101 = vpop.xlane.xlu0 %3100
        %v3102 = vsel %vm896, %v3080, -inf
        %3103 = vmax.xlane.f32.xlu0 %v3102
        %v3104 = vpop.xlane.xlu0 %3103
        %v3105 = vsel %vm896, %v3081, -inf
        %3106 = vmax.xlane.f32.xlu0 %v3105
        %v3107 = vpop.xlane.xlu0 %3106
        %v3108 = vsel %vm896, %v3082, -inf
        %3109 = vmax.xlane.f32.xlu0 %v3108
        %v3110 = vpop.xlane.xlu0 %3109
        %v3111 = vsel %vm896, %v3083, -inf
        %3112 = vmax.xlane.f32.xlu0 %v3111
        %v3113 = vpop.xlane.xlu0 %3112
        %v3114 = vsel %vm896, %v3084, -inf
        %3115 = vmax.xlane.f32.xlu0 %v3114
        %v3116 = vpop.xlane.xlu0 %3115
        %v3117 = vsel %vm896, %v3085, -inf
        %3118 = vmax.xlane.f32.xlu0 %v3117
        %v3119 = vpop.xlane.xlu0 %3118
        %v3120 = vsel %vm896, %v3086, -inf
        %3121 = vmax.xlane.f32.xlu0 %v3120
        %v3122 = vpop.xlane.xlu0 %3121
        %v3123 = vsel %vm896, %v3087, -inf
        %3124 = vmax.xlane.f32.xlu0 %v3123
        %v3125 = vpop.xlane.xlu0 %3124
        %v3126 = vsel %vm896, %v3088, -inf
        %3127 = vmax.xlane.f32.xlu0 %v3126
        %v3128 = vpop.xlane.xlu0 %3127
        %v3129 = vsel %vm896, %v3089, -inf
        %3130 = vmax.xlane.f32.xlu0 %v3129
        %v3131 = vpop.xlane.xlu0 %3130
        %v3132 = vsel %vm896, %v3090, -inf
        %3133 = vmax.xlane.f32.xlu0 %v3132
        %v3134 = vpop.xlane.xlu0 %3133
        %v3135 = vsel %vm896, %v3091, -inf
        %3136 = vmax.xlane.f32.xlu0 %v3135
        %v3137 = vpop.xlane.xlu0 %3136
        %v3138 = vsel %vm896, %v3092, -inf
        %3139 = vmax.xlane.f32.xlu0 %v3138
        %v3140 = vpop.xlane.xlu0 %3139
        %v3141 = vsub.f32 %v3077, %v3095
        %v3142 = vsub.f32 %v3078, %v3098
        %v3143 = vsub.f32 %v3079, %v3101
        %v3144 = vsub.f32 %v3080, %v3104
        %v3145 = vsub.f32 %v3081, %v3107
        %v3146 = vsub.f32 %v3082, %v3110
        %v3147 = vsub.f32 %v3083, %v3113
        %v3148 = vsub.f32 %v3084, %v3116
        %v3149 = vsub.f32 %v3085, %v3119
        %v3150 = vsub.f32 %v3086, %v3122
        %v3151 = vsub.f32 %v3087, %v3125
        %v3152 = vsub.f32 %v3088, %v3128
        %v3153 = vsub.f32 %v3089, %v3131
        %v3154 = vsub.f32 %v3090, %v3134
        %v3155 = vsub.f32 %v3091, %v3137
        %v3156 = vsub.f32 %v3092, %v3140
        %v3157 = vmul.f32 %v3141, 1.442695
        %v3158 = vpow.pop %v3157
        %v3159 = vmul.f32 %v3142, 1.442695
        %v3160 = vpow.pop %v3159
        %v3161 = vmul.f32 %v3143, 1.442695
        %v3162 = vpow.pop %v3161
        %v3163 = vmul.f32 %v3144, 1.442695
        %v3164 = vpow.pop %v3163
        %v3165 = vmul.f32 %v3145, 1.442695
        %v3166 = vpow.pop %v3165
        %v3167 = vmul.f32 %v3146, 1.442695
        %v3168 = vpow.pop %v3167
        %v3169 = vmul.f32 %v3147, 1.442695
        %v3170 = vpow.pop %v3169
        %v3171 = vmul.f32 %v3148, 1.442695
        %v3172 = vpow.pop %v3171
        %v3173 = vmul.f32 %v3149, 1.442695
        %v3174 = vpow.pop %v3173
        %v3175 = vmul.f32 %v3150, 1.442695
        %v3176 = vpow.pop %v3175
        %v3177 = vmul.f32 %v3151, 1.442695
        %v3178 = vpow.pop %v3177
        %v3179 = vmul.f32 %v3152, 1.442695
        %v3180 = vpow.pop %v3179
        %v3181 = vmul.f32 %v3153, 1.442695
        %v3182 = vpow.pop %v3181
        %v3183 = vmul.f32 %v3154, 1.442695
        %v3184 = vpow.pop %v3183
        %v3185 = vmul.f32 %v3155, 1.442695
        %v3186 = vpow.pop %v3185
        %v3187 = vmul.f32 %v3156, 1.442695
        %v3188 = vpow.pop %v3187
        %v3189 = vsel %vm896, %v3158, 0.0
        %3190 = vadd.xlane.f32.xlu0 %v3189
        %v3191 = vpop.xlane.xlu0 %3190
        %v3192 = vsel %vm896, %v3160, 0.0
        %3193 = vadd.xlane.f32.xlu0 %v3192
        %v3194 = vpop.xlane.xlu0 %3193
        %v3195 = vsel %vm896, %v3162, 0.0
        %3196 = vadd.xlane.f32.xlu0 %v3195
        %v3197 = vpop.xlane.xlu0 %3196
        %v3198 = vsel %vm896, %v3164, 0.0
        %3199 = vadd.xlane.f32.xlu0 %v3198
        %v3200 = vpop.xlane.xlu0 %3199
        %v3201 = vsel %vm896, %v3166, 0.0
        %3202 = vadd.xlane.f32.xlu0 %v3201
        %v3203 = vpop.xlane.xlu0 %3202
        %v3204 = vsel %vm896, %v3168, 0.0
        %3205 = vadd.xlane.f32.xlu0 %v3204
        %v3206 = vpop.xlane.xlu0 %3205
        %v3207 = vsel %vm896, %v3170, 0.0
        %3208 = vadd.xlane.f32.xlu0 %v3207
        %v3209 = vpop.xlane.xlu0 %3208
        %v3210 = vsel %vm896, %v3172, 0.0
        %3211 = vadd.xlane.f32.xlu0 %v3210
        %v3212 = vpop.xlane.xlu0 %3211
        %v3213 = vsel %vm896, %v3174, 0.0
        %3214 = vadd.xlane.f32.xlu0 %v3213
        %v3215 = vpop.xlane.xlu0 %3214
        %v3216 = vsel %vm896, %v3176, 0.0
        %3217 = vadd.xlane.f32.xlu0 %v3216
        %v3218 = vpop.xlane.xlu0 %3217
        %v3219 = vsel %vm896, %v3178, 0.0
        %3220 = vadd.xlane.f32.xlu0 %v3219
        %v3221 = vpop.xlane.xlu0 %3220
        %v3222 = vsel %vm896, %v3180, 0.0
        %3223 = vadd.xlane.f32.xlu0 %v3222
        %v3224 = vpop.xlane.xlu0 %3223
        %v3225 = vsel %vm896, %v3182, 0.0
        %3226 = vadd.xlane.f32.xlu0 %v3225
        %v3227 = vpop.xlane.xlu0 %3226
        %v3228 = vsel %vm896, %v3184, 0.0
        %3229 = vadd.xlane.f32.xlu0 %v3228
        %v3230 = vpop.xlane.xlu0 %3229
        %v3231 = vsel %vm896, %v3186, 0.0
        %3232 = vadd.xlane.f32.xlu0 %v3231
        %v3233 = vpop.xlane.xlu0 %3232
        %v3234 = vsel %vm896, %v3188, 0.0
        %3235 = vadd.xlane.f32.xlu0 %v3234
        %v3236 = vpop.xlane.xlu0 %3235
        %v3237 = vrcp.pop %v3191
        %v3238 = vrcp.pop %v3194
        %v3239 = vrcp.pop %v3197
        %v3240 = vrcp.pop %v3200
        %v3241 = vrcp.pop %v3203
        %v3242 = vrcp.pop %v3206
        %v3243 = vrcp.pop %v3209
        %v3244 = vrcp.pop %v3212
        %v3245 = vrcp.pop %v3215
        %v3246 = vrcp.pop %v3218
        %v3247 = vrcp.pop %v3221
        %v3248 = vrcp.pop %v3224
        %v3249 = vrcp.pop %v3227
        %v3250 = vrcp.pop %v3230
        %v3251 = vrcp.pop %v3233
        %v3252 = vrcp.pop %v3236
        %v3253 = vmul.f32 %v3158, %v3237
        %v3254 = vmul.f32 %v3160, %v3238
        %v3255 = vmul.f32 %v3162, %v3239
        %v3256 = vmul.f32 %v3164, %v3240
        %v3257 = vmul.f32 %v3166, %v3241
        %v3258 = vmul.f32 %v3168, %v3242
        %v3259 = vmul.f32 %v3170, %v3243
        %v3260 = vmul.f32 %v3172, %v3244
        %v3261 = vmul.f32 %v3174, %v3245
        %v3262 = vmul.f32 %v3176, %v3246
        %v3263 = vmul.f32 %v3178, %v3247
        %v3264 = vmul.f32 %v3180, %v3248
        %v3265 = vmul.f32 %v3182, %v3249
        %v3266 = vmul.f32 %v3184, %v3250
        %v3267 = vmul.f32 %v3186, %v3251
        %v3268 = vmul.f32 %v3188, %v3252
        %v3269 = vpack.c.bf16 %v3254, %v3253
        %v3270 = vpack.c.bf16 %v3256, %v3255
        %v3271 = vpack.c.bf16 %v3258, %v3257
        %v3272 = vpack.c.bf16 %v3260, %v3259
        %v3273 = vpack.c.bf16 %v3262, %v3261
        %v3274 = vpack.c.bf16 %v3264, %v3263
        %v3275 = vpack.c.bf16 %v3266, %v3265
        %v3276 = vpack.c.bf16 %v3268, %v3267
        %3277 = vrot.lane.b32.xlu0 %v455, 48
        %v3278 = vpop.permute.xlu0 %3277
        %v3281 = vsel %vm896, %v3269, 0
        %3283 = vmatprep.subr.bf16.mxu0 0
        %3284 = vmatpush1.bf16.msra.mxu0 0
        %3285 = vmatprep.subr.bf16.mxu0 0
        %3286 = vmatpush1.bf16.msra.mxu0 0
        %3287 = vmatprep.subr.bf16.mxu0 0
        %3288 = vmatpush1.bf16.msra.mxu0 0
        %3289 = vmatprep.subr.bf16.mxu0 0
        %3290 = vmatpush1.bf16.msra.mxu0 0
        %3291 = vmatprep.subr.bf16.mxu0 0
        %3292 = vmatpush1.bf16.msra.mxu0 0
        %3293 = vmatprep.subr.bf16.mxu0 0
        %3294 = vmatpush1.bf16.msra.mxu0 0
        %3295 = vmatprep.subr.bf16.mxu0 0
        %3296 = vmatpush1.bf16.msra.mxu0 0
        %3297 = vmatprep.subr.bf16.mxu0 0
        %3298 = vmatpush1.bf16.msra.mxu0 %v3278
        %3299 = vmatprep.subr.bf16.mxu0 0
        %3300 = vmatpush2.bf16.msra.mxu0 0
        %3301 = vmatprep.subr.bf16.mxu0 0
        %3302 = vmatpush2.bf16.msra.mxu0 0
        %3303 = vmatprep.subr.bf16.mxu0 0
        %3304 = vmatpush2.bf16.msra.mxu0 0
        %3305 = vmatprep.subr.bf16.mxu0 0
        %3306 = vmatpush2.bf16.msra.mxu0 0
        %3307 = vmatprep.subr.bf16.mxu0 0
        %3308 = vmatpush2.bf16.msra.mxu0 0
        %3309 = vmatprep.subr.bf16.mxu0 0
        %3310 = vmatpush2.bf16.msra.mxu0 0
        %3311 = vmatprep.subr.bf16.mxu0 0
        %3312 = vmatpush2.bf16.msra.mxu0 0
        %3313 = vmatprep.subr.bf16.mxu0 0
        %3314 = vmatpush2.bf16.msra.mxu0 0
        %3315 = vmatprep.mubr.bf16.mxu0 0
        %3316 = vmatmul.mubr.bf16.gmra.mxu0 %v3281
        %v3317 = vpop.f32.mrf.mxu0
        %v3318 = vadd.f32 0.0, %v3317
        %v3319 = vpop.f32.mrf.mxu0
        %v3320 = vpop.f32.mrf.mxu0
        %v3321 = vadd.f32 0.0, %v3320
        %v3322 = vpop.f32.mrf.mxu0
        %3323 = vdwg.mxu0
        %3324 = vrot.lane.b32.xlu0 %v456, 48
        %v3325 = vpop.permute.xlu0 %3324
        %v3328 = vsel %vm896, %v3270, 0
        %3330 = vmatprep.subr.bf16.mxu0 0
        %3331 = vmatpush1.bf16.msra.mxu0 0
        %3332 = vmatprep.subr.bf16.mxu0 0
        %3333 = vmatpush1.bf16.msra.mxu0 0
        %3334 = vmatprep.subr.bf16.mxu0 0
        %3335 = vmatpush1.bf16.msra.mxu0 0
        %3336 = vmatprep.subr.bf16.mxu0 0
        %3337 = vmatpush1.bf16.msra.mxu0 0
        %3338 = vmatprep.subr.bf16.mxu0 0
        %3339 = vmatpush1.bf16.msra.mxu0 0
        %3340 = vmatprep.subr.bf16.mxu0 0
        %3341 = vmatpush1.bf16.msra.mxu0 0
        %3342 = vmatprep.subr.bf16.mxu0 0
        %3343 = vmatpush1.bf16.msra.mxu0 0
        %3344 = vmatprep.subr.bf16.mxu0 0
        %3345 = vmatpush1.bf16.msra.mxu0 %v3325
        %3346 = vmatprep.subr.bf16.mxu0 0
        %3347 = vmatpush2.bf16.msra.mxu0 0
        %3348 = vmatprep.subr.bf16.mxu0 0
        %3349 = vmatpush2.bf16.msra.mxu0 0
        %3350 = vmatprep.subr.bf16.mxu0 0
        %3351 = vmatpush2.bf16.msra.mxu0 0
        %3352 = vmatprep.subr.bf16.mxu0 0
        %3353 = vmatpush2.bf16.msra.mxu0 0
        %3354 = vmatprep.subr.bf16.mxu0 0
        %3355 = vmatpush2.bf16.msra.mxu0 0
        %3356 = vmatprep.subr.bf16.mxu0 0
        %3357 = vmatpush2.bf16.msra.mxu0 0
        %3358 = vmatprep.subr.bf16.mxu0 0
        %3359 = vmatpush2.bf16.msra.mxu0 0
        %3360 = vmatprep.subr.bf16.mxu0 0
        %3361 = vmatpush2.bf16.msra.mxu0 0
        %3362 = vmatprep.mubr.bf16.mxu0 0
        %3363 = vmatmul.mubr.bf16.gmra.mxu0 %v3328
        %v3364 = vpop.f32.mrf.mxu0
        %v3365 = vadd.f32 0.0, %v3364
        %v3366 = vpop.f32.mrf.mxu0
        %v3367 = vpop.f32.mrf.mxu0
        %v3368 = vadd.f32 0.0, %v3367
        %v3369 = vpop.f32.mrf.mxu0
        %3370 = vdwg.mxu0
        %3371 = vrot.lane.b32.xlu0 %v457, 48
        %v3372 = vpop.permute.xlu0 %3371
        %v3375 = vsel %vm896, %v3271, 0
        %3377 = vmatprep.subr.bf16.mxu0 0
        %3378 = vmatpush1.bf16.msra.mxu0 0
        %3379 = vmatprep.subr.bf16.mxu0 0
        %3380 = vmatpush1.bf16.msra.mxu0 0
        %3381 = vmatprep.subr.bf16.mxu0 0
        %3382 = vmatpush1.bf16.msra.mxu0 0
        %3383 = vmatprep.subr.bf16.mxu0 0
        %3384 = vmatpush1.bf16.msra.mxu0 0
        %3385 = vmatprep.subr.bf16.mxu0 0
        %3386 = vmatpush1.bf16.msra.mxu0 0
        %3387 = vmatprep.subr.bf16.mxu0 0
        %3388 = vmatpush1.bf16.msra.mxu0 0
        %3389 = vmatprep.subr.bf16.mxu0 0
        %3390 = vmatpush1.bf16.msra.mxu0 0
        %3391 = vmatprep.subr.bf16.mxu0 0
        %3392 = vmatpush1.bf16.msra.mxu0 %v3372
        %3393 = vmatprep.subr.bf16.mxu0 0
        %3394 = vmatpush2.bf16.msra.mxu0 0
        %3395 = vmatprep.subr.bf16.mxu0 0
        %3396 = vmatpush2.bf16.msra.mxu0 0
        %3397 = vmatprep.subr.bf16.mxu0 0
        %3398 = vmatpush2.bf16.msra.mxu0 0
        %3399 = vmatprep.subr.bf16.mxu0 0
        %3400 = vmatpush2.bf16.msra.mxu0 0
        %3401 = vmatprep.subr.bf16.mxu0 0
        %3402 = vmatpush2.bf16.msra.mxu0 0
        %3403 = vmatprep.subr.bf16.mxu0 0
        %3404 = vmatpush2.bf16.msra.mxu0 0
        %3405 = vmatprep.subr.bf16.mxu0 0
        %3406 = vmatpush2.bf16.msra.mxu0 0
        %3407 = vmatprep.subr.bf16.mxu0 0
        %3408 = vmatpush2.bf16.msra.mxu0 0
        %3409 = vmatprep.mubr.bf16.mxu0 0
        %3410 = vmatmul.mubr.bf16.gmra.mxu0 %v3375
        %v3411 = vpop.f32.mrf.mxu0
        %v3412 = vadd.f32 0.0, %v3411
        %v3413 = vpop.f32.mrf.mxu0
        %v3414 = vpop.f32.mrf.mxu0
        %v3415 = vadd.f32 0.0, %v3414
        %v3416 = vpop.f32.mrf.mxu0
        %3417 = vdwg.mxu0
        %3418 = vrot.lane.b32.xlu0 %v458, 48
        %v3419 = vpop.permute.xlu0 %3418
        %v3422 = vsel %vm896, %v3272, 0
        %3424 = vmatprep.subr.bf16.mxu0 0
        %3425 = vmatpush1.bf16.msra.mxu0 0
        %3426 = vmatprep.subr.bf16.mxu0 0
        %3427 = vmatpush1.bf16.msra.mxu0 0
        %3428 = vmatprep.subr.bf16.mxu0 0
        %3429 = vmatpush1.bf16.msra.mxu0 0
        %3430 = vmatprep.subr.bf16.mxu0 0
        %3431 = vmatpush1.bf16.msra.mxu0 0
        %3432 = vmatprep.subr.bf16.mxu0 0
        %3433 = vmatpush1.bf16.msra.mxu0 0
        %3434 = vmatprep.subr.bf16.mxu0 0
        %3435 = vmatpush1.bf16.msra.mxu0 0
        %3436 = vmatprep.subr.bf16.mxu0 0
        %3437 = vmatpush1.bf16.msra.mxu0 0
        %3438 = vmatprep.subr.bf16.mxu0 0
        %3439 = vmatpush1.bf16.msra.mxu0 %v3419
        %3440 = vmatprep.subr.bf16.mxu0 0
        %3441 = vmatpush2.bf16.msra.mxu0 0
        %3442 = vmatprep.subr.bf16.mxu0 0
        %3443 = vmatpush2.bf16.msra.mxu0 0
        %3444 = vmatprep.subr.bf16.mxu0 0
        %3445 = vmatpush2.bf16.msra.mxu0 0
        %3446 = vmatprep.subr.bf16.mxu0 0
        %3447 = vmatpush2.bf16.msra.mxu0 0
        %3448 = vmatprep.subr.bf16.mxu0 0
        %3449 = vmatpush2.bf16.msra.mxu0 0
        %3450 = vmatprep.subr.bf16.mxu0 0
        %3451 = vmatpush2.bf16.msra.mxu0 0
        %3452 = vmatprep.subr.bf16.mxu0 0
        %3453 = vmatpush2.bf16.msra.mxu0 0
        %3454 = vmatprep.subr.bf16.mxu0 0
        %3455 = vmatpush2.bf16.msra.mxu0 0
        %3456 = vmatprep.mubr.bf16.mxu0 0
        %3457 = vmatmul.mubr.bf16.gmra.mxu0 %v3422
        %v3458 = vpop.f32.mrf.mxu0
        %v3459 = vadd.f32 0.0, %v3458
        %v3460 = vpop.f32.mrf.mxu0
        %v3461 = vpop.f32.mrf.mxu0
        %v3462 = vadd.f32 0.0, %v3461
        %v3463 = vpop.f32.mrf.mxu0
        %3464 = vdwg.mxu0
        %3465 = vrot.lane.b32.xlu0 %v459, 48
        %v3466 = vpop.permute.xlu0 %3465
        %v3469 = vsel %vm896, %v3273, 0
        %3471 = vmatprep.subr.bf16.mxu0 0
        %3472 = vmatpush1.bf16.msra.mxu0 0
        %3473 = vmatprep.subr.bf16.mxu0 0
        %3474 = vmatpush1.bf16.msra.mxu0 0
        %3475 = vmatprep.subr.bf16.mxu0 0
        %3476 = vmatpush1.bf16.msra.mxu0 0
        %3477 = vmatprep.subr.bf16.mxu0 0
        %3478 = vmatpush1.bf16.msra.mxu0 0
        %3479 = vmatprep.subr.bf16.mxu0 0
        %3480 = vmatpush1.bf16.msra.mxu0 0
        %3481 = vmatprep.subr.bf16.mxu0 0
        %3482 = vmatpush1.bf16.msra.mxu0 0
        %3483 = vmatprep.subr.bf16.mxu0 0
        %3484 = vmatpush1.bf16.msra.mxu0 0
        %3485 = vmatprep.subr.bf16.mxu0 0
        %3486 = vmatpush1.bf16.msra.mxu0 %v3466
        %3487 = vmatprep.subr.bf16.mxu0 0
        %3488 = vmatpush2.bf16.msra.mxu0 0
        %3489 = vmatprep.subr.bf16.mxu0 0
        %3490 = vmatpush2.bf16.msra.mxu0 0
        %3491 = vmatprep.subr.bf16.mxu0 0
        %3492 = vmatpush2.bf16.msra.mxu0 0
        %3493 = vmatprep.subr.bf16.mxu0 0
        %3494 = vmatpush2.bf16.msra.mxu0 0
        %3495 = vmatprep.subr.bf16.mxu0 0
        %3496 = vmatpush2.bf16.msra.mxu0 0
        %3497 = vmatprep.subr.bf16.mxu0 0
        %3498 = vmatpush2.bf16.msra.mxu0 0
        %3499 = vmatprep.subr.bf16.mxu0 0
        %3500 = vmatpush2.bf16.msra.mxu0 0
        %3501 = vmatprep.subr.bf16.mxu0 0
        %3502 = vmatpush2.bf16.msra.mxu0 0
        %3503 = vmatprep.mubr.bf16.mxu0 0
        %3504 = vmatmul.mubr.bf16.gmra.mxu0 %v3469
        %v3505 = vpop.f32.mrf.mxu0
        %v3506 = vadd.f32 0.0, %v3505
        %v3507 = vpop.f32.mrf.mxu0
        %v3508 = vpop.f32.mrf.mxu0
        %v3509 = vadd.f32 0.0, %v3508
        %v3510 = vpop.f32.mrf.mxu0
        %3511 = vdwg.mxu0
        %3512 = vrot.lane.b32.xlu0 %v460, 48
        %v3513 = vpop.permute.xlu0 %3512
        %v3516 = vsel %vm896, %v3274, 0
        %3518 = vmatprep.subr.bf16.mxu0 0
        %3519 = vmatpush1.bf16.msra.mxu0 0
        %3520 = vmatprep.subr.bf16.mxu0 0
        %3521 = vmatpush1.bf16.msra.mxu0 0
        %3522 = vmatprep.subr.bf16.mxu0 0
        %3523 = vmatpush1.bf16.msra.mxu0 0
        %3524 = vmatprep.subr.bf16.mxu0 0
        %3525 = vmatpush1.bf16.msra.mxu0 0
        %3526 = vmatprep.subr.bf16.mxu0 0
        %3527 = vmatpush1.bf16.msra.mxu0 0
        %3528 = vmatprep.subr.bf16.mxu0 0
        %3529 = vmatpush1.bf16.msra.mxu0 0
        %3530 = vmatprep.subr.bf16.mxu0 0
        %3531 = vmatpush1.bf16.msra.mxu0 0
        %3532 = vmatprep.subr.bf16.mxu0 0
        %3533 = vmatpush1.bf16.msra.mxu0 %v3513
        %3534 = vmatprep.subr.bf16.mxu0 0
        %3535 = vmatpush2.bf16.msra.mxu0 0
        %3536 = vmatprep.subr.bf16.mxu0 0
        %3537 = vmatpush2.bf16.msra.mxu0 0
        %3538 = vmatprep.subr.bf16.mxu0 0
        %3539 = vmatpush2.bf16.msra.mxu0 0
        %3540 = vmatprep.subr.bf16.mxu0 0
        %3541 = vmatpush2.bf16.msra.mxu0 0
        %3542 = vmatprep.subr.bf16.mxu0 0
        %3543 = vmatpush2.bf16.msra.mxu0 0
        %3544 = vmatprep.subr.bf16.mxu0 0
        %3545 = vmatpush2.bf16.msra.mxu0 0
        %3546 = vmatprep.subr.bf16.mxu0 0
        %3547 = vmatpush2.bf16.msra.mxu0 0
        %3548 = vmatprep.subr.bf16.mxu0 0
        %3549 = vmatpush2.bf16.msra.mxu0 0
        %3550 = vmatprep.mubr.bf16.mxu0 0
        %3551 = vmatmul.mubr.bf16.gmra.mxu0 %v3516
        %v3552 = vpop.f32.mrf.mxu0
        %v3553 = vadd.f32 0.0, %v3552
        %v3554 = vpop.f32.mrf.mxu0
        %v3555 = vpop.f32.mrf.mxu0
        %v3556 = vadd.f32 0.0, %v3555
        %v3557 = vpop.f32.mrf.mxu0
        %3558 = vdwg.mxu0
        %3559 = vrot.lane.b32.xlu0 %v461, 48
        %v3560 = vpop.permute.xlu0 %3559
        %v3563 = vsel %vm896, %v3275, 0
        %3565 = vmatprep.subr.bf16.mxu0 0
        %3566 = vmatpush1.bf16.msra.mxu0 0
        %3567 = vmatprep.subr.bf16.mxu0 0
        %3568 = vmatpush1.bf16.msra.mxu0 0
        %3569 = vmatprep.subr.bf16.mxu0 0
        %3570 = vmatpush1.bf16.msra.mxu0 0
        %3571 = vmatprep.subr.bf16.mxu0 0
        %3572 = vmatpush1.bf16.msra.mxu0 0
        %3573 = vmatprep.subr.bf16.mxu0 0
        %3574 = vmatpush1.bf16.msra.mxu0 0
        %3575 = vmatprep.subr.bf16.mxu0 0
        %3576 = vmatpush1.bf16.msra.mxu0 0
        %3577 = vmatprep.subr.bf16.mxu0 0
        %3578 = vmatpush1.bf16.msra.mxu0 0
        %3579 = vmatprep.subr.bf16.mxu0 0
        %3580 = vmatpush1.bf16.msra.mxu0 %v3560
        %3581 = vmatprep.subr.bf16.mxu0 0
        %3582 = vmatpush2.bf16.msra.mxu0 0
        %3583 = vmatprep.subr.bf16.mxu0 0
        %3584 = vmatpush2.bf16.msra.mxu0 0
        %3585 = vmatprep.subr.bf16.mxu0 0
        %3586 = vmatpush2.bf16.msra.mxu0 0
        %3587 = vmatprep.subr.bf16.mxu0 0
        %3588 = vmatpush2.bf16.msra.mxu0 0
        %3589 = vmatprep.subr.bf16.mxu0 0
        %3590 = vmatpush2.bf16.msra.mxu0 0
        %3591 = vmatprep.subr.bf16.mxu0 0
        %3592 = vmatpush2.bf16.msra.mxu0 0
        %3593 = vmatprep.subr.bf16.mxu0 0
        %3594 = vmatpush2.bf16.msra.mxu0 0
        %3595 = vmatprep.subr.bf16.mxu0 0
        %3596 = vmatpush2.bf16.msra.mxu0 0
        %3597 = vmatprep.mubr.bf16.mxu0 0
        %3598 = vmatmul.mubr.bf16.gmra.mxu0 %v3563
        %v3599 = vpop.f32.mrf.mxu0
        %v3600 = vadd.f32 0.0, %v3599
        %v3601 = vpop.f32.mrf.mxu0
        %v3602 = vpop.f32.mrf.mxu0
        %v3603 = vadd.f32 0.0, %v3602
        %v3604 = vpop.f32.mrf.mxu0
        %3605 = vdwg.mxu0
        %3606 = vrot.lane.b32.xlu0 %v462, 48
        %v3607 = vpop.permute.xlu0 %3606
        %v3610 = vsel %vm896, %v3276, 0
        %3612 = vmatprep.subr.bf16.mxu0 0
        %3613 = vmatpush1.bf16.msra.mxu0 0
        %3614 = vmatprep.subr.bf16.mxu0 0
        %3615 = vmatpush1.bf16.msra.mxu0 0
        %3616 = vmatprep.subr.bf16.mxu0 0
        %3617 = vmatpush1.bf16.msra.mxu0 0
        %3618 = vmatprep.subr.bf16.mxu0 0
        %3619 = vmatpush1.bf16.msra.mxu0 0
        %3620 = vmatprep.subr.bf16.mxu0 0
        %3621 = vmatpush1.bf16.msra.mxu0 0
        %3622 = vmatprep.subr.bf16.mxu0 0
        %3623 = vmatpush1.bf16.msra.mxu0 0
        %3624 = vmatprep.subr.bf16.mxu0 0
        %3625 = vmatpush1.bf16.msra.mxu0 0
        %3626 = vmatprep.subr.bf16.mxu0 0
        %3627 = vmatpush1.bf16.msra.mxu0 %v3607
        %3628 = vmatprep.subr.bf16.mxu0 0
        %3629 = vmatpush2.bf16.msra.mxu0 0
        %3630 = vmatprep.subr.bf16.mxu0 0
        %3631 = vmatpush2.bf16.msra.mxu0 0
        %3632 = vmatprep.subr.bf16.mxu0 0
        %3633 = vmatpush2.bf16.msra.mxu0 0
        %3634 = vmatprep.subr.bf16.mxu0 0
        %3635 = vmatpush2.bf16.msra.mxu0 0
        %3636 = vmatprep.subr.bf16.mxu0 0
        %3637 = vmatpush2.bf16.msra.mxu0 0
        %3638 = vmatprep.subr.bf16.mxu0 0
        %3639 = vmatpush2.bf16.msra.mxu0 0
        %3640 = vmatprep.subr.bf16.mxu0 0
        %3641 = vmatpush2.bf16.msra.mxu0 0
        %3642 = vmatprep.subr.bf16.mxu0 0
        %3643 = vmatpush2.bf16.msra.mxu0 0
        %3644 = vmatprep.mubr.bf16.mxu0 0
        %3645 = vmatmul.mubr.bf16.gmra.mxu0 %v3610
        %v3646 = vpop.f32.mrf.mxu0
        %v3647 = vadd.f32 0.0, %v3646
        %v3648 = vpop.f32.mrf.mxu0
        %v3649 = vpop.f32.mrf.mxu0
        %v3650 = vadd.f32 0.0, %v3649
        %v3651 = vpop.f32.mrf.mxu0
        %3652 = vdwg.mxu0
        %v3653 = vpack.c.bf16 %v3321, %v3318
        %v3654 = vpack.c.bf16 %v3368, %v3365
        %v3655 = vpack.c.bf16 %v3415, %v3412
        %v3656 = vpack.c.bf16 %v3462, %v3459
        %v3657 = vpack.c.bf16 %v3509, %v3506
        %v3658 = vpack.c.bf16 %v3556, %v3553
        %v3659 = vpack.c.bf16 %v3603, %v3600
        %v3660 = vpack.c.bf16 %v3650, %v3647
        %v3669 = vunpack.c.l.b16 %v3653
        %v3670 = vunpack.c.h.b16 %v3653
        %v3671 = vunpack.c.l.b16 %v3654
        %v3672 = vunpack.c.h.b16 %v3654
        %v3673 = vunpack.c.l.b16 %v3655
        %v3674 = vunpack.c.h.b16 %v3655
        %v3675 = vunpack.c.l.b16 %v3656
        %v3676 = vunpack.c.h.b16 %v3656
        %v3677 = vunpack.c.l.b16 %v3657
        %v3678 = vunpack.c.h.b16 %v3657
        %v3679 = vunpack.c.l.b16 %v3658
        %v3680 = vunpack.c.h.b16 %v3658
        %v3681 = vunpack.c.l.b16 %v3659
        %v3682 = vunpack.c.h.b16 %v3659
        %v3683 = vunpack.c.l.b16 %v3660
        %v3684 = vunpack.c.h.b16 %v3660
        %v3685 = vpack.c.b16 %v3669, %v3669
        %v3686 = vpack.c.b16 %v3670, %v3670
        %v3687 = vpack.c.b16 %v3671, %v3671
        %v3688 = vpack.c.b16 %v3672, %v3672
        %v3689 = vpack.c.b16 %v3673, %v3673
        %v3690 = vpack.c.b16 %v3674, %v3674
        %v3691 = vpack.c.b16 %v3675, %v3675
        %v3692 = vpack.c.b16 %v3676, %v3676
        %v3693 = vpack.c.b16 %v3677, %v3677
        %v3694 = vpack.c.b16 %v3678, %v3678
        %v3695 = vpack.c.b16 %v3679, %v3679
        %v3696 = vpack.c.b16 %v3680, %v3680
        %v3697 = vpack.c.b16 %v3681, %v3681
        %v3698 = vpack.c.b16 %v3682, %v3682
        %v3699 = vpack.c.b16 %v3683, %v3683
        %v3700 = vpack.c.b16 %v3684, %v3684
        %3701 = vrot.lane.b32.xlu0 %v3685, 16
        %v3702 = vpop.permute.xlu0 %3701
        %3703 = vrot.lane.b32.xlu0 %v3686, 16
        %v3704 = vpop.permute.xlu0 %3703
        %3705 = vrot.lane.b32.xlu0 %v3687, 16
        %v3706 = vpop.permute.xlu0 %3705
        %3707 = vrot.lane.b32.xlu0 %v3688, 16
        %v3708 = vpop.permute.xlu0 %3707
        %3709 = vrot.lane.b32.xlu0 %v3689, 16
        %v3710 = vpop.permute.xlu0 %3709
        %3711 = vrot.lane.b32.xlu0 %v3690, 16
        %v3712 = vpop.permute.xlu0 %3711
        %3713 = vrot.lane.b32.xlu0 %v3691, 16
        %v3714 = vpop.permute.xlu0 %3713
        %3715 = vrot.lane.b32.xlu0 %v3692, 16
        %v3716 = vpop.permute.xlu0 %3715
        %3717 = vrot.lane.b32.xlu0 %v3693, 16
        %v3718 = vpop.permute.xlu0 %3717
        %3719 = vrot.lane.b32.xlu0 %v3694, 16
        %v3720 = vpop.permute.xlu0 %3719
        %3721 = vrot.lane.b32.xlu0 %v3695, 16
        %v3722 = vpop.permute.xlu0 %3721
        %3723 = vrot.lane.b32.xlu0 %v3696, 16
        %v3724 = vpop.permute.xlu0 %3723
        %3725 = vrot.lane.b32.xlu0 %v3697, 16
        %v3726 = vpop.permute.xlu0 %3725
        %3727 = vrot.lane.b32.xlu0 %v3698, 16
        %v3728 = vpop.permute.xlu0 %3727
        %3729 = vrot.lane.b32.xlu0 %v3699, 16
        %v3730 = vpop.permute.xlu0 %3729
        %3731 = vrot.lane.b32.xlu0 %v3700, 16
        %v3732 = vpop.permute.xlu0 %3731
        %vm3749 = vcmask 191616
        %3750 = vst.msk [vmem:[#allocation2] sm:$0xf] %vm3749, %v3702
        %3751 = vst.msk [vmem:[#allocation2 + $0x4] sm:$0xf] %vm3749, %v3704
        %3752 = vst.msk [vmem:[#allocation2 + $0x8] sm:$0xf] %vm3749, %v3706
        %3753 = vst.msk [vmem:[#allocation2 + $0xc] sm:$0xf] %vm3749, %v3708
        %3754 = vst.msk [vmem:[#allocation2 + $0x10] sm:$0xf] %vm3749, %v3710
        %3755 = vst.msk [vmem:[#allocation2 + $0x14] sm:$0xf] %vm3749, %v3712
        %3756 = vst.msk [vmem:[#allocation2 + $0x18] sm:$0xf] %vm3749, %v3714
        %3757 = vst.msk [vmem:[#allocation2 + $0x1c] sm:$0xf] %vm3749, %v3716
        %3758 = vst.msk [vmem:[#allocation2 + $0x20] sm:$0xf] %vm3749, %v3718
        %3759 = vst.msk [vmem:[#allocation2 + $0x24] sm:$0xf] %vm3749, %v3720
        %3760 = vst.msk [vmem:[#allocation2 + $0x28] sm:$0xf] %vm3749, %v3722
        %3761 = vst.msk [vmem:[#allocation2 + $0x2c] sm:$0xf] %vm3749, %v3724
        %3762 = vst.msk [vmem:[#allocation2 + $0x30] sm:$0xf] %vm3749, %v3726
        %3763 = vst.msk [vmem:[#allocation2 + $0x34] sm:$0xf] %vm3749, %v3728
        %3764 = vst.msk [vmem:[#allocation2 + $0x38] sm:$0xf] %vm3749, %v3730
        %3765 = vst.msk [vmem:[#allocation2 + $0x3c] sm:$0xf] %vm3749, %v3732
        %3766 = vrot.lane.b32.xlu0 %v455, 104
        %v3767 = vpop.permute.xlu0 %3766
        %3768 = vrot.lane.b32.xlu0 %v455, 72
        %v3769 = vpop.permute.xlu0 %3768
        %v3771 = vsel %vm466, %v3767, 0
        %v3774 = vsel %vm466, %v3769, 0
        %3776 = vmatprep.subr.bf16.mxu0 0
        %3777 = vmatpush1.bf16.xpose.msra.mxu0 0
        %3778 = vmatprep.subr.bf16.mxu0 0
        %3779 = vmatpush1.bf16.xpose.msra.mxu0 0
        %3780 = vmatprep.subr.bf16.mxu0 0
        %3781 = vmatpush1.bf16.xpose.msra.mxu0 0
        %3782 = vmatprep.subr.bf16.mxu0 0
        %3783 = vmatpush1.bf16.xpose.msra.mxu0 0
        %3784 = vmatprep.subr.bf16.mxu0 0
        %3785 = vmatpush1.bf16.xpose.msra.mxu0 0
        %3786 = vmatprep.subr.bf16.mxu0 0
        %3787 = vmatpush1.bf16.xpose.msra.mxu0 0
        %3788 = vmatprep.subr.bf16.mxu0 0
        %3789 = vmatpush1.bf16.xpose.msra.mxu0 0
        %3790 = vmatprep.subr.bf16.mxu0 0
        %3791 = vmatpush1.bf16.xpose.msra.mxu0 %v3774
        %3792 = vmatprep.subr.bf16.mxu0 0
        %3793 = vmatpush2.bf16.xpose.msra.mxu0 0
        %3794 = vmatprep.subr.bf16.mxu0 0
        %3795 = vmatpush2.bf16.xpose.msra.mxu0 0
        %3796 = vmatprep.subr.bf16.mxu0 0
        %3797 = vmatpush2.bf16.xpose.msra.mxu0 0
        %3798 = vmatprep.subr.bf16.mxu0 0
        %3799 = vmatpush2.bf16.xpose.msra.mxu0 0
        %3800 = vmatprep.subr.bf16.mxu0 0
        %3801 = vmatpush2.bf16.xpose.msra.mxu0 0
        %3802 = vmatprep.subr.bf16.mxu0 0
        %3803 = vmatpush2.bf16.xpose.msra.mxu0 0
        %3804 = vmatprep.subr.bf16.mxu0 0
        %3805 = vmatpush2.bf16.xpose.msra.mxu0 0
        %3806 = vmatprep.subr.bf16.mxu0 0
        %3807 = vmatpush2.bf16.xpose.msra.mxu0 0
        %3808 = vmatprep.mubr.bf16.mxu0 0
        %3809 = vmatmul.mubr.bf16.gmra.mxu0 %v3771
        %v3810 = vpop.f32.mrf.mxu0
        %v3811 = vadd.f32 0.0, %v3810
        %v3812 = vpop.f32.mrf.mxu0
        %v3813 = vpop.f32.mrf.mxu0
        %v3814 = vadd.f32 0.0, %v3813
        %v3815 = vpop.f32.mrf.mxu0
        %3816 = vdwg.mxu0
        %3817 = vrot.lane.b32.xlu0 %v456, 104
        %v3818 = vpop.permute.xlu0 %3817
        %3819 = vrot.lane.b32.xlu0 %v456, 72
        %v3820 = vpop.permute.xlu0 %3819
        %v3822 = vsel %vm466, %v3818, 0
        %v3825 = vsel %vm466, %v3820, 0
        %3827 = vmatprep.subr.bf16.mxu0 0
        %3828 = vmatpush1.bf16.xpose.msra.mxu0 0
        %3829 = vmatprep.subr.bf16.mxu0 0
        %3830 = vmatpush1.bf16.xpose.msra.mxu0 0
        %3831 = vmatprep.subr.bf16.mxu0 0
        %3832 = vmatpush1.bf16.xpose.msra.mxu0 0
        %3833 = vmatprep.subr.bf16.mxu0 0
        %3834 = vmatpush1.bf16.xpose.msra.mxu0 0
        %3835 = vmatprep.subr.bf16.mxu0 0
        %3836 = vmatpush1.bf16.xpose.msra.mxu0 0
        %3837 = vmatprep.subr.bf16.mxu0 0
        %3838 = vmatpush1.bf16.xpose.msra.mxu0 0
        %3839 = vmatprep.subr.bf16.mxu0 0
        %3840 = vmatpush1.bf16.xpose.msra.mxu0 0
        %3841 = vmatprep.subr.bf16.mxu0 0
        %3842 = vmatpush1.bf16.xpose.msra.mxu0 %v3825
        %3843 = vmatprep.subr.bf16.mxu0 0
        %3844 = vmatpush2.bf16.xpose.msra.mxu0 0
        %3845 = vmatprep.subr.bf16.mxu0 0
        %3846 = vmatpush2.bf16.xpose.msra.mxu0 0
        %3847 = vmatprep.subr.bf16.mxu0 0
        %3848 = vmatpush2.bf16.xpose.msra.mxu0 0
        %3849 = vmatprep.subr.bf16.mxu0 0
        %3850 = vmatpush2.bf16.xpose.msra.mxu0 0
        %3851 = vmatprep.subr.bf16.mxu0 0
        %3852 = vmatpush2.bf16.xpose.msra.mxu0 0
        %3853 = vmatprep.subr.bf16.mxu0 0
        %3854 = vmatpush2.bf16.xpose.msra.mxu0 0
        %3855 = vmatprep.subr.bf16.mxu0 0
        %3856 = vmatpush2.bf16.xpose.msra.mxu0 0
        %3857 = vmatprep.subr.bf16.mxu0 0
        %3858 = vmatpush2.bf16.xpose.msra.mxu0 0
        %3859 = vmatprep.mubr.bf16.mxu0 0
        %3860 = vmatmul.mubr.bf16.gmra.mxu0 %v3822
        %v3861 = vpop.f32.mrf.mxu0
        %v3862 = vadd.f32 0.0, %v3861
        %v3863 = vpop.f32.mrf.mxu0
        %v3864 = vpop.f32.mrf.mxu0
        %v3865 = vadd.f32 0.0, %v3864
        %v3866 = vpop.f32.mrf.mxu0
        %3867 = vdwg.mxu0
        %3868 = vrot.lane.b32.xlu0 %v457, 104
        %v3869 = vpop.permute.xlu0 %3868
        %3870 = vrot.lane.b32.xlu0 %v457, 72
        %v3871 = vpop.permute.xlu0 %3870
        %v3873 = vsel %vm466, %v3869, 0
        %v3876 = vsel %vm466, %v3871, 0
        %3878 = vmatprep.subr.bf16.mxu0 0
        %3879 = vmatpush1.bf16.xpose.msra.mxu0 0
        %3880 = vmatprep.subr.bf16.mxu0 0
        %3881 = vmatpush1.bf16.xpose.msra.mxu0 0
        %3882 = vmatprep.subr.bf16.mxu0 0
        %3883 = vmatpush1.bf16.xpose.msra.mxu0 0
        %3884 = vmatprep.subr.bf16.mxu0 0
        %3885 = vmatpush1.bf16.xpose.msra.mxu0 0
        %3886 = vmatprep.subr.bf16.mxu0 0
        %3887 = vmatpush1.bf16.xpose.msra.mxu0 0
        %3888 = vmatprep.subr.bf16.mxu0 0
        %3889 = vmatpush1.bf16.xpose.msra.mxu0 0
        %3890 = vmatprep.subr.bf16.mxu0 0
        %3891 = vmatpush1.bf16.xpose.msra.mxu0 0
        %3892 = vmatprep.subr.bf16.mxu0 0
        %3893 = vmatpush1.bf16.xpose.msra.mxu0 %v3876
        %3894 = vmatprep.subr.bf16.mxu0 0
        %3895 = vmatpush2.bf16.xpose.msra.mxu0 0
        %3896 = vmatprep.subr.bf16.mxu0 0
        %3897 = vmatpush2.bf16.xpose.msra.mxu0 0
        %3898 = vmatprep.subr.bf16.mxu0 0
        %3899 = vmatpush2.bf16.xpose.msra.mxu0 0
        %3900 = vmatprep.subr.bf16.mxu0 0
        %3901 = vmatpush2.bf16.xpose.msra.mxu0 0
        %3902 = vmatprep.subr.bf16.mxu0 0
        %3903 = vmatpush2.bf16.xpose.msra.mxu0 0
        %3904 = vmatprep.subr.bf16.mxu0 0
        %3905 = vmatpush2.bf16.xpose.msra.mxu0 0
        %3906 = vmatprep.subr.bf16.mxu0 0
        %3907 = vmatpush2.bf16.xpose.msra.mxu0 0
        %3908 = vmatprep.subr.bf16.mxu0 0
        %3909 = vmatpush2.bf16.xpose.msra.mxu0 0
        %3910 = vmatprep.mubr.bf16.mxu0 0
        %3911 = vmatmul.mubr.bf16.gmra.mxu0 %v3873
        %v3912 = vpop.f32.mrf.mxu0
        %v3913 = vadd.f32 0.0, %v3912
        %v3914 = vpop.f32.mrf.mxu0
        %v3915 = vpop.f32.mrf.mxu0
        %v3916 = vadd.f32 0.0, %v3915
        %v3917 = vpop.f32.mrf.mxu0
        %3918 = vdwg.mxu0
        %3919 = vrot.lane.b32.xlu0 %v458, 104
        %v3920 = vpop.permute.xlu0 %3919
        %3921 = vrot.lane.b32.xlu0 %v458, 72
        %v3922 = vpop.permute.xlu0 %3921
        %v3924 = vsel %vm466, %v3920, 0
        %v3927 = vsel %vm466, %v3922, 0
        %3929 = vmatprep.subr.bf16.mxu0 0
        %3930 = vmatpush1.bf16.xpose.msra.mxu0 0
        %3931 = vmatprep.subr.bf16.mxu0 0
        %3932 = vmatpush1.bf16.xpose.msra.mxu0 0
        %3933 = vmatprep.subr.bf16.mxu0 0
        %3934 = vmatpush1.bf16.xpose.msra.mxu0 0
        %3935 = vmatprep.subr.bf16.mxu0 0
        %3936 = vmatpush1.bf16.xpose.msra.mxu0 0
        %3937 = vmatprep.subr.bf16.mxu0 0
        %3938 = vmatpush1.bf16.xpose.msra.mxu0 0
        %3939 = vmatprep.subr.bf16.mxu0 0
        %3940 = vmatpush1.bf16.xpose.msra.mxu0 0
        %3941 = vmatprep.subr.bf16.mxu0 0
        %3942 = vmatpush1.bf16.xpose.msra.mxu0 0
        %3943 = vmatprep.subr.bf16.mxu0 0
        %3944 = vmatpush1.bf16.xpose.msra.mxu0 %v3927
        %3945 = vmatprep.subr.bf16.mxu0 0
        %3946 = vmatpush2.bf16.xpose.msra.mxu0 0
        %3947 = vmatprep.subr.bf16.mxu0 0
        %3948 = vmatpush2.bf16.xpose.msra.mxu0 0
        %3949 = vmatprep.subr.bf16.mxu0 0
        %3950 = vmatpush2.bf16.xpose.msra.mxu0 0
        %3951 = vmatprep.subr.bf16.mxu0 0
        %3952 = vmatpush2.bf16.xpose.msra.mxu0 0
        %3953 = vmatprep.subr.bf16.mxu0 0
        %3954 = vmatpush2.bf16.xpose.msra.mxu0 0
        %3955 = vmatprep.subr.bf16.mxu0 0
        %3956 = vmatpush2.bf16.xpose.msra.mxu0 0
        %3957 = vmatprep.subr.bf16.mxu0 0
        %3958 = vmatpush2.bf16.xpose.msra.mxu0 0
        %3959 = vmatprep.subr.bf16.mxu0 0
        %3960 = vmatpush2.bf16.xpose.msra.mxu0 0
        %3961 = vmatprep.mubr.bf16.mxu0 0
        %3962 = vmatmul.mubr.bf16.gmra.mxu0 %v3924
        %v3963 = vpop.f32.mrf.mxu0
        %v3964 = vadd.f32 0.0, %v3963
        %v3965 = vpop.f32.mrf.mxu0
        %v3966 = vpop.f32.mrf.mxu0
        %v3967 = vadd.f32 0.0, %v3966
        %v3968 = vpop.f32.mrf.mxu0
        %3969 = vdwg.mxu0
        %3970 = vrot.lane.b32.xlu0 %v459, 104
        %v3971 = vpop.permute.xlu0 %3970
        %3972 = vrot.lane.b32.xlu0 %v459, 72
        %v3973 = vpop.permute.xlu0 %3972
        %v3975 = vsel %vm466, %v3971, 0
        %v3978 = vsel %vm466, %v3973, 0
        %3980 = vmatprep.subr.bf16.mxu0 0
        %3981 = vmatpush1.bf16.xpose.msra.mxu0 0
        %3982 = vmatprep.subr.bf16.mxu0 0
        %3983 = vmatpush1.bf16.xpose.msra.mxu0 0
        %3984 = vmatprep.subr.bf16.mxu0 0
        %3985 = vmatpush1.bf16.xpose.msra.mxu0 0
        %3986 = vmatprep.subr.bf16.mxu0 0
        %3987 = vmatpush1.bf16.xpose.msra.mxu0 0
        %3988 = vmatprep.subr.bf16.mxu0 0
        %3989 = vmatpush1.bf16.xpose.msra.mxu0 0
        %3990 = vmatprep.subr.bf16.mxu0 0
        %3991 = vmatpush1.bf16.xpose.msra.mxu0 0
        %3992 = vmatprep.subr.bf16.mxu0 0
        %3993 = vmatpush1.bf16.xpose.msra.mxu0 0
        %3994 = vmatprep.subr.bf16.mxu0 0
        %3995 = vmatpush1.bf16.xpose.msra.mxu0 %v3978
        %3996 = vmatprep.subr.bf16.mxu0 0
        %3997 = vmatpush2.bf16.xpose.msra.mxu0 0
        %3998 = vmatprep.subr.bf16.mxu0 0
        %3999 = vmatpush2.bf16.xpose.msra.mxu0 0
        %4000 = vmatprep.subr.bf16.mxu0 0
        %4001 = vmatpush2.bf16.xpose.msra.mxu0 0
        %4002 = vmatprep.subr.bf16.mxu0 0
        %4003 = vmatpush2.bf16.xpose.msra.mxu0 0
        %4004 = vmatprep.subr.bf16.mxu0 0
        %4005 = vmatpush2.bf16.xpose.msra.mxu0 0
        %4006 = vmatprep.subr.bf16.mxu0 0
        %4007 = vmatpush2.bf16.xpose.msra.mxu0 0
        %4008 = vmatprep.subr.bf16.mxu0 0
        %4009 = vmatpush2.bf16.xpose.msra.mxu0 0
        %4010 = vmatprep.subr.bf16.mxu0 0
        %4011 = vmatpush2.bf16.xpose.msra.mxu0 0
        %4012 = vmatprep.mubr.bf16.mxu0 0
        %4013 = vmatmul.mubr.bf16.gmra.mxu0 %v3975
        %v4014 = vpop.f32.mrf.mxu0
        %v4015 = vadd.f32 0.0, %v4014
        %v4016 = vpop.f32.mrf.mxu0
        %v4017 = vpop.f32.mrf.mxu0
        %v4018 = vadd.f32 0.0, %v4017
        %v4019 = vpop.f32.mrf.mxu0
        %4020 = vdwg.mxu0
        %4021 = vrot.lane.b32.xlu0 %v460, 104
        %v4022 = vpop.permute.xlu0 %4021
        %4023 = vrot.lane.b32.xlu0 %v460, 72
        %v4024 = vpop.permute.xlu0 %4023
        %v4026 = vsel %vm466, %v4022, 0
        %v4029 = vsel %vm466, %v4024, 0
        %4031 = vmatprep.subr.bf16.mxu0 0
        %4032 = vmatpush1.bf16.xpose.msra.mxu0 0
        %4033 = vmatprep.subr.bf16.mxu0 0
        %4034 = vmatpush1.bf16.xpose.msra.mxu0 0
        %4035 = vmatprep.subr.bf16.mxu0 0
        %4036 = vmatpush1.bf16.xpose.msra.mxu0 0
        %4037 = vmatprep.subr.bf16.mxu0 0
        %4038 = vmatpush1.bf16.xpose.msra.mxu0 0
        %4039 = vmatprep.subr.bf16.mxu0 0
        %4040 = vmatpush1.bf16.xpose.msra.mxu0 0
        %4041 = vmatprep.subr.bf16.mxu0 0
        %4042 = vmatpush1.bf16.xpose.msra.mxu0 0
        %4043 = vmatprep.subr.bf16.mxu0 0
        %4044 = vmatpush1.bf16.xpose.msra.mxu0 0
        %4045 = vmatprep.subr.bf16.mxu0 0
        %4046 = vmatpush1.bf16.xpose.msra.mxu0 %v4029
        %4047 = vmatprep.subr.bf16.mxu0 0
        %4048 = vmatpush2.bf16.xpose.msra.mxu0 0
        %4049 = vmatprep.subr.bf16.mxu0 0
        %4050 = vmatpush2.bf16.xpose.msra.mxu0 0
        %4051 = vmatprep.subr.bf16.mxu0 0
        %4052 = vmatpush2.bf16.xpose.msra.mxu0 0
        %4053 = vmatprep.subr.bf16.mxu0 0
        %4054 = vmatpush2.bf16.xpose.msra.mxu0 0
        %4055 = vmatprep.subr.bf16.mxu0 0
        %4056 = vmatpush2.bf16.xpose.msra.mxu0 0
        %4057 = vmatprep.subr.bf16.mxu0 0
        %4058 = vmatpush2.bf16.xpose.msra.mxu0 0
        %4059 = vmatprep.subr.bf16.mxu0 0
        %4060 = vmatpush2.bf16.xpose.msra.mxu0 0
        %4061 = vmatprep.subr.bf16.mxu0 0
        %4062 = vmatpush2.bf16.xpose.msra.mxu0 0
        %4063 = vmatprep.mubr.bf16.mxu0 0
        %4064 = vmatmul.mubr.bf16.gmra.mxu0 %v4026
        %v4065 = vpop.f32.mrf.mxu0
        %v4066 = vadd.f32 0.0, %v4065
        %v4067 = vpop.f32.mrf.mxu0
        %v4068 = vpop.f32.mrf.mxu0
        %v4069 = vadd.f32 0.0, %v4068
        %v4070 = vpop.f32.mrf.mxu0
        %4071 = vdwg.mxu0
        %4072 = vrot.lane.b32.xlu0 %v461, 104
        %v4073 = vpop.permute.xlu0 %4072
        %4074 = vrot.lane.b32.xlu0 %v461, 72
        %v4075 = vpop.permute.xlu0 %4074
        %v4077 = vsel %vm466, %v4073, 0
        %v4080 = vsel %vm466, %v4075, 0
        %4082 = vmatprep.subr.bf16.mxu0 0
        %4083 = vmatpush1.bf16.xpose.msra.mxu0 0
        %4084 = vmatprep.subr.bf16.mxu0 0
        %4085 = vmatpush1.bf16.xpose.msra.mxu0 0
        %4086 = vmatprep.subr.bf16.mxu0 0
        %4087 = vmatpush1.bf16.xpose.msra.mxu0 0
        %4088 = vmatprep.subr.bf16.mxu0 0
        %4089 = vmatpush1.bf16.xpose.msra.mxu0 0
        %4090 = vmatprep.subr.bf16.mxu0 0
        %4091 = vmatpush1.bf16.xpose.msra.mxu0 0
        %4092 = vmatprep.subr.bf16.mxu0 0
        %4093 = vmatpush1.bf16.xpose.msra.mxu0 0
        %4094 = vmatprep.subr.bf16.mxu0 0
        %4095 = vmatpush1.bf16.xpose.msra.mxu0 0
        %4096 = vmatprep.subr.bf16.mxu0 0
        %4097 = vmatpush1.bf16.xpose.msra.mxu0 %v4080
        %4098 = vmatprep.subr.bf16.mxu0 0
        %4099 = vmatpush2.bf16.xpose.msra.mxu0 0
        %4100 = vmatprep.subr.bf16.mxu0 0
        %4101 = vmatpush2.bf16.xpose.msra.mxu0 0
        %4102 = vmatprep.subr.bf16.mxu0 0
        %4103 = vmatpush2.bf16.xpose.msra.mxu0 0
        %4104 = vmatprep.subr.bf16.mxu0 0
        %4105 = vmatpush2.bf16.xpose.msra.mxu0 0
        %4106 = vmatprep.subr.bf16.mxu0 0
        %4107 = vmatpush2.bf16.xpose.msra.mxu0 0
        %4108 = vmatprep.subr.bf16.mxu0 0
        %4109 = vmatpush2.bf16.xpose.msra.mxu0 0
        %4110 = vmatprep.subr.bf16.mxu0 0
        %4111 = vmatpush2.bf16.xpose.msra.mxu0 0
        %4112 = vmatprep.subr.bf16.mxu0 0
        %4113 = vmatpush2.bf16.xpose.msra.mxu0 0
        %4114 = vmatprep.mubr.bf16.mxu0 0
        %4115 = vmatmul.mubr.bf16.gmra.mxu0 %v4077
        %v4116 = vpop.f32.mrf.mxu0
        %v4117 = vadd.f32 0.0, %v4116
        %v4118 = vpop.f32.mrf.mxu0
        %v4119 = vpop.f32.mrf.mxu0
        %v4120 = vadd.f32 0.0, %v4119
        %v4121 = vpop.f32.mrf.mxu0
        %4122 = vdwg.mxu0
        %4123 = vrot.lane.b32.xlu0 %v462, 104
        %v4124 = vpop.permute.xlu0 %4123
        %4125 = vrot.lane.b32.xlu0 %v462, 72
        %v4126 = vpop.permute.xlu0 %4125
        %v4128 = vsel %vm466, %v4124, 0
        %v4131 = vsel %vm466, %v4126, 0
        %4133 = vmatprep.subr.bf16.mxu0 0
        %4134 = vmatpush1.bf16.xpose.msra.mxu0 0
        %4135 = vmatprep.subr.bf16.mxu0 0
        %4136 = vmatpush1.bf16.xpose.msra.mxu0 0
        %4137 = vmatprep.subr.bf16.mxu0 0
        %4138 = vmatpush1.bf16.xpose.msra.mxu0 0
        %4139 = vmatprep.subr.bf16.mxu0 0
        %4140 = vmatpush1.bf16.xpose.msra.mxu0 0
        %4141 = vmatprep.subr.bf16.mxu0 0
        %4142 = vmatpush1.bf16.xpose.msra.mxu0 0
        %4143 = vmatprep.subr.bf16.mxu0 0
        %4144 = vmatpush1.bf16.xpose.msra.mxu0 0
        %4145 = vmatprep.subr.bf16.mxu0 0
        %4146 = vmatpush1.bf16.xpose.msra.mxu0 0
        %4147 = vmatprep.subr.bf16.mxu0 0
        %4148 = vmatpush1.bf16.xpose.msra.mxu0 %v4131
        %4149 = vmatprep.subr.bf16.mxu0 0
        %4150 = vmatpush2.bf16.xpose.msra.mxu0 0
        %4151 = vmatprep.subr.bf16.mxu0 0
        %4152 = vmatpush2.bf16.xpose.msra.mxu0 0
        %4153 = vmatprep.subr.bf16.mxu0 0
        %4154 = vmatpush2.bf16.xpose.msra.mxu0 0
        %4155 = vmatprep.subr.bf16.mxu0 0
        %4156 = vmatpush2.bf16.xpose.msra.mxu0 0
        %4157 = vmatprep.subr.bf16.mxu0 0
        %4158 = vmatpush2.bf16.xpose.msra.mxu0 0
        %4159 = vmatprep.subr.bf16.mxu0 0
        %4160 = vmatpush2.bf16.xpose.msra.mxu0 0
        %4161 = vmatprep.subr.bf16.mxu0 0
        %4162 = vmatpush2.bf16.xpose.msra.mxu0 0
        %4163 = vmatprep.subr.bf16.mxu0 0
        %4164 = vmatpush2.bf16.xpose.msra.mxu0 0
        %4165 = vmatprep.mubr.bf16.mxu0 0
        %4166 = vmatmul.mubr.bf16.gmra.mxu0 %v4128
        %v4167 = vpop.f32.mrf.mxu0
        %v4168 = vadd.f32 0.0, %v4167
        %v4169 = vpop.f32.mrf.mxu0
        %v4170 = vpop.f32.mrf.mxu0
        %v4171 = vadd.f32 0.0, %v4170
        %v4172 = vpop.f32.mrf.mxu0
        %4173 = vdwg.mxu0
        %s4174 = scalar_lea.vmem %s5, 96
        %v4175 = vld [vmem:[%s4174] sm:$0xf]
        %v4176 = vld [vmem:[%s4174 + $0x4] sm:$0xf]
        %v4177 = vld [vmem:[%s4174 + $0x8] sm:$0xf]
        %v4178 = vld [vmem:[%s4174 + $0xc] sm:$0xf]
        %v4179 = vld [vmem:[%s4174 + $0x10] sm:$0xf]
        %v4180 = vld [vmem:[%s4174 + $0x14] sm:$0xf]
        %v4181 = vld [vmem:[%s4174 + $0x18] sm:$0xf]
        %v4182 = vld [vmem:[%s4174 + $0x1c] sm:$0xf]
        %v4183 = vunpack.c.l.bf16 %v4175
        %v4184 = vunpack.c.l.bf16 %v4176
        %v4185 = vunpack.c.l.bf16 %v4177
        %v4186 = vunpack.c.l.bf16 %v4178
        %v4187 = vunpack.c.l.bf16 %v4179
        %v4188 = vunpack.c.l.bf16 %v4180
        %v4189 = vunpack.c.l.bf16 %v4181
        %v4190 = vunpack.c.l.bf16 %v4182
        %v4191 = vadd.f32 %v3811, %v4183
        %v4192 = vadd.f32 %v3814, %v4184
        %v4193 = vadd.f32 %v3862, %v4185
        %v4194 = vadd.f32 %v3865, %v4186
        %v4195 = vadd.f32 %v3913, %v4187
        %v4196 = vadd.f32 %v3916, %v4188
        %v4197 = vadd.f32 %v3964, %v4189
        %v4198 = vadd.f32 %v3967, %v4190
        %v4199 = vadd.f32 %v4015, %v4183
        %v4200 = vadd.f32 %v4018, %v4184
        %v4201 = vadd.f32 %v4066, %v4185
        %v4202 = vadd.f32 %v4069, %v4186
        %v4203 = vadd.f32 %v4117, %v4187
        %v4204 = vadd.f32 %v4120, %v4188
        %v4205 = vadd.f32 %v4168, %v4189
        %v4206 = vadd.f32 %v4171, %v4190
        %v4207 = vsel %vm896, %v4191, -inf
        %4208 = vmax.xlane.f32.xlu0 %v4207
        %v4209 = vpop.xlane.xlu0 %4208
        %v4210 = vsel %vm896, %v4192, -inf
        %4211 = vmax.xlane.f32.xlu0 %v4210
        %v4212 = vpop.xlane.xlu0 %4211
        %v4213 = vsel %vm896, %v4193, -inf
        %4214 = vmax.xlane.f32.xlu0 %v4213
        %v4215 = vpop.xlane.xlu0 %4214
        %v4216 = vsel %vm896, %v4194, -inf
        %4217 = vmax.xlane.f32.xlu0 %v4216
        %v4218 = vpop.xlane.xlu0 %4217
        %v4219 = vsel %vm896, %v4195, -inf
        %4220 = vmax.xlane.f32.xlu0 %v4219
        %v4221 = vpop.xlane.xlu0 %4220
        %v4222 = vsel %vm896, %v4196, -inf
        %4223 = vmax.xlane.f32.xlu0 %v4222
        %v4224 = vpop.xlane.xlu0 %4223
        %v4225 = vsel %vm896, %v4197, -inf
        %4226 = vmax.xlane.f32.xlu0 %v4225
        %v4227 = vpop.xlane.xlu0 %4226
        %v4228 = vsel %vm896, %v4198, -inf
        %4229 = vmax.xlane.f32.xlu0 %v4228
        %v4230 = vpop.xlane.xlu0 %4229
        %v4231 = vsel %vm896, %v4199, -inf
        %4232 = vmax.xlane.f32.xlu0 %v4231
        %v4233 = vpop.xlane.xlu0 %4232
        %v4234 = vsel %vm896, %v4200, -inf
        %4235 = vmax.xlane.f32.xlu0 %v4234
        %v4236 = vpop.xlane.xlu0 %4235
        %v4237 = vsel %vm896, %v4201, -inf
        %4238 = vmax.xlane.f32.xlu0 %v4237
        %v4239 = vpop.xlane.xlu0 %4238
        %v4240 = vsel %vm896, %v4202, -inf
        %4241 = vmax.xlane.f32.xlu0 %v4240
        %v4242 = vpop.xlane.xlu0 %4241
        %v4243 = vsel %vm896, %v4203, -inf
        %4244 = vmax.xlane.f32.xlu0 %v4243
        %v4245 = vpop.xlane.xlu0 %4244
        %v4246 = vsel %vm896, %v4204, -inf
        %4247 = vmax.xlane.f32.xlu0 %v4246
        %v4248 = vpop.xlane.xlu0 %4247
        %v4249 = vsel %vm896, %v4205, -inf
        %4250 = vmax.xlane.f32.xlu0 %v4249
        %v4251 = vpop.xlane.xlu0 %4250
        %v4252 = vsel %vm896, %v4206, -inf
        %4253 = vmax.xlane.f32.xlu0 %v4252
        %v4254 = vpop.xlane.xlu0 %4253
        %v4255 = vsub.f32 %v4191, %v4209
        %v4256 = vsub.f32 %v4192, %v4212
        %v4257 = vsub.f32 %v4193, %v4215
        %v4258 = vsub.f32 %v4194, %v4218
        %v4259 = vsub.f32 %v4195, %v4221
        %v4260 = vsub.f32 %v4196, %v4224
        %v4261 = vsub.f32 %v4197, %v4227
        %v4262 = vsub.f32 %v4198, %v4230
        %v4263 = vsub.f32 %v4199, %v4233
        %v4264 = vsub.f32 %v4200, %v4236
        %v4265 = vsub.f32 %v4201, %v4239
        %v4266 = vsub.f32 %v4202, %v4242
        %v4267 = vsub.f32 %v4203, %v4245
        %v4268 = vsub.f32 %v4204, %v4248
        %v4269 = vsub.f32 %v4205, %v4251
        %v4270 = vsub.f32 %v4206, %v4254
        %v4271 = vmul.f32 %v4255, 1.442695
        %v4272 = vpow.pop %v4271
        %v4273 = vmul.f32 %v4256, 1.442695
        %v4274 = vpow.pop %v4273
        %v4275 = vmul.f32 %v4257, 1.442695
        %v4276 = vpow.pop %v4275
        %v4277 = vmul.f32 %v4258, 1.442695
        %v4278 = vpow.pop %v4277
        %v4279 = vmul.f32 %v4259, 1.442695
        %v4280 = vpow.pop %v4279
        %v4281 = vmul.f32 %v4260, 1.442695
        %v4282 = vpow.pop %v4281
        %v4283 = vmul.f32 %v4261, 1.442695
        %v4284 = vpow.pop %v4283
        %v4285 = vmul.f32 %v4262, 1.442695
        %v4286 = vpow.pop %v4285
        %v4287 = vmul.f32 %v4263, 1.442695
        %v4288 = vpow.pop %v4287
        %v4289 = vmul.f32 %v4264, 1.442695
        %v4290 = vpow.pop %v4289
        %v4291 = vmul.f32 %v4265, 1.442695
        %v4292 = vpow.pop %v4291
        %v4293 = vmul.f32 %v4266, 1.442695
        %v4294 = vpow.pop %v4293
        %v4295 = vmul.f32 %v4267, 1.442695
        %v4296 = vpow.pop %v4295
        %v4297 = vmul.f32 %v4268, 1.442695
        %v4298 = vpow.pop %v4297
        %v4299 = vmul.f32 %v4269, 1.442695
        %v4300 = vpow.pop %v4299
        %v4301 = vmul.f32 %v4270, 1.442695
        %v4302 = vpow.pop %v4301
        %v4303 = vsel %vm896, %v4272, 0.0
        %4304 = vadd.xlane.f32.xlu0 %v4303
        %v4305 = vpop.xlane.xlu0 %4304
        %v4306 = vsel %vm896, %v4274, 0.0
        %4307 = vadd.xlane.f32.xlu0 %v4306
        %v4308 = vpop.xlane.xlu0 %4307
        %v4309 = vsel %vm896, %v4276, 0.0
        %4310 = vadd.xlane.f32.xlu0 %v4309
        %v4311 = vpop.xlane.xlu0 %4310
        %v4312 = vsel %vm896, %v4278, 0.0
        %4313 = vadd.xlane.f32.xlu0 %v4312
        %v4314 = vpop.xlane.xlu0 %4313
        %v4315 = vsel %vm896, %v4280, 0.0
        %4316 = vadd.xlane.f32.xlu0 %v4315
        %v4317 = vpop.xlane.xlu0 %4316
        %v4318 = vsel %vm896, %v4282, 0.0
        %4319 = vadd.xlane.f32.xlu0 %v4318
        %v4320 = vpop.xlane.xlu0 %4319
        %v4321 = vsel %vm896, %v4284, 0.0
        %4322 = vadd.xlane.f32.xlu0 %v4321
        %v4323 = vpop.xlane.xlu0 %4322
        %v4324 = vsel %vm896, %v4286, 0.0
        %4325 = vadd.xlane.f32.xlu0 %v4324
        %v4326 = vpop.xlane.xlu0 %4325
        %v4327 = vsel %vm896, %v4288, 0.0
        %4328 = vadd.xlane.f32.xlu0 %v4327
        %v4329 = vpop.xlane.xlu0 %4328
        %v4330 = vsel %vm896, %v4290, 0.0
        %4331 = vadd.xlane.f32.xlu0 %v4330
        %v4332 = vpop.xlane.xlu0 %4331
        %v4333 = vsel %vm896, %v4292, 0.0
        %4334 = vadd.xlane.f32.xlu0 %v4333
        %v4335 = vpop.xlane.xlu0 %4334
        %v4336 = vsel %vm896, %v4294, 0.0
        %4337 = vadd.xlane.f32.xlu0 %v4336
        %v4338 = vpop.xlane.xlu0 %4337
        %v4339 = vsel %vm896, %v4296, 0.0
        %4340 = vadd.xlane.f32.xlu0 %v4339
        %v4341 = vpop.xlane.xlu0 %4340
        %v4342 = vsel %vm896, %v4298, 0.0
        %4343 = vadd.xlane.f32.xlu0 %v4342
        %v4344 = vpop.xlane.xlu0 %4343
        %v4345 = vsel %vm896, %v4300, 0.0
        %4346 = vadd.xlane.f32.xlu0 %v4345
        %v4347 = vpop.xlane.xlu0 %4346
        %v4348 = vsel %vm896, %v4302, 0.0
        %4349 = vadd.xlane.f32.xlu0 %v4348
        %v4350 = vpop.xlane.xlu0 %4349
        %v4351 = vrcp.pop %v4305
        %v4352 = vrcp.pop %v4308
        %v4353 = vrcp.pop %v4311
        %v4354 = vrcp.pop %v4314
        %v4355 = vrcp.pop %v4317
        %v4356 = vrcp.pop %v4320
        %v4357 = vrcp.pop %v4323
        %v4358 = vrcp.pop %v4326
        %v4359 = vrcp.pop %v4329
        %v4360 = vrcp.pop %v4332
        %v4361 = vrcp.pop %v4335
        %v4362 = vrcp.pop %v4338
        %v4363 = vrcp.pop %v4341
        %v4364 = vrcp.pop %v4344
        %v4365 = vrcp.pop %v4347
        %v4366 = vrcp.pop %v4350
        %v4367 = vmul.f32 %v4272, %v4351
        %v4368 = vmul.f32 %v4274, %v4352
        %v4369 = vmul.f32 %v4276, %v4353
        %v4370 = vmul.f32 %v4278, %v4354
        %v4371 = vmul.f32 %v4280, %v4355
        %v4372 = vmul.f32 %v4282, %v4356
        %v4373 = vmul.f32 %v4284, %v4357
        %v4374 = vmul.f32 %v4286, %v4358
        %v4375 = vmul.f32 %v4288, %v4359
        %v4376 = vmul.f32 %v4290, %v4360
        %v4377 = vmul.f32 %v4292, %v4361
        %v4378 = vmul.f32 %v4294, %v4362
        %v4379 = vmul.f32 %v4296, %v4363
        %v4380 = vmul.f32 %v4298, %v4364
        %v4381 = vmul.f32 %v4300, %v4365
        %v4382 = vmul.f32 %v4302, %v4366
        %v4383 = vpack.c.bf16 %v4368, %v4367
        %v4384 = vpack.c.bf16 %v4370, %v4369
        %v4385 = vpack.c.bf16 %v4372, %v4371
        %v4386 = vpack.c.bf16 %v4374, %v4373
        %v4387 = vpack.c.bf16 %v4376, %v4375
        %v4388 = vpack.c.bf16 %v4378, %v4377
        %v4389 = vpack.c.bf16 %v4380, %v4379
        %v4390 = vpack.c.bf16 %v4382, %v4381
        %4391 = vrot.lane.b32.xlu0 %v455, 40
        %v4392 = vpop.permute.xlu0 %4391
        %v4395 = vsel %vm896, %v4383, 0
        %4397 = vmatprep.subr.bf16.mxu0 0
        %4398 = vmatpush1.bf16.msra.mxu0 0
        %4399 = vmatprep.subr.bf16.mxu0 0
        %4400 = vmatpush1.bf16.msra.mxu0 0
        %4401 = vmatprep.subr.bf16.mxu0 0
        %4402 = vmatpush1.bf16.msra.mxu0 0
        %4403 = vmatprep.subr.bf16.mxu0 0
        %4404 = vmatpush1.bf16.msra.mxu0 0
        %4405 = vmatprep.subr.bf16.mxu0 0
        %4406 = vmatpush1.bf16.msra.mxu0 0
        %4407 = vmatprep.subr.bf16.mxu0 0
        %4408 = vmatpush1.bf16.msra.mxu0 0
        %4409 = vmatprep.subr.bf16.mxu0 0
        %4410 = vmatpush1.bf16.msra.mxu0 0
        %4411 = vmatprep.subr.bf16.mxu0 0
        %4412 = vmatpush1.bf16.msra.mxu0 %v4392
        %4413 = vmatprep.subr.bf16.mxu0 0
        %4414 = vmatpush2.bf16.msra.mxu0 0
        %4415 = vmatprep.subr.bf16.mxu0 0
        %4416 = vmatpush2.bf16.msra.mxu0 0
        %4417 = vmatprep.subr.bf16.mxu0 0
        %4418 = vmatpush2.bf16.msra.mxu0 0
        %4419 = vmatprep.subr.bf16.mxu0 0
        %4420 = vmatpush2.bf16.msra.mxu0 0
        %4421 = vmatprep.subr.bf16.mxu0 0
        %4422 = vmatpush2.bf16.msra.mxu0 0
        %4423 = vmatprep.subr.bf16.mxu0 0
        %4424 = vmatpush2.bf16.msra.mxu0 0
        %4425 = vmatprep.subr.bf16.mxu0 0
        %4426 = vmatpush2.bf16.msra.mxu0 0
        %4427 = vmatprep.subr.bf16.mxu0 0
        %4428 = vmatpush2.bf16.msra.mxu0 0
        %4429 = vmatprep.mubr.bf16.mxu0 0
        %4430 = vmatmul.mubr.bf16.gmra.mxu0 %v4395
        %v4431 = vpop.f32.mrf.mxu0
        %v4432 = vadd.f32 0.0, %v4431
        %v4433 = vpop.f32.mrf.mxu0
        %v4434 = vpop.f32.mrf.mxu0
        %v4435 = vadd.f32 0.0, %v4434
        %v4436 = vpop.f32.mrf.mxu0
        %4437 = vdwg.mxu0
        %4438 = vrot.lane.b32.xlu0 %v456, 40
        %v4439 = vpop.permute.xlu0 %4438
        %v4442 = vsel %vm896, %v4384, 0
        %4444 = vmatprep.subr.bf16.mxu0 0
        %4445 = vmatpush1.bf16.msra.mxu0 0
        %4446 = vmatprep.subr.bf16.mxu0 0
        %4447 = vmatpush1.bf16.msra.mxu0 0
        %4448 = vmatprep.subr.bf16.mxu0 0
        %4449 = vmatpush1.bf16.msra.mxu0 0
        %4450 = vmatprep.subr.bf16.mxu0 0
        %4451 = vmatpush1.bf16.msra.mxu0 0
        %4452 = vmatprep.subr.bf16.mxu0 0
        %4453 = vmatpush1.bf16.msra.mxu0 0
        %4454 = vmatprep.subr.bf16.mxu0 0
        %4455 = vmatpush1.bf16.msra.mxu0 0
        %4456 = vmatprep.subr.bf16.mxu0 0
        %4457 = vmatpush1.bf16.msra.mxu0 0
        %4458 = vmatprep.subr.bf16.mxu0 0
        %4459 = vmatpush1.bf16.msra.mxu0 %v4439
        %4460 = vmatprep.subr.bf16.mxu0 0
        %4461 = vmatpush2.bf16.msra.mxu0 0
        %4462 = vmatprep.subr.bf16.mxu0 0
        %4463 = vmatpush2.bf16.msra.mxu0 0
        %4464 = vmatprep.subr.bf16.mxu0 0
        %4465 = vmatpush2.bf16.msra.mxu0 0
        %4466 = vmatprep.subr.bf16.mxu0 0
        %4467 = vmatpush2.bf16.msra.mxu0 0
        %4468 = vmatprep.subr.bf16.mxu0 0
        %4469 = vmatpush2.bf16.msra.mxu0 0
        %4470 = vmatprep.subr.bf16.mxu0 0
        %4471 = vmatpush2.bf16.msra.mxu0 0
        %4472 = vmatprep.subr.bf16.mxu0 0
        %4473 = vmatpush2.bf16.msra.mxu0 0
        %4474 = vmatprep.subr.bf16.mxu0 0
        %4475 = vmatpush2.bf16.msra.mxu0 0
        %4476 = vmatprep.mubr.bf16.mxu0 0
        %4477 = vmatmul.mubr.bf16.gmra.mxu0 %v4442
        %v4478 = vpop.f32.mrf.mxu0
        %v4479 = vadd.f32 0.0, %v4478
        %v4480 = vpop.f32.mrf.mxu0
        %v4481 = vpop.f32.mrf.mxu0
        %v4482 = vadd.f32 0.0, %v4481
        %v4483 = vpop.f32.mrf.mxu0
        %4484 = vdwg.mxu0
        %4485 = vrot.lane.b32.xlu0 %v457, 40
        %v4486 = vpop.permute.xlu0 %4485
        %v4489 = vsel %vm896, %v4385, 0
        %4491 = vmatprep.subr.bf16.mxu0 0
        %4492 = vmatpush1.bf16.msra.mxu0 0
        %4493 = vmatprep.subr.bf16.mxu0 0
        %4494 = vmatpush1.bf16.msra.mxu0 0
        %4495 = vmatprep.subr.bf16.mxu0 0
        %4496 = vmatpush1.bf16.msra.mxu0 0
        %4497 = vmatprep.subr.bf16.mxu0 0
        %4498 = vmatpush1.bf16.msra.mxu0 0
        %4499 = vmatprep.subr.bf16.mxu0 0
        %4500 = vmatpush1.bf16.msra.mxu0 0
        %4501 = vmatprep.subr.bf16.mxu0 0
        %4502 = vmatpush1.bf16.msra.mxu0 0
        %4503 = vmatprep.subr.bf16.mxu0 0
        %4504 = vmatpush1.bf16.msra.mxu0 0
        %4505 = vmatprep.subr.bf16.mxu0 0
        %4506 = vmatpush1.bf16.msra.mxu0 %v4486
        %4507 = vmatprep.subr.bf16.mxu0 0
        %4508 = vmatpush2.bf16.msra.mxu0 0
        %4509 = vmatprep.subr.bf16.mxu0 0
        %4510 = vmatpush2.bf16.msra.mxu0 0
        %4511 = vmatprep.subr.bf16.mxu0 0
        %4512 = vmatpush2.bf16.msra.mxu0 0
        %4513 = vmatprep.subr.bf16.mxu0 0
        %4514 = vmatpush2.bf16.msra.mxu0 0
        %4515 = vmatprep.subr.bf16.mxu0 0
        %4516 = vmatpush2.bf16.msra.mxu0 0
        %4517 = vmatprep.subr.bf16.mxu0 0
        %4518 = vmatpush2.bf16.msra.mxu0 0
        %4519 = vmatprep.subr.bf16.mxu0 0
        %4520 = vmatpush2.bf16.msra.mxu0 0
        %4521 = vmatprep.subr.bf16.mxu0 0
        %4522 = vmatpush2.bf16.msra.mxu0 0
        %4523 = vmatprep.mubr.bf16.mxu0 0
        %4524 = vmatmul.mubr.bf16.gmra.mxu0 %v4489
        %v4525 = vpop.f32.mrf.mxu0
        %v4526 = vadd.f32 0.0, %v4525
        %v4527 = vpop.f32.mrf.mxu0
        %v4528 = vpop.f32.mrf.mxu0
        %v4529 = vadd.f32 0.0, %v4528
        %v4530 = vpop.f32.mrf.mxu0
        %4531 = vdwg.mxu0
        %4532 = vrot.lane.b32.xlu0 %v458, 40
        %v4533 = vpop.permute.xlu0 %4532
        %v4536 = vsel %vm896, %v4386, 0
        %4538 = vmatprep.subr.bf16.mxu0 0
        %4539 = vmatpush1.bf16.msra.mxu0 0
        %4540 = vmatprep.subr.bf16.mxu0 0
        %4541 = vmatpush1.bf16.msra.mxu0 0
        %4542 = vmatprep.subr.bf16.mxu0 0
        %4543 = vmatpush1.bf16.msra.mxu0 0
        %4544 = vmatprep.subr.bf16.mxu0 0
        %4545 = vmatpush1.bf16.msra.mxu0 0
        %4546 = vmatprep.subr.bf16.mxu0 0
        %4547 = vmatpush1.bf16.msra.mxu0 0
        %4548 = vmatprep.subr.bf16.mxu0 0
        %4549 = vmatpush1.bf16.msra.mxu0 0
        %4550 = vmatprep.subr.bf16.mxu0 0
        %4551 = vmatpush1.bf16.msra.mxu0 0
        %4552 = vmatprep.subr.bf16.mxu0 0
        %4553 = vmatpush1.bf16.msra.mxu0 %v4533
        %4554 = vmatprep.subr.bf16.mxu0 0
        %4555 = vmatpush2.bf16.msra.mxu0 0
        %4556 = vmatprep.subr.bf16.mxu0 0
        %4557 = vmatpush2.bf16.msra.mxu0 0
        %4558 = vmatprep.subr.bf16.mxu0 0
        %4559 = vmatpush2.bf16.msra.mxu0 0
        %4560 = vmatprep.subr.bf16.mxu0 0
        %4561 = vmatpush2.bf16.msra.mxu0 0
        %4562 = vmatprep.subr.bf16.mxu0 0
        %4563 = vmatpush2.bf16.msra.mxu0 0
        %4564 = vmatprep.subr.bf16.mxu0 0
        %4565 = vmatpush2.bf16.msra.mxu0 0
        %4566 = vmatprep.subr.bf16.mxu0 0
        %4567 = vmatpush2.bf16.msra.mxu0 0
        %4568 = vmatprep.subr.bf16.mxu0 0
        %4569 = vmatpush2.bf16.msra.mxu0 0
        %4570 = vmatprep.mubr.bf16.mxu0 0
        %4571 = vmatmul.mubr.bf16.gmra.mxu0 %v4536
        %v4572 = vpop.f32.mrf.mxu0
        %v4573 = vadd.f32 0.0, %v4572
        %v4574 = vpop.f32.mrf.mxu0
        %v4575 = vpop.f32.mrf.mxu0
        %v4576 = vadd.f32 0.0, %v4575
        %v4577 = vpop.f32.mrf.mxu0
        %4578 = vdwg.mxu0
        %4579 = vrot.lane.b32.xlu0 %v459, 40
        %v4580 = vpop.permute.xlu0 %4579
        %v4583 = vsel %vm896, %v4387, 0
        %4585 = vmatprep.subr.bf16.mxu0 0
        %4586 = vmatpush1.bf16.msra.mxu0 0
        %4587 = vmatprep.subr.bf16.mxu0 0
        %4588 = vmatpush1.bf16.msra.mxu0 0
        %4589 = vmatprep.subr.bf16.mxu0 0
        %4590 = vmatpush1.bf16.msra.mxu0 0
        %4591 = vmatprep.subr.bf16.mxu0 0
        %4592 = vmatpush1.bf16.msra.mxu0 0
        %4593 = vmatprep.subr.bf16.mxu0 0
        %4594 = vmatpush1.bf16.msra.mxu0 0
        %4595 = vmatprep.subr.bf16.mxu0 0
        %4596 = vmatpush1.bf16.msra.mxu0 0
        %4597 = vmatprep.subr.bf16.mxu0 0
        %4598 = vmatpush1.bf16.msra.mxu0 0
        %4599 = vmatprep.subr.bf16.mxu0 0
        %4600 = vmatpush1.bf16.msra.mxu0 %v4580
        %4601 = vmatprep.subr.bf16.mxu0 0
        %4602 = vmatpush2.bf16.msra.mxu0 0
        %4603 = vmatprep.subr.bf16.mxu0 0
        %4604 = vmatpush2.bf16.msra.mxu0 0
        %4605 = vmatprep.subr.bf16.mxu0 0
        %4606 = vmatpush2.bf16.msra.mxu0 0
        %4607 = vmatprep.subr.bf16.mxu0 0
        %4608 = vmatpush2.bf16.msra.mxu0 0
        %4609 = vmatprep.subr.bf16.mxu0 0
        %4610 = vmatpush2.bf16.msra.mxu0 0
        %4611 = vmatprep.subr.bf16.mxu0 0
        %4612 = vmatpush2.bf16.msra.mxu0 0
        %4613 = vmatprep.subr.bf16.mxu0 0
        %4614 = vmatpush2.bf16.msra.mxu0 0
        %4615 = vmatprep.subr.bf16.mxu0 0
        %4616 = vmatpush2.bf16.msra.mxu0 0
        %4617 = vmatprep.mubr.bf16.mxu0 0
        %4618 = vmatmul.mubr.bf16.gmra.mxu0 %v4583
        %v4619 = vpop.f32.mrf.mxu0
        %v4620 = vadd.f32 0.0, %v4619
        %v4621 = vpop.f32.mrf.mxu0
        %v4622 = vpop.f32.mrf.mxu0
        %v4623 = vadd.f32 0.0, %v4622
        %v4624 = vpop.f32.mrf.mxu0
        %4625 = vdwg.mxu0
        %4626 = vrot.lane.b32.xlu0 %v460, 40
        %v4627 = vpop.permute.xlu0 %4626
        %v4630 = vsel %vm896, %v4388, 0
        %4632 = vmatprep.subr.bf16.mxu0 0
        %4633 = vmatpush1.bf16.msra.mxu0 0
        %4634 = vmatprep.subr.bf16.mxu0 0
        %4635 = vmatpush1.bf16.msra.mxu0 0
        %4636 = vmatprep.subr.bf16.mxu0 0
        %4637 = vmatpush1.bf16.msra.mxu0 0
        %4638 = vmatprep.subr.bf16.mxu0 0
        %4639 = vmatpush1.bf16.msra.mxu0 0
        %4640 = vmatprep.subr.bf16.mxu0 0
        %4641 = vmatpush1.bf16.msra.mxu0 0
        %4642 = vmatprep.subr.bf16.mxu0 0
        %4643 = vmatpush1.bf16.msra.mxu0 0
        %4644 = vmatprep.subr.bf16.mxu0 0
        %4645 = vmatpush1.bf16.msra.mxu0 0
        %4646 = vmatprep.subr.bf16.mxu0 0
        %4647 = vmatpush1.bf16.msra.mxu0 %v4627
        %4648 = vmatprep.subr.bf16.mxu0 0
        %4649 = vmatpush2.bf16.msra.mxu0 0
        %4650 = vmatprep.subr.bf16.mxu0 0
        %4651 = vmatpush2.bf16.msra.mxu0 0
        %4652 = vmatprep.subr.bf16.mxu0 0
        %4653 = vmatpush2.bf16.msra.mxu0 0
        %4654 = vmatprep.subr.bf16.mxu0 0
        %4655 = vmatpush2.bf16.msra.mxu0 0
        %4656 = vmatprep.subr.bf16.mxu0 0
        %4657 = vmatpush2.bf16.msra.mxu0 0
        %4658 = vmatprep.subr.bf16.mxu0 0
        %4659 = vmatpush2.bf16.msra.mxu0 0
        %4660 = vmatprep.subr.bf16.mxu0 0
        %4661 = vmatpush2.bf16.msra.mxu0 0
        %4662 = vmatprep.subr.bf16.mxu0 0
        %4663 = vmatpush2.bf16.msra.mxu0 0
        %4664 = vmatprep.mubr.bf16.mxu0 0
        %4665 = vmatmul.mubr.bf16.gmra.mxu0 %v4630
        %v4666 = vpop.f32.mrf.mxu0
        %v4667 = vadd.f32 0.0, %v4666
        %v4668 = vpop.f32.mrf.mxu0
        %v4669 = vpop.f32.mrf.mxu0
        %v4670 = vadd.f32 0.0, %v4669
        %v4671 = vpop.f32.mrf.mxu0
        %4672 = vdwg.mxu0
        %4673 = vrot.lane.b32.xlu0 %v461, 40
        %v4674 = vpop.permute.xlu0 %4673
        %v4677 = vsel %vm896, %v4389, 0
        %4679 = vmatprep.subr.bf16.mxu0 0
        %4680 = vmatpush1.bf16.msra.mxu0 0
        %4681 = vmatprep.subr.bf16.mxu0 0
        %4682 = vmatpush1.bf16.msra.mxu0 0
        %4683 = vmatprep.subr.bf16.mxu0 0
        %4684 = vmatpush1.bf16.msra.mxu0 0
        %4685 = vmatprep.subr.bf16.mxu0 0
        %4686 = vmatpush1.bf16.msra.mxu0 0
        %4687 = vmatprep.subr.bf16.mxu0 0
        %4688 = vmatpush1.bf16.msra.mxu0 0
        %4689 = vmatprep.subr.bf16.mxu0 0
        %4690 = vmatpush1.bf16.msra.mxu0 0
        %4691 = vmatprep.subr.bf16.mxu0 0
        %4692 = vmatpush1.bf16.msra.mxu0 0
        %4693 = vmatprep.subr.bf16.mxu0 0
        %4694 = vmatpush1.bf16.msra.mxu0 %v4674
        %4695 = vmatprep.subr.bf16.mxu0 0
        %4696 = vmatpush2.bf16.msra.mxu0 0
        %4697 = vmatprep.subr.bf16.mxu0 0
        %4698 = vmatpush2.bf16.msra.mxu0 0
        %4699 = vmatprep.subr.bf16.mxu0 0
        %4700 = vmatpush2.bf16.msra.mxu0 0
        %4701 = vmatprep.subr.bf16.mxu0 0
        %4702 = vmatpush2.bf16.msra.mxu0 0
        %4703 = vmatprep.subr.bf16.mxu0 0
        %4704 = vmatpush2.bf16.msra.mxu0 0
        %4705 = vmatprep.subr.bf16.mxu0 0
        %4706 = vmatpush2.bf16.msra.mxu0 0
        %4707 = vmatprep.subr.bf16.mxu0 0
        %4708 = vmatpush2.bf16.msra.mxu0 0
        %4709 = vmatprep.subr.bf16.mxu0 0
        %4710 = vmatpush2.bf16.msra.mxu0 0
        %4711 = vmatprep.mubr.bf16.mxu0 0
        %4712 = vmatmul.mubr.bf16.gmra.mxu0 %v4677
        %v4713 = vpop.f32.mrf.mxu0
        %v4714 = vadd.f32 0.0, %v4713
        %v4715 = vpop.f32.mrf.mxu0
        %v4716 = vpop.f32.mrf.mxu0
        %v4717 = vadd.f32 0.0, %v4716
        %v4718 = vpop.f32.mrf.mxu0
        %4719 = vdwg.mxu0
        %4720 = vrot.lane.b32.xlu0 %v462, 40
        %v4721 = vpop.permute.xlu0 %4720
        %v4724 = vsel %vm896, %v4390, 0
        %4726 = vmatprep.subr.bf16.mxu0 0
        %4727 = vmatpush1.bf16.msra.mxu0 0
        %4728 = vmatprep.subr.bf16.mxu0 0
        %4729 = vmatpush1.bf16.msra.mxu0 0
        %4730 = vmatprep.subr.bf16.mxu0 0
        %4731 = vmatpush1.bf16.msra.mxu0 0
        %4732 = vmatprep.subr.bf16.mxu0 0
        %4733 = vmatpush1.bf16.msra.mxu0 0
        %4734 = vmatprep.subr.bf16.mxu0 0
        %4735 = vmatpush1.bf16.msra.mxu0 0
        %4736 = vmatprep.subr.bf16.mxu0 0
        %4737 = vmatpush1.bf16.msra.mxu0 0
        %4738 = vmatprep.subr.bf16.mxu0 0
        %4739 = vmatpush1.bf16.msra.mxu0 0
        %4740 = vmatprep.subr.bf16.mxu0 0
        %4741 = vmatpush1.bf16.msra.mxu0 %v4721
        %4742 = vmatprep.subr.bf16.mxu0 0
        %4743 = vmatpush2.bf16.msra.mxu0 0
        %4744 = vmatprep.subr.bf16.mxu0 0
        %4745 = vmatpush2.bf16.msra.mxu0 0
        %4746 = vmatprep.subr.bf16.mxu0 0
        %4747 = vmatpush2.bf16.msra.mxu0 0
        %4748 = vmatprep.subr.bf16.mxu0 0
        %4749 = vmatpush2.bf16.msra.mxu0 0
        %4750 = vmatprep.subr.bf16.mxu0 0
        %4751 = vmatpush2.bf16.msra.mxu0 0
        %4752 = vmatprep.subr.bf16.mxu0 0
        %4753 = vmatpush2.bf16.msra.mxu0 0
        %4754 = vmatprep.subr.bf16.mxu0 0
        %4755 = vmatpush2.bf16.msra.mxu0 0
        %4756 = vmatprep.subr.bf16.mxu0 0
        %4757 = vmatpush2.bf16.msra.mxu0 0
        %4758 = vmatprep.mubr.bf16.mxu0 0
        %4759 = vmatmul.mubr.bf16.gmra.mxu0 %v4724
        %v4760 = vpop.f32.mrf.mxu0
        %v4761 = vadd.f32 0.0, %v4760
        %v4762 = vpop.f32.mrf.mxu0
        %v4763 = vpop.f32.mrf.mxu0
        %v4764 = vadd.f32 0.0, %v4763
        %v4765 = vpop.f32.mrf.mxu0
        %4766 = vdwg.mxu0
        %v4767 = vpack.c.bf16 %v4435, %v4432
        %v4768 = vpack.c.bf16 %v4482, %v4479
        %v4769 = vpack.c.bf16 %v4529, %v4526
        %v4770 = vpack.c.bf16 %v4576, %v4573
        %v4771 = vpack.c.bf16 %v4623, %v4620
        %v4772 = vpack.c.bf16 %v4670, %v4667
        %v4773 = vpack.c.bf16 %v4717, %v4714
        %v4774 = vpack.c.bf16 %v4764, %v4761
        %v4783 = vunpack.c.l.b16 %v4767
        %v4784 = vunpack.c.h.b16 %v4767
        %v4785 = vunpack.c.l.b16 %v4768
        %v4786 = vunpack.c.h.b16 %v4768
        %v4787 = vunpack.c.l.b16 %v4769
        %v4788 = vunpack.c.h.b16 %v4769
        %v4789 = vunpack.c.l.b16 %v4770
        %v4790 = vunpack.c.h.b16 %v4770
        %v4791 = vunpack.c.l.b16 %v4771
        %v4792 = vunpack.c.h.b16 %v4771
        %v4793 = vunpack.c.l.b16 %v4772
        %v4794 = vunpack.c.h.b16 %v4772
        %v4795 = vunpack.c.l.b16 %v4773
        %v4796 = vunpack.c.h.b16 %v4773
        %v4797 = vunpack.c.l.b16 %v4774
        %v4798 = vunpack.c.h.b16 %v4774
        %v4799 = vpack.c.b16 %v4783, %v4783
        %v4800 = vpack.c.b16 %v4784, %v4784
        %v4801 = vpack.c.b16 %v4785, %v4785
        %v4802 = vpack.c.b16 %v4786, %v4786
        %v4803 = vpack.c.b16 %v4787, %v4787
        %v4804 = vpack.c.b16 %v4788, %v4788
        %v4805 = vpack.c.b16 %v4789, %v4789
        %v4806 = vpack.c.b16 %v4790, %v4790
        %v4807 = vpack.c.b16 %v4791, %v4791
        %v4808 = vpack.c.b16 %v4792, %v4792
        %v4809 = vpack.c.b16 %v4793, %v4793
        %v4810 = vpack.c.b16 %v4794, %v4794
        %v4811 = vpack.c.b16 %v4795, %v4795
        %v4812 = vpack.c.b16 %v4796, %v4796
        %v4813 = vpack.c.b16 %v4797, %v4797
        %v4814 = vpack.c.b16 %v4798, %v4798
        %4815 = vrot.lane.b32.xlu0 %v4799, 24
        %v4816 = vpop.permute.xlu0 %4815
        %4817 = vrot.lane.b32.xlu0 %v4800, 24
        %v4818 = vpop.permute.xlu0 %4817
        %4819 = vrot.lane.b32.xlu0 %v4801, 24
        %v4820 = vpop.permute.xlu0 %4819
        %4821 = vrot.lane.b32.xlu0 %v4802, 24
        %v4822 = vpop.permute.xlu0 %4821
        %4823 = vrot.lane.b32.xlu0 %v4803, 24
        %v4824 = vpop.permute.xlu0 %4823
        %4825 = vrot.lane.b32.xlu0 %v4804, 24
        %v4826 = vpop.permute.xlu0 %4825
        %4827 = vrot.lane.b32.xlu0 %v4805, 24
        %v4828 = vpop.permute.xlu0 %4827
        %4829 = vrot.lane.b32.xlu0 %v4806, 24
        %v4830 = vpop.permute.xlu0 %4829
        %4831 = vrot.lane.b32.xlu0 %v4807, 24
        %v4832 = vpop.permute.xlu0 %4831
        %4833 = vrot.lane.b32.xlu0 %v4808, 24
        %v4834 = vpop.permute.xlu0 %4833
        %4835 = vrot.lane.b32.xlu0 %v4809, 24
        %v4836 = vpop.permute.xlu0 %4835
        %4837 = vrot.lane.b32.xlu0 %v4810, 24
        %v4838 = vpop.permute.xlu0 %4837
        %4839 = vrot.lane.b32.xlu0 %v4811, 24
        %v4840 = vpop.permute.xlu0 %4839
        %4841 = vrot.lane.b32.xlu0 %v4812, 24
        %v4842 = vpop.permute.xlu0 %4841
        %4843 = vrot.lane.b32.xlu0 %v4813, 24
        %v4844 = vpop.permute.xlu0 %4843
        %4845 = vrot.lane.b32.xlu0 %v4814, 24
        %v4846 = vpop.permute.xlu0 %4845
        %vm4863 = vcmask 257216
        %4864 = vst.msk [vmem:[#allocation2] sm:$0xf] %vm4863, %v4816
        %4865 = vst.msk [vmem:[#allocation2 + $0x4] sm:$0xf] %vm4863, %v4818
        %4866 = vst.msk [vmem:[#allocation2 + $0x8] sm:$0xf] %vm4863, %v4820
        %4867 = vst.msk [vmem:[#allocation2 + $0xc] sm:$0xf] %vm4863, %v4822
        %4868 = vst.msk [vmem:[#allocation2 + $0x10] sm:$0xf] %vm4863, %v4824
        %4869 = vst.msk [vmem:[#allocation2 + $0x14] sm:$0xf] %vm4863, %v4826
        %4870 = vst.msk [vmem:[#allocation2 + $0x18] sm:$0xf] %vm4863, %v4828
        %4871 = vst.msk [vmem:[#allocation2 + $0x1c] sm:$0xf] %vm4863, %v4830
        %4872 = vst.msk [vmem:[#allocation2 + $0x20] sm:$0xf] %vm4863, %v4832
        %4873 = vst.msk [vmem:[#allocation2 + $0x24] sm:$0xf] %vm4863, %v4834
        %4874 = vst.msk [vmem:[#allocation2 + $0x28] sm:$0xf] %vm4863, %v4836
        %4875 = vst.msk [vmem:[#allocation2 + $0x2c] sm:$0xf] %vm4863, %v4838
        %4876 = vst.msk [vmem:[#allocation2 + $0x30] sm:$0xf] %vm4863, %v4840
        %4877 = vst.msk [vmem:[#allocation2 + $0x34] sm:$0xf] %vm4863, %v4842
        %4878 = vst.msk [vmem:[#allocation2 + $0x38] sm:$0xf] %vm4863, %v4844
        %4879 = vst.msk [vmem:[#allocation2 + $0x3c] sm:$0xf] %vm4863, %v4846
        %v4880 = vld [vmem:[#allocation2] sm:$0xf]
        %v4881 = vld [vmem:[#allocation2 + $0x4] sm:$0xf]
        %v4882 = vld [vmem:[#allocation2 + $0x8] sm:$0xf]
        %v4883 = vld [vmem:[#allocation2 + $0xc] sm:$0xf]
        %v4884 = vld [vmem:[#allocation2 + $0x10] sm:$0xf]
        %v4885 = vld [vmem:[#allocation2 + $0x14] sm:$0xf]
        %v4886 = vld [vmem:[#allocation2 + $0x18] sm:$0xf]
        %v4887 = vld [vmem:[#allocation2 + $0x1c] sm:$0xf]
        %v4888 = vld [vmem:[#allocation2 + $0x20] sm:$0xf]
        %v4889 = vld [vmem:[#allocation2 + $0x24] sm:$0xf]
        %v4890 = vld [vmem:[#allocation2 + $0x28] sm:$0xf]
        %v4891 = vld [vmem:[#allocation2 + $0x2c] sm:$0xf]
        %v4892 = vld [vmem:[#allocation2 + $0x30] sm:$0xf]
        %v4893 = vld [vmem:[#allocation2 + $0x34] sm:$0xf]
        %v4894 = vld [vmem:[#allocation2 + $0x38] sm:$0xf]
        %v4895 = vld [vmem:[#allocation2 + $0x3c] sm:$0xf]
        %v4896 = vld [vmem:[%s3] sm:$0xf]
        %v4897 = vld [vmem:[%s3 + $0x4] sm:$0xf]
        %v4898 = vld [vmem:[%s3 + $0x8] sm:$0xf]
        %v4899 = vld [vmem:[%s3 + $0xc] sm:$0xf]
        %v4900 = vld [vmem:[%s4] sm:$0x1]
        %v4902 = vlaneseq
        %v4903 = vshrl.u32 %v4902, 7
        %v4904 = vsub.s32 0, %v4903
        %v4905 = vrot.slane %v4900, %v4904
        %v4923 = vunpack.c.l.b16 %v4880
        %v4924 = vunpack.c.l.b16 %v4881
        %v4925 = vunpack.c.l.b16 %v4882
        %v4926 = vunpack.c.l.b16 %v4883
        %v4927 = vunpack.c.l.b16 %v4884
        %v4928 = vunpack.c.l.b16 %v4885
        %v4929 = vunpack.c.l.b16 %v4886
        %v4930 = vunpack.c.l.b16 %v4887
        %v4931 = vunpack.c.l.b16 %v4888
        %v4932 = vunpack.c.l.b16 %v4889
        %v4933 = vunpack.c.l.b16 %v4890
        %v4934 = vunpack.c.l.b16 %v4891
        %v4935 = vunpack.c.l.b16 %v4892
        %v4936 = vunpack.c.l.b16 %v4893
        %v4937 = vunpack.c.l.b16 %v4894
        %v4938 = vunpack.c.l.b16 %v4895
        %v4939 = vpack.c.b16 %v4924, %v4923
        %v4940 = vpack.c.b16 %v4926, %v4925
        %v4941 = vpack.c.b16 %v4928, %v4927
        %v4942 = vpack.c.b16 %v4930, %v4929
        %v4943 = vpack.c.b16 %v4932, %v4931
        %v4944 = vpack.c.b16 %v4934, %v4933
        %v4945 = vpack.c.b16 %v4936, %v4935
        %v4946 = vpack.c.b16 %v4938, %v4937
        %v4951 = vunpack.c.l.b16 %v4896
        %v4952 = vunpack.c.l.b16 %v4897
        %v4953 = vunpack.c.l.b16 %v4898
        %v4954 = vunpack.c.l.b16 %v4899
        %v4955 = vpack.c.b16 %v4952, %v4951
        %v4956 = vpack.c.b16 %v4954, %v4953
        %v4960 = vsel %vm333, %v4939, 0
        %v4963 = vsel %vm333, %v4940, 0
        %v4966 = vsel %vm333, %v4941, 0
        %v4969 = vsel %vm333, %v4942, 0
        %v4972 = vsel %vm333, %v4943, 0
        %v4975 = vsel %vm333, %v4944, 0
        %v4978 = vsel %vm333, %v4945, 0
        %v4981 = vsel %vm333, %v4946, 0
        %4983 = vmatprep.subr.bf16.mxu0 0
        %4984 = vmatpush1.bf16.msra.mxu0 0
        %4985 = vmatprep.subr.bf16.mxu0 0
        %4986 = vmatpush1.bf16.msra.mxu0 0
        %4987 = vmatprep.subr.bf16.mxu0 0
        %4988 = vmatpush1.bf16.msra.mxu0 0
        %4989 = vmatprep.subr.bf16.mxu0 0
        %4990 = vmatpush1.bf16.msra.mxu0 0
        %4991 = vmatprep.subr.bf16.mxu0 0
        %4992 = vmatpush1.bf16.msra.mxu0 0
        %4993 = vmatprep.subr.bf16.mxu0 0
        %4994 = vmatpush1.bf16.msra.mxu0 0
        %4995 = vmatprep.subr.bf16.mxu0 0
        %4996 = vmatpush1.bf16.msra.mxu0 %v4956
        %4997 = vmatprep.subr.bf16.mxu0 0
        %4998 = vmatpush1.bf16.msra.mxu0 %v4955
        %4999 = vmatprep.subr.bf16.mxu0 0
        %5000 = vmatpush2.bf16.msra.mxu0 0
        %5001 = vmatprep.subr.bf16.mxu0 0
        %5002 = vmatpush2.bf16.msra.mxu0 0
        %5003 = vmatprep.subr.bf16.mxu0 0
        %5004 = vmatpush2.bf16.msra.mxu0 0
        %5005 = vmatprep.subr.bf16.mxu0 0
        %5006 = vmatpush2.bf16.msra.mxu0 0
        %5007 = vmatprep.subr.bf16.mxu0 0
        %5008 = vmatpush2.bf16.msra.mxu0 0
        %5009 = vmatprep.subr.bf16.mxu0 0
        %5010 = vmatpush2.bf16.msra.mxu0 0
        %5011 = vmatprep.subr.bf16.mxu0 0
        %5012 = vmatpush2.bf16.msra.mxu0 0
        %5013 = vmatprep.subr.bf16.mxu0 0
        %5014 = vmatpush2.bf16.msra.mxu0 0
        %5015 = vmatprep.mubr.bf16.mxu0 0
        %5016 = vmatmul.mubr.bf16.gmra.mxu0 %v4960
        %v5017 = vpop.f32.mrf.mxu0
        %v5018 = vadd.f32 %v4905, %v5017
        %v5019 = vpop.f32.mrf.mxu0
        %v5020 = vpop.f32.mrf.mxu0
        %v5021 = vadd.f32 %v4905, %v5020
        %v5022 = vpop.f32.mrf.mxu0
        %5023 = vmatprep.mubr.bf16.mxu0 0
        %5024 = vmatmul.mubr.bf16.gmra.mxu0 %v4963
        %v5025 = vpop.f32.mrf.mxu0
        %v5026 = vadd.f32 %v4905, %v5025
        %v5027 = vpop.f32.mrf.mxu0
        %v5028 = vpop.f32.mrf.mxu0
        %v5029 = vadd.f32 %v4905, %v5028
        %v5030 = vpop.f32.mrf.mxu0
        %5031 = vmatprep.mubr.bf16.mxu0 0
        %5032 = vmatmul.mubr.bf16.gmra.mxu0 %v4966
        %v5033 = vpop.f32.mrf.mxu0
        %v5034 = vadd.f32 %v4905, %v5033
        %v5035 = vpop.f32.mrf.mxu0
        %v5036 = vpop.f32.mrf.mxu0
        %v5037 = vadd.f32 %v4905, %v5036
        %v5038 = vpop.f32.mrf.mxu0
        %5039 = vmatprep.mubr.bf16.mxu0 0
        %5040 = vmatmul.mubr.bf16.gmra.mxu0 %v4969
        %v5041 = vpop.f32.mrf.mxu0
        %v5042 = vadd.f32 %v4905, %v5041
        %v5043 = vpop.f32.mrf.mxu0
        %v5044 = vpop.f32.mrf.mxu0
        %v5045 = vadd.f32 %v4905, %v5044
        %v5046 = vpop.f32.mrf.mxu0
        %5047 = vmatprep.mubr.bf16.mxu0 0
        %5048 = vmatmul.mubr.bf16.gmra.mxu0 %v4972
        %v5049 = vpop.f32.mrf.mxu0
        %v5050 = vadd.f32 %v4905, %v5049
        %v5051 = vpop.f32.mrf.mxu0
        %v5052 = vpop.f32.mrf.mxu0
        %v5053 = vadd.f32 %v4905, %v5052
        %v5054 = vpop.f32.mrf.mxu0
        %5055 = vmatprep.mubr.bf16.mxu0 0
        %5056 = vmatmul.mubr.bf16.gmra.mxu0 %v4975
        %v5057 = vpop.f32.mrf.mxu0
        %v5058 = vadd.f32 %v4905, %v5057
        %v5059 = vpop.f32.mrf.mxu0
        %v5060 = vpop.f32.mrf.mxu0
        %v5061 = vadd.f32 %v4905, %v5060
        %v5062 = vpop.f32.mrf.mxu0
        %5063 = vmatprep.mubr.bf16.mxu0 0
        %5064 = vmatmul.mubr.bf16.gmra.mxu0 %v4978
        %v5065 = vpop.f32.mrf.mxu0
        %v5066 = vadd.f32 %v4905, %v5065
        %v5067 = vpop.f32.mrf.mxu0
        %v5068 = vpop.f32.mrf.mxu0
        %v5069 = vadd.f32 %v4905, %v5068
        %v5070 = vpop.f32.mrf.mxu0
        %5071 = vmatprep.mubr.bf16.mxu0 0
        %5072 = vmatmul.mubr.bf16.gmra.mxu0 %v4981
        %v5073 = vpop.f32.mrf.mxu0
        %v5074 = vadd.f32 %v4905, %v5073
        %v5075 = vpop.f32.mrf.mxu0
        %v5076 = vpop.f32.mrf.mxu0
        %v5077 = vadd.f32 %v4905, %v5076
        %v5078 = vpop.f32.mrf.mxu0
        %5079 = vdwg.mxu0
        %5080 = vst [vmem:[%s245] sm:$0xff] %v5018
        %5081 = vst [vmem:[%s245 + $0x8] sm:$0xff] %v5021
        %5082 = vst [vmem:[%s245 + $0x10] sm:$0xff] %v5026
        %5083 = vst [vmem:[%s245 + $0x18] sm:$0xff] %v5029
        %5084 = vst [vmem:[%s245 + $0x20] sm:$0xff] %v5034
        %5085 = vst [vmem:[%s245 + $0x28] sm:$0xff] %v5037
        %5086 = vst [vmem:[%s245 + $0x30] sm:$0xff] %v5042
        %5087 = vst [vmem:[%s245 + $0x38] sm:$0xff] %v5045
        %5088 = vst [vmem:[%s245 + $0x40] sm:$0xff] %v5050
        %5089 = vst [vmem:[%s245 + $0x48] sm:$0xff] %v5053
        %5090 = vst [vmem:[%s245 + $0x50] sm:$0xff] %v5058
        %5091 = vst [vmem:[%s245 + $0x58] sm:$0xff] %v5061
        %5092 = vst [vmem:[%s245 + $0x60] sm:$0xff] %v5066
        %5093 = vst [vmem:[%s245 + $0x68] sm:$0xff] %v5069
        %5094 = vst [vmem:[%s245 + $0x70] sm:$0xff] %v5074
        %5095 = vst [vmem:[%s245 + $0x78] sm:$0xff] %v5077
        %s5096 = sand.u32 %s159, 1
        %s5097 = scalar_lea.sflag [#allocation4], %s5096
        %s5098 = sand.u32 %s159, 1
        %s5099 = smul.addr %s5098, 128
        %s5100 = scalar_lea.vmem [#allocation3], %s5099
        // Predicated region
        $region45: #{tpu_custom_call.1} parent=43 // pred_check
          %p5101 = pneg %p169
        $region46: #{tpu_custom_call.1} parent=43 // pred_check_branch
          %5103 = sbr.rel (%p5101) target = $region48
        $region47: #{tpu_custom_call.1} parent=43 // pred_region
          %s5104 = smul.u32 16, %s20
          %s5106 = ssub.s32 2048, 2048
          %5107 = vsyncadd %s5097, %s5106
          %s5108 = smul.addr %s5104, 128
          %s5109 = scalar_lea.hbm %s6, %s5108
          %s5110 = sshll.u32 %s5100, 4
          %s5111 = int_to_ptr.vmem [resolvable:$true] %s5110
          %5116 = dma.vmem_to_hbm [thread:$0]  %s5111, 2048, %s5109, %s5097, 128, 128, 8
        $region48: #{tpu_custom_call.1} parent=43 // pred_fallthru
          _
      $region44: #{tpu_custom_call.1} parent=5 // pred_fallthru
        _
      %p5117 = scmp.le.s32.totalorder 2, %s15
      // Predicated region
      $region49: #{tpu_custom_call.1} parent=5 // pred_check
        %p5118 = pneg %p5117
      $region50: #{tpu_custom_call.1} parent=5 // pred_check_branch
        %5120 = sbr.rel (%p5118) target = $region52
      $region51: #{tpu_custom_call.1} parent=5 // pred_region
        %s5121 = ssub.s32 %s15, 2
        // Predicated region
        $region53: #{tpu_custom_call.1} parent=51 // pred_check
          %p5122 = pneg %p175
        $region54: #{tpu_custom_call.1} parent=51 // pred_check_branch
          %5124 = sbr.rel (%p5122) target = $region56
        $region55: #{tpu_custom_call.1} parent=51 // pred_region
          %s5125 = sand.u32 %s160, 1
          %s5126 = scalar_lea.sflag [#allocation4], %s5125
          %s5127 = sand.u32 %s160, 1
          %s5128 = smul.addr %s5127, 128
          %s5129 = scalar_lea.vmem [#allocation3], %s5128
          %5130 = dma.done %s5126, 2048
        $region56: #{tpu_custom_call.1} parent=51 // pred_fallthru
          _
      $region52: #{tpu_custom_call.1} parent=5 // pred_fallthru
        _
    $region6: #{tpu_custom_call.1} parent=1 // loop_footer
      %s19 = sadd.s32 1, %s15
    $region7: #{tpu_custom_call.1} parent=1 // loop_footer_branch
      %14 = sbr.rel target = $region3
    $region8: #{tpu_custom_call.1} parent=1 // loop_exit
      _
    %5131 = vsyncpa [#allocation4], 1
    %s5132 = scalar_lea.sflag [#allocation4], 1
    %5133 = vsyncpa %s5132, 1

</llo_original>
